<compile_context>
chip_gen: v5e
topology: v5e:2x2
jax: 0.10.0
libtpu: 0.0.40
codegen_flags: <defaults>
</compile_context>

<pallas_src>
import math

import jax
import jax.numpy as jnp
import numpy as np
from jax.experimental import pallas as pl
from jax.experimental.pallas import tpu as pltpu

# flip to jnp.bfloat16 for ~2x MXU throughput when MXU-bound (re-validate 1e-3 check)
MXU_DTYPE = jnp.float32


# ----------------------------------------------------------------------------
# fused decoder kernel factory (channels-first: activations are (D, L))
# ----------------------------------------------------------------------------
def make_decoder_kernel(L, C, Dc, D, K, dilations, eps=1e-5):
    num_layers = len(dilations)
    pad_max = (K // 2) * max(dilations)
    inv_sqrt_d = 1.0 / math.sqrt(D)
    inv_sqrt_2 = 1.0 / math.sqrt(2.0)
    inv_d = 1.0 / D
    PER_LAYER = 14

    def mm(a, b):
        # weight matmul, f32 accumulation on the MXU
        return jnp.dot(a.astype(MXU_DTYPE), b.astype(MXU_DTYPE),
                       preferred_element_type=jnp.float32)

    def kernel(*refs):
        (tp_ref, ev_ref, xc_ref,
         win, bin_, wout, bout,
         mask_all, logb_all) = refs[:9]
        lrefs = refs[9:9 + num_layers * PER_LAYER]
        o_ref = refs[9 + num_layers * PER_LAYER]
        halo = refs[9 + num_layers * PER_LAYER + 1]     # (D, L + 2*pad_max) VMEM scratch

        ones_row = jnp.ones((1, D), jnp.float32)        # hoisted; used for channel sums

        tp = tp_ref[0]                                  # (D, 1)
        ev = ev_ref[0]                                  # (C, L)
        xc = xc_ref[0]                                  # (Dc, L)

        # ---- conv_in (1x1) fused with broadcast time-projection add: (D,C)@(C,L)
        fra = mm(win[...], ev) + bin_[...] + tp         # (D, L)

        # zero the halo columns once per grid step; the body is always overwritten
        if pad_max > 0:
            zero_halo = jnp.zeros((D, pad_max), jnp.float32)
            halo[:, pl.ds(0, pad_max)] = zero_halo
            halo[:, pl.ds(pad_max + L, pad_max)] = zero_halo

        def chan_sum(v):
            # channel (sublane) reduction as a (1,D)@(D,L) MXU matmul -> lane-dense (1,L)
            return jnp.dot(ones_row, v, preferred_element_type=jnp.float32)

        def ln_hat(v):
            # LayerNorm over channels; stats shared by conv/att branches (gamma=1 here)
            mu = chan_sum(v) * inv_d
            ctr = v - mu
            var = chan_sum(ctr * ctr) * inv_d
            return ctr * jax.lax.rsqrt(var + eps)

        for li in range(num_layers):
            dil = dilations[li]
            pad = (K // 2) * dil
            (gc, bcl, wc, bc, ga, bal, wqkv, bqkv,
             gf, bfl, w1, b1, w2, b2) = lrefs[li * PER_LAYER:(li + 1) * PER_LAYER]
            mask_l = mask_all[li]                       # (K, L) lane-dense
            logb_l = logb_all[li]                       # (K, L)

            x = fra
            xhat = ln_hat(x)
            xn_conv = xhat * gc[...] + bcl[...]
            xn_att = xhat * ga[...] + bal[...]

            # ---- dilated conv: K accumulated matmuls over the shared halo buffer
            halo[:, pl.ds(pad_max, L)] = xn_conv
            out1 = jnp.zeros((D, L), jnp.float32)
            for j in range(K):
                off = pad_max - pad + j * dil           # static python int
                out1 = out1 + mm(wc[j], halo[:, pl.ds(off, L)])
            out1 = out1 + bc[...]

            # ---- local dilated-window attention: fused q|k|v projection
            cat = jnp.concatenate([xn_att, xc], axis=0)                 # (D+Dc, L)
            qkv = mm(wqkv[...], cat) + bqkv[...]                        # (3D, L)
            q = qkv[:D]
            k = qkv[D:2 * D]
            v = qkv[2 * D:]

            # scores: per-window ones-row MXU reduce -> K lane-dense (1, L) rows
            halo[:, pl.ds(pad_max, L)] = k
            s_rows = []
            for j in range(K):
                off = pad_max - pad + j * dil
                prod = q * halo[:, pl.ds(off, L)]
                s_rows.append(chan_sum(prod) * inv_sqrt_d + logb_l[j:j + 1, :])

            # softmax over K: pure elementwise VPU work on (1, L) rows
            m = s_rows[0]
            for j in range(1, K):
                m = jnp.maximum(m, s_rows[j])
            e_rows = [jnp.exp(s - m) for s in s_rows]
            denom = e_rows[0]
            for j in range(1, K):
                denom = denom + e_rows[j]
            r = pl.reciprocal(denom, approx=False)
            att_rows = [e_rows[j] * r * mask_l[j:j + 1, :] for j in range(K)]

            # weighted sum of shifted v (sublane-broadcast multiplies, lane-dense)
            halo[:, pl.ds(pad_max, L)] = v
            out2 = jnp.zeros((D, L), jnp.float32)
            for j in range(K):
                off = pad_max - pad + j * dil
                out2 = out2 + att_rows[j] * halo[:, pl.ds(off, L)]

            # ---- FFN block
            comb = out1 + out2
            cn = ln_hat(comb) * gf[...] + bfl[...]
            h = mm(w1[...], cn) + b1[...]
            h = 0.5 * h * (1.0 + jax.lax.erf(h * inv_sqrt_2))           # exact GELU
            h = mm(w2[...], h) + b2[...]
            fra = x + h

        # ---- conv_out (1x1): lane-dense (C, L) store, output stays NCL
        o_ref[0] = mm(wout[...], fra) + bout[...]

    return kernel


# ----------------------------------------------------------------------------
# parameter init (deterministic, synthetic) — all weights stored channels-first:
#   Linear / 1x1-Conv -> (out, in), bias (out, 1);  dilated conv -> (K, out, in)
# ----------------------------------------------------------------------------
def init_params(key, input_dim, num_classes, num_layers, num_f_maps, time_emb_dim, kernel_size):
    keys = iter(jax.random.split(key, 256))

    def dense(cout, cin, bias_col=True):
        w = jax.random.normal(next(keys), (cout, cin), jnp.float32) * 0.1
        bshape = (cout, 1) if bias_col else (cout,)
        b = jax.random.normal(next(keys), bshape, jnp.float32) * 0.01
        return w, b

    p = {}
    p["time_w0"], p["time_b0"] = dense(time_emb_dim, time_emb_dim, bias_col=False)
    p["time_w1"], p["time_b1"] = dense(time_emb_dim, time_emb_dim, bias_col=False)
    p["time_wp"], p["time_bp"] = dense(num_f_maps, time_emb_dim, bias_col=False)
    p["conv_in_w"], p["conv_in_b"] = dense(num_f_maps, num_classes)
    p["conv_out_w"], p["conv_out_b"] = dense(num_classes, num_f_maps)

    d, dc = num_f_maps, input_dim
    layers = []
    for i in range(num_layers):
        lp = {"dilation": 2 ** i}
        lp["wc"] = jax.random.normal(next(keys), (kernel_size, d, d), jnp.float32) * 0.1
        lp["bc"] = jax.random.normal(next(keys), (d, 1), jnp.float32) * 0.01
        lp["wq"], lp["bq"] = dense(d, d + dc)
        lp["wk"], lp["bk"] = dense(d, d + dc)
        lp["wv"], lp["bv"] = dense(d, d)
        lp["w1"], lp["b1"] = dense(d, d)
        lp["w2"], lp["b2"] = dense(d, d)
        for nm in ("gc", "ga", "gf"):
            lp[nm] = jnp.ones((d, 1), jnp.float32)
        for nm in ("bcl", "bal", "bfl"):
            lp[nm] = jnp.zeros((d, 1), jnp.float32)
        layers.append(lp)
    p["layers"] = layers
    return p


def get_timestep_embedding(t, embedding_dim):
    half = embedding_dim // 2
    emb = math.log(10000.0) / (half - 1)
    emb = jnp.exp(jnp.arange(half, dtype=jnp.float32) * -emb)
    emb = t.astype(jnp.float32)[:, None] * emb[None, :]
    emb = jnp.concatenate([jnp.sin(emb), jnp.cos(emb)], axis=1)
    if embedding_dim % 2 == 1:
        emb = jnp.pad(emb, ((0, 0), (0, 1)))
    return emb


# ----------------------------------------------------------------------------
# DecoderModel forward (single fused Pallas kernel, NCL in / NCL out)
# ----------------------------------------------------------------------------
def decoder_forward(params, x, t, event, *, kernel_size):
    # x: (N, input_dim, L), t: (N,), event: (N, num_classes, L)  [PyTorch NCL, kept]
    n, dc, l = x.shape
    c = event.shape[1]
    d = params["conv_in_w"].shape[0]
    tdim = params["time_w0"].shape[0]
    K = kernel_size
    dilations = tuple(int(lp["dilation"]) for lp in params["layers"])
    num_layers = len(dilations)
    pad_max = (K // 2) * max(dilations)

    # ---- time-embedding MLP hoisted out of the kernel (tiny single-row matmuls)
    temb = get_timestep_embedding(t, tdim)
    h = temb @ params["time_w0"].T + params["time_b0"]
    h = h * jax.nn.sigmoid(h)
    h = h @ params["time_w1"].T + params["time_b1"]
    h = h * jax.nn.sigmoid(h)
    tp = (h @ params["time_wp"].T + params["time_bp"]).reshape(n, d, 1)   # (N, D, 1)

    # ---- static attention validity masks / log-bias, channels-first (num_layers, K, L)
    mask_np = np.zeros((num_layers, K, l), np.float32)
    for li, dil in enumerate(dilations):
        for j in range(K):
            off = (j - K // 2) * dil
            lo, hi = max(0, -off), min(l, l - off)
            if hi > lo:
                mask_np[li, j, lo:hi] = 1.0
    mask_all = jnp.asarray(mask_np)
    logb_all = jnp.asarray(np.log(mask_np + 1e-6).astype(np.float32))

    # ---- trace-time fused q|k|v projection (wv zero-padded over the cross channels)
    layer_args = []
    for lp in params["layers"]:
        wv_pad = jnp.concatenate([lp["wv"], jnp.zeros((d, dc), jnp.float32)], axis=1)
        wqkv = jnp.concatenate([lp["wq"], lp["wk"], wv_pad], axis=0)      # (3D, D+Dc)
        bqkv = jnp.concatenate([lp["bq"], lp["bk"], lp["bv"]], axis=0)    # (3D, 1)
        layer_args += [lp["gc"], lp["bcl"], lp["wc"], lp["bc"],
                       lp["ga"], lp["bal"], wqkv, bqkv,
                       lp["gf"], lp["bfl"], lp["w1"], lp["b1"], lp["w2"], lp["b2"]]

    inputs = [tp, event, x,
              params["conv_in_w"], params["conv_in_b"],
              params["conv_out_w"], params["conv_out_b"],
              mask_all, logb_all] + layer_args

    def per_batch(a):
        nd = a.ndim
        return pl.BlockSpec((1,) + tuple(a.shape[1:]), lambda i: (i,) + (0,) * (nd - 1))

    def shared(a):
        nd = a.ndim
        return pl.BlockSpec(tuple(a.shape), lambda i: (0,) * nd)

    in_specs = ([per_batch(tp), per_batch(event), per_batch(x)]
                + [shared(a) for a in inputs[3:]])

    # generation-aware VMEM limit (e.g. ~96 MiB on 128 MiB parts, ~48 MiB on v7x)
    try:
        vmem_cap = int(pltpu.get_tpu_info().vmem_capacity_bytes)
    except Exception:
        vmem_cap = 128 * 1024 * 1024
    vmem_limit = min(3 * vmem_cap // 4, 96 * 1024 * 1024)

    kernel = make_decoder_kernel(l, c, dc, d, K, dilations)

    out = pl.pallas_call(
        kernel,
        out_shape=jax.ShapeDtypeStruct((n, c, l), jnp.float32),
        grid=(n,),
        in_specs=in_specs,
        out_specs=pl.BlockSpec((1, c, l), lambda i: (i, 0, 0)),
        scratch_shapes=[pltpu.VMEM((d, l + 2 * pad_max), jnp.float32)],
        compiler_params=pltpu.CompilerParams(
            dimension_semantics=("parallel",),
            vmem_limit_bytes=vmem_limit),
    )(*inputs)
    return out                                           # (N, num_classes, L)


# ----------------------------------------------------------------------------
# pure-JAX reference (mirrors the PyTorch code, NCL) for a correctness check
# ----------------------------------------------------------------------------
def _ref_layer(xf, xc, lp, K):
    dil = int(lp["dilation"])
    pad = (K // 2) * dil
    nb, D, L = xf.shape

    def ln(v, g, b):
        mu = v.mean(axis=1, keepdims=True)
        var = ((v - mu) ** 2).mean(axis=1, keepdims=True)
        return (v - mu) * jax.lax.rsqrt(var + 1e-5) * g[None] + b[None]

    xn = ln(xf, lp["gc"], lp["bcl"])
    xp = jnp.pad(xn, ((0, 0), (0, 0), (pad, pad)))
    out1 = sum(jnp.einsum("oi,nil->nol", lp["wc"][j], xp[:, :, j * dil:j * dil + L])
               for j in range(K)) + lp["bc"][None]

    xa = ln(xf, lp["ga"], lp["bal"])
    cat = jnp.concatenate([xa, xc], axis=1)
    q = jnp.einsum("oi,nil->nol", lp["wq"], cat) + lp["bq"][None]
    k = jnp.einsum("oi,nil->nol", lp["wk"], cat) + lp["bk"][None]
    v = jnp.einsum("oi,nil->nol", lp["wv"], xa) + lp["bv"][None]

    idx = np.array([[q_pos + j * dil for j in range(K)] for q_pos in range(L)])
    kp = jnp.pad(k, ((0, 0), (0, 0), (pad, pad)))[:, :, idx]          # (N, D, L, K)
    vp = jnp.pad(v, ((0, 0), (0, 0), (pad, pad)))[:, :, idx]
    att = jnp.einsum("ncl,nclk->nlk", q, kp)
    mask = np.logical_and(idx >= pad, idx < L + pad).astype(np.float32)
    att = att / np.sqrt(D) + np.log(mask + 1e-6)
    att = att - att.max(-1, keepdims=True)
    att = jnp.exp(att)
    att = att / att.sum(-1, keepdims=True)
    att = att * mask
    out2 = jnp.einsum("nlk,nclk->ncl", att, vp)

    comb = ln(out1 + out2, lp["gf"], lp["bfl"])
    h = jnp.einsum("oi,nil->nol", lp["w1"], comb) + lp["b1"][None]
    h = 0.5 * h * (1.0 + jax.lax.erf(h / math.sqrt(2.0)))
    h = jnp.einsum("oi,nil->nol", lp["w2"], h) + lp["b2"][None]
    return xf + h


def reference_forward(params, x, t, event, *, kernel_size):
    tdim = params["time_w0"].shape[0]
    temb = get_timestep_embedding(t, tdim)
    h = temb @ params["time_w0"].T + params["time_b0"]
    h = h * jax.nn.sigmoid(h)
    h = h @ params["time_w1"].T + params["time_b1"]
    h = h * jax.nn.sigmoid(h)
    tp = h @ params["time_wp"].T + params["time_bp"]
    fra = (jnp.einsum("oc,ncl->nol", params["conv_in_w"], event)
           + params["conv_in_b"][None] + tp[:, :, None])
    for lp in params["layers"]:
        fra = _ref_layer(fra, x, lp, kernel_size)
    return (jnp.einsum("od,ndl->nol", params["conv_out_w"], fra)
            + params["conv_out_b"][None])


if __name__ == "__main__":
    input_dim, num_classes = 8, 4
    num_layers, num_f_maps = 2, 32
    time_emb_dim, kernel_size = 16, 3
    N, L = 2, 16

    key = jax.random.PRNGKey(0)
    kp, kx, kt, ke = jax.random.split(key, 4)
    params = init_params(kp, input_dim, num_classes, num_layers, num_f_maps,
                         time_emb_dim, kernel_size)
    x = jax.random.normal(kx, (N, input_dim, L), jnp.float32)
    t = jax.random.randint(kt, (N,), 0, 1000).astype(jnp.int32)
    event = jax.random.normal(ke, (N, num_classes, L), jnp.float32)

    out = jax.block_until_ready(
        decoder_forward(params, x, t, event, kernel_size=kernel_size))
    ref = jax.block_until_ready(
        reference_forward(params, x, t, event, kernel_size=kernel_size))
    np.testing.assert_allclose(np.asarray(out), np.asarray(ref), rtol=1e-3, atol=1e-3)
    print("KERNEL_OK")
</pallas_src>

<mosaic_0001>
module attributes {stable_mosaic.version = 11 : i64} {
  func.func @kernel(%arg0: i32, %arg1: memref<1x32x1xf32, #tpu.memory_space<vmem>>, %arg2: memref<1x4x16xf32, #tpu.memory_space<vmem>>, %arg3: memref<1x8x16xf32, #tpu.memory_space<vmem>>, %arg4: memref<32x4xf32, #tpu.memory_space<vmem>>, %arg5: memref<32x1xf32, #tpu.memory_space<vmem>>, %arg6: memref<4x32xf32, #tpu.memory_space<vmem>>, %arg7: memref<4x1xf32, #tpu.memory_space<vmem>>, %arg8: memref<2x3x16xf32, #tpu.memory_space<vmem>>, %arg9: memref<2x3x16xf32, #tpu.memory_space<vmem>>, %arg10: memref<32x1xf32, #tpu.memory_space<vmem>>, %arg11: memref<32x1xf32, #tpu.memory_space<vmem>>, %arg12: memref<3x32x32xf32, #tpu.memory_space<vmem>>, %arg13: memref<32x1xf32, #tpu.memory_space<vmem>>, %arg14: memref<32x1xf32, #tpu.memory_space<vmem>>, %arg15: memref<32x1xf32, #tpu.memory_space<vmem>>, %arg16: memref<96x40xf32, #tpu.memory_space<vmem>>, %arg17: memref<96x1xf32, #tpu.memory_space<vmem>>, %arg18: memref<32x1xf32, #tpu.memory_space<vmem>>, %arg19: memref<32x1xf32, #tpu.memory_space<vmem>>, %arg20: memref<32x32xf32, #tpu.memory_space<vmem>>, %arg21: memref<32x1xf32, #tpu.memory_space<vmem>>, %arg22: memref<32x32xf32, #tpu.memory_space<vmem>>, %arg23: memref<32x1xf32, #tpu.memory_space<vmem>>, %arg24: memref<32x1xf32, #tpu.memory_space<vmem>>, %arg25: memref<32x1xf32, #tpu.memory_space<vmem>>, %arg26: memref<3x32x32xf32, #tpu.memory_space<vmem>>, %arg27: memref<32x1xf32, #tpu.memory_space<vmem>>, %arg28: memref<32x1xf32, #tpu.memory_space<vmem>>, %arg29: memref<32x1xf32, #tpu.memory_space<vmem>>, %arg30: memref<96x40xf32, #tpu.memory_space<vmem>>, %arg31: memref<96x1xf32, #tpu.memory_space<vmem>>, %arg32: memref<32x1xf32, #tpu.memory_space<vmem>>, %arg33: memref<32x1xf32, #tpu.memory_space<vmem>>, %arg34: memref<32x32xf32, #tpu.memory_space<vmem>>, %arg35: memref<32x1xf32, #tpu.memory_space<vmem>>, %arg36: memref<32x32xf32, #tpu.memory_space<vmem>>, %arg37: memref<32x1xf32, #tpu.memory_space<vmem>>, %arg38: memref<1x4x16xf32, #tpu.memory_space<vmem>>, %arg39: memref<32x20xf32, #tpu.memory_space<vmem>>) attributes {dimension_semantics = [#tpu.dimension_semantics<parallel>], iteration_bounds = array<i64: 2>, scalar_prefetch = 0 : i64, scratch_operands = 1 : i64, tpu.core_type = #tpu.core_type<tc>, window_params = [{transform_indices = @transform_0, window_bounds = array<i64: 1, 32, 1>}, {transform_indices = @transform_1, window_bounds = array<i64: 1, 4, 16>}, {transform_indices = @transform_2, window_bounds = array<i64: 1, 8, 16>}, {pipeline_mode = #tpu.pipeline_mode<synchronous>, transform_indices = @transform_3, window_bounds = array<i64: 32, 4>}, {pipeline_mode = #tpu.pipeline_mode<synchronous>, transform_indices = @transform_4, window_bounds = array<i64: 32, 1>}, {pipeline_mode = #tpu.pipeline_mode<synchronous>, transform_indices = @transform_5, window_bounds = array<i64: 4, 32>}, {pipeline_mode = #tpu.pipeline_mode<synchronous>, transform_indices = @transform_6, window_bounds = array<i64: 4, 1>}, {pipeline_mode = #tpu.pipeline_mode<synchronous>, transform_indices = @transform_7, window_bounds = array<i64: 2, 3, 16>}, {pipeline_mode = #tpu.pipeline_mode<synchronous>, transform_indices = @transform_8, window_bounds = array<i64: 2, 3, 16>}, {pipeline_mode = #tpu.pipeline_mode<synchronous>, transform_indices = @transform_9, window_bounds = array<i64: 32, 1>}, {pipeline_mode = #tpu.pipeline_mode<synchronous>, transform_indices = @transform_10, window_bounds = array<i64: 32, 1>}, {pipeline_mode = #tpu.pipeline_mode<synchronous>, transform_indices = @transform_11, window_bounds = array<i64: 3, 32, 32>}, {pipeline_mode = #tpu.pipeline_mode<synchronous>, transform_indices = @transform_12, window_bounds = array<i64: 32, 1>}, {pipeline_mode = #tpu.pipeline_mode<synchronous>, transform_indices = @transform_13, window_bounds = array<i64: 32, 1>}, {pipeline_mode = #tpu.pipeline_mode<synchronous>, transform_indices = @transform_14, window_bounds = array<i64: 32, 1>}, {pipeline_mode = #tpu.pipeline_mode<synchronous>, transform_indices = @transform_15, window_bounds = array<i64: 96, 40>}, {pipeline_mode = #tpu.pipeline_mode<synchronous>, transform_indices = @transform_16, window_bounds = array<i64: 96, 1>}, {pipeline_mode = #tpu.pipeline_mode<synchronous>, transform_indices = @transform_17, window_bounds = array<i64: 32, 1>}, {pipeline_mode = #tpu.pipeline_mode<synchronous>, transform_indices = @transform_18, window_bounds = array<i64: 32, 1>}, {pipeline_mode = #tpu.pipeline_mode<synchronous>, transform_indices = @transform_19, window_bounds = array<i64: 32, 32>}, {pipeline_mode = #tpu.pipeline_mode<synchronous>, transform_indices = @transform_20, window_bounds = array<i64: 32, 1>}, {pipeline_mode = #tpu.pipeline_mode<synchronous>, transform_indices = @transform_21, window_bounds = array<i64: 32, 32>}, {pipeline_mode = #tpu.pipeline_mode<synchronous>, transform_indices = @transform_22, window_bounds = array<i64: 32, 1>}, {pipeline_mode = #tpu.pipeline_mode<synchronous>, transform_indices = @transform_23, window_bounds = array<i64: 32, 1>}, {pipeline_mode = #tpu.pipeline_mode<synchronous>, transform_indices = @transform_24, window_bounds = array<i64: 32, 1>}, {pipeline_mode = #tpu.pipeline_mode<synchronous>, transform_indices = @transform_25, window_bounds = array<i64: 3, 32, 32>}, {pipeline_mode = #tpu.pipeline_mode<synchronous>, transform_indices = @transform_26, window_bounds = array<i64: 32, 1>}, {pipeline_mode = #tpu.pipeline_mode<synchronous>, transform_indices = @transform_27, window_bounds = array<i64: 32, 1>}, {pipeline_mode = #tpu.pipeline_mode<synchronous>, transform_indices = @transform_28, window_bounds = array<i64: 32, 1>}, {pipeline_mode = #tpu.pipeline_mode<synchronous>, transform_indices = @transform_29, window_bounds = array<i64: 96, 40>}, {pipeline_mode = #tpu.pipeline_mode<synchronous>, transform_indices = @transform_30, window_bounds = array<i64: 96, 1>}, {pipeline_mode = #tpu.pipeline_mode<synchronous>, transform_indices = @transform_31, window_bounds = array<i64: 32, 1>}, {pipeline_mode = #tpu.pipeline_mode<synchronous>, transform_indices = @transform_32, window_bounds = array<i64: 32, 1>}, {pipeline_mode = #tpu.pipeline_mode<synchronous>, transform_indices = @transform_33, window_bounds = array<i64: 32, 32>}, {pipeline_mode = #tpu.pipeline_mode<synchronous>, transform_indices = @transform_34, window_bounds = array<i64: 32, 1>}, {pipeline_mode = #tpu.pipeline_mode<synchronous>, transform_indices = @transform_35, window_bounds = array<i64: 32, 32>}, {pipeline_mode = #tpu.pipeline_mode<synchronous>, transform_indices = @transform_36, window_bounds = array<i64: 32, 1>}, {transform_indices = @transform_37, window_bounds = array<i64: 1, 4, 16>}]} {
    %cst = arith.constant 1.000000e+00 : f32
    %0 = vector.broadcast %cst : f32 to vector<1x32xf32>
    %c0 = arith.constant 0 : index
    %c0_0 = arith.constant 0 : index
    %c0_1 = arith.constant 0 : index
    %1 = vector.load %arg1[%c0, %c0_0, %c0_1] : memref<1x32x1xf32, #tpu.memory_space<vmem>>, vector<1x32x1xf32>
    %2 = vector.shape_cast %1 : vector<1x32x1xf32> to vector<32x1xf32>
    %c0_2 = arith.constant 0 : index
    %c0_3 = arith.constant 0 : index
    %c0_4 = arith.constant 0 : index
    %3 = vector.load %arg2[%c0_2, %c0_3, %c0_4] : memref<1x4x16xf32, #tpu.memory_space<vmem>>, vector<1x4x16xf32>
    %4 = vector.shape_cast %3 : vector<1x4x16xf32> to vector<4x16xf32>
    %c0_5 = arith.constant 0 : index
    %c0_6 = arith.constant 0 : index
    %c0_7 = arith.constant 0 : index
    %5 = vector.load %arg3[%c0_5, %c0_6, %c0_7] : memref<1x8x16xf32, #tpu.memory_space<vmem>>, vector<1x8x16xf32>
    %6 = vector.shape_cast %5 : vector<1x8x16xf32> to vector<8x16xf32>
    %c0_8 = arith.constant 0 : index
    %c0_9 = arith.constant 0 : index
    %7 = vector.load %arg4[%c0_8, %c0_9] : memref<32x4xf32, #tpu.memory_space<vmem>>, vector<32x4xf32>
    %cst_10 = arith.constant dense<0.000000e+00> : vector<32x16xf32>
    %8 = tpu.matmul %7, %4, %cst_10 {dimension_numbers = #tpu.dot_dimension_numbers<[1], [0], [0], [1], [0, 0, 1, 1], [], []>} : vector<32x4xf32>, vector<4x16xf32>, vector<32x16xf32> -> vector<32x16xf32>
    %c0_11 = arith.constant 0 : index
    %c0_12 = arith.constant 0 : index
    %9 = vector.load %arg5[%c0_11, %c0_12] : memref<32x1xf32, #tpu.memory_space<vmem>>, vector<32x1xf32>
    %10 = vector.broadcast %9 : vector<32x1xf32> to vector<32x16xf32>
    %11 = arith.addf %8, %10 : vector<32x16xf32>
    %12 = vector.broadcast %2 : vector<32x1xf32> to vector<32x16xf32>
    %13 = arith.addf %11, %12 : vector<32x16xf32>
    %cst_13 = arith.constant 0.000000e+00 : f32
    %14 = vector.broadcast %cst_13 : f32 to vector<32x2xf32>
    %c0_14 = arith.constant 0 : index
    %c0_15 = arith.constant 0 : index
    %15 = vector.load %arg39[%c0_14, %c0_15] : memref<32x20xf32, #tpu.memory_space<vmem>>, vector<32x2xf32>
    tpu.vector_store %arg39[%c0_14, %c0_15], %14 {strides = array<i32>} : memref<32x20xf32, #tpu.memory_space<vmem>>, vector<32x2xf32>,
    %c0_16 = arith.constant 0 : index
    %c18 = arith.constant 18 : index
    %16 = vector.load %arg39[%c0_16, %c18] : memref<32x20xf32, #tpu.memory_space<vmem>>, vector<32x2xf32>
    tpu.vector_store %arg39[%c0_16, %c18], %14 {strides = array<i32>} : memref<32x20xf32, #tpu.memory_space<vmem>>, vector<32x2xf32>,
    %c0_17 = arith.constant 0 : index
    %c0_18 = arith.constant 0 : index
    %c0_19 = arith.constant 0 : index
    %17 = vector.load %arg8[%c0_17, %c0_18, %c0_19] : memref<2x3x16xf32, #tpu.memory_space<vmem>>, vector<1x3x16xf32>
    %18 = vector.shape_cast %17 : vector<1x3x16xf32> to vector<3x16xf32>
    %c0_20 = arith.constant 0 : index
    %c0_21 = arith.constant 0 : index
    %c0_22 = arith.constant 0 : index
    %19 = vector.load %arg9[%c0_20, %c0_21, %c0_22] : memref<2x3x16xf32, #tpu.memory_space<vmem>>, vector<1x3x16xf32>
    %20 = vector.shape_cast %19 : vector<1x3x16xf32> to vector<3x16xf32>
    %cst_23 = arith.constant dense<0.000000e+00> : vector<1x16xf32>
    %21 = tpu.matmul %0, %13, %cst_23 {dimension_numbers = #tpu.dot_dimension_numbers<[1], [0], [0], [1], [0, 0, 1, 1], [], []>} : vector<1x32xf32>, vector<32x16xf32>, vector<1x16xf32> -> vector<1x16xf32>
    %cst_24 = arith.constant 3.125000e-02 : f32
    %22 = vector.broadcast %cst_24 : f32 to vector<1x16xf32>
    %23 = arith.mulf %21, %22 : vector<1x16xf32>
    %24 = vector.broadcast %23 : vector<1x16xf32> to vector<32x16xf32>
    %25 = arith.subf %13, %24 : vector<32x16xf32>
    %26 = arith.mulf %25, %25 : vector<32x16xf32>
    %cst_25 = arith.constant dense<0.000000e+00> : vector<1x16xf32>
    %27 = tpu.matmul %0, %26, %cst_25 {dimension_numbers = #tpu.dot_dimension_numbers<[1], [0], [0], [1], [0, 0, 1, 1], [], []>} : vector<1x32xf32>, vector<32x16xf32>, vector<1x16xf32> -> vector<1x16xf32>
    %cst_26 = arith.constant 3.125000e-02 : f32
    %28 = vector.broadcast %cst_26 : f32 to vector<1x16xf32>
    %29 = arith.mulf %27, %28 : vector<1x16xf32>
    %cst_27 = arith.constant 9.99999974E-6 : f32
    %30 = vector.broadcast %cst_27 : f32 to vector<1x16xf32>
    %31 = arith.addf %29, %30 : vector<1x16xf32>
    %32 = math.rsqrt %31 : vector<1x16xf32>
    %33 = vector.broadcast %32 : vector<1x16xf32> to vector<32x16xf32>
    %34 = arith.mulf %25, %33 : vector<32x16xf32>
    %c0_28 = arith.constant 0 : index
    %c0_29 = arith.constant 0 : index
    %35 = vector.load %arg10[%c0_28, %c0_29] : memref<32x1xf32, #tpu.memory_space<vmem>>, vector<32x1xf32>
    %36 = vector.broadcast %35 : vector<32x1xf32> to vector<32x16xf32>
    %37 = arith.mulf %34, %36 : vector<32x16xf32>
    %c0_30 = arith.constant 0 : index
    %c0_31 = arith.constant 0 : index
    %38 = vector.load %arg11[%c0_30, %c0_31] : memref<32x1xf32, #tpu.memory_space<vmem>>, vector<32x1xf32>
    %39 = vector.broadcast %38 : vector<32x1xf32> to vector<32x16xf32>
    %40 = arith.addf %37, %39 : vector<32x16xf32>
    %c0_32 = arith.constant 0 : index
    %c0_33 = arith.constant 0 : index
    %41 = vector.load %arg14[%c0_32, %c0_33] : memref<32x1xf32, #tpu.memory_space<vmem>>, vector<32x1xf32>
    %42 = vector.broadcast %41 : vector<32x1xf32> to vector<32x16xf32>
    %43 = arith.mulf %34, %42 : vector<32x16xf32>
    %c0_34 = arith.constant 0 : index
    %c0_35 = arith.constant 0 : index
    %44 = vector.load %arg15[%c0_34, %c0_35] : memref<32x1xf32, #tpu.memory_space<vmem>>, vector<32x1xf32>
    %45 = vector.broadcast %44 : vector<32x1xf32> to vector<32x16xf32>
    %46 = arith.addf %43, %45 : vector<32x16xf32>
    %c0_36 = arith.constant 0 : index
    %c2 = arith.constant 2 : index
    %47 = vector.load %arg39[%c0_36, %c2] : memref<32x20xf32, #tpu.memory_space<vmem>>, vector<32x16xf32>
    tpu.vector_store %arg39[%c0_36, %c2], %40 {strides = array<i32>} : memref<32x20xf32, #tpu.memory_space<vmem>>, vector<32x16xf32>,
    %cst_37 = arith.constant 0.000000e+00 : f32
    %48 = vector.broadcast %cst_37 : f32 to vector<32x16xf32>
    %c0_38 = arith.constant 0 : index
    %c0_39 = arith.constant 0 : index
    %c0_40 = arith.constant 0 : index
    %49 = vector.load %arg12[%c0_38, %c0_39, %c0_40] : memref<3x32x32xf32, #tpu.memory_space<vmem>>, vector<1x32x32xf32>
    %50 = vector.shape_cast %49 : vector<1x32x32xf32> to vector<32x32xf32>
    %c0_41 = arith.constant 0 : index
    %c1 = arith.constant 1 : index
    %51 = vector.load %arg39[%c0_41, %c1] : memref<32x20xf32, #tpu.memory_space<vmem>>, vector<32x16xf32>
    %cst_42 = arith.constant dense<0.000000e+00> : vector<32x16xf32>
    %52 = tpu.matmul %50, %51, %cst_42 {dimension_numbers = #tpu.dot_dimension_numbers<[1], [0], [0], [1], [0, 0, 1, 1], [], []>} : vector<32x32xf32>, vector<32x16xf32>, vector<32x16xf32> -> vector<32x16xf32>
    %53 = arith.addf %48, %52 : vector<32x16xf32>
    %c1_43 = arith.constant 1 : index
    %c0_44 = arith.constant 0 : index
    %c0_45 = arith.constant 0 : index
    %54 = vector.load %arg12[%c1_43, %c0_44, %c0_45] : memref<3x32x32xf32, #tpu.memory_space<vmem>>, vector<1x32x32xf32>
    %55 = vector.shape_cast %54 : vector<1x32x32xf32> to vector<32x32xf32>
    %c0_46 = arith.constant 0 : index
    %c2_47 = arith.constant 2 : index
    %56 = vector.load %arg39[%c0_46, %c2_47] : memref<32x20xf32, #tpu.memory_space<vmem>>, vector<32x16xf32>
    %cst_48 = arith.constant dense<0.000000e+00> : vector<32x16xf32>
    %57 = tpu.matmul %55, %56, %cst_48 {dimension_numbers = #tpu.dot_dimension_numbers<[1], [0], [0], [1], [0, 0, 1, 1], [], []>} : vector<32x32xf32>, vector<32x16xf32>, vector<32x16xf32> -> vector<32x16xf32>
    %58 = arith.addf %53, %57 : vector<32x16xf32>
    %c2_49 = arith.constant 2 : index
    %c0_50 = arith.constant 0 : index
    %c0_51 = arith.constant 0 : index
    %59 = vector.load %arg12[%c2_49, %c0_50, %c0_51] : memref<3x32x32xf32, #tpu.memory_space<vmem>>, vector<1x32x32xf32>
    %60 = vector.shape_cast %59 : vector<1x32x32xf32> to vector<32x32xf32>
    %c0_52 = arith.constant 0 : index
    %c3 = arith.constant 3 : index
    %61 = vector.load %arg39[%c0_52, %c3] : memref<32x20xf32, #tpu.memory_space<vmem>>, vector<32x16xf32>
    %cst_53 = arith.constant dense<0.000000e+00> : vector<32x16xf32>
    %62 = tpu.matmul %60, %61, %cst_53 {dimension_numbers = #tpu.dot_dimension_numbers<[1], [0], [0], [1], [0, 0, 1, 1], [], []>} : vector<32x32xf32>, vector<32x16xf32>, vector<32x16xf32> -> vector<32x16xf32>
    %63 = arith.addf %58, %62 : vector<32x16xf32>
    %c0_54 = arith.constant 0 : index
    %c0_55 = arith.constant 0 : index
    %64 = vector.load %arg13[%c0_54, %c0_55] : memref<32x1xf32, #tpu.memory_space<vmem>>, vector<32x1xf32>
    %65 = vector.broadcast %64 : vector<32x1xf32> to vector<32x16xf32>
    %66 = arith.addf %63, %65 : vector<32x16xf32>
    %67 = tpu.concatenate %46, %6 in 0 : vector<32x16xf32>, vector<8x16xf32> -> vector<40x16xf32>
    %c0_56 = arith.constant 0 : index
    %c0_57 = arith.constant 0 : index
    %68 = vector.load %arg16[%c0_56, %c0_57] : memref<96x40xf32, #tpu.memory_space<vmem>>, vector<96x40xf32>
    %cst_58 = arith.constant dense<0.000000e+00> : vector<96x16xf32>
    %69 = tpu.matmul %68, %67, %cst_58 {dimension_numbers = #tpu.dot_dimension_numbers<[1], [0], [0], [1], [0, 0, 1, 1], [], []>} : vector<96x40xf32>, vector<40x16xf32>, vector<96x16xf32> -> vector<96x16xf32>
    %c0_59 = arith.constant 0 : index
    %c0_60 = arith.constant 0 : index
    %70 = vector.load %arg17[%c0_59, %c0_60] : memref<96x1xf32, #tpu.memory_space<vmem>>, vector<96x1xf32>
    %71 = vector.broadcast %70 : vector<96x1xf32> to vector<96x16xf32>
    %72 = arith.addf %69, %71 : vector<96x16xf32>
    %73 = vector.extract_strided_slice %72 {offsets = [0, 0], sizes = [32, 16], strides = [1, 1]} : vector<96x16xf32> to vector<32x16xf32>
    %74 = vector.extract_strided_slice %72 {offsets = [32, 0], sizes = [32, 16], strides = [1, 1]} : vector<96x16xf32> to vector<32x16xf32>
    %75 = vector.extract_strided_slice %72 {offsets = [64, 0], sizes = [32, 16], strides = [1, 1]} : vector<96x16xf32> to vector<32x16xf32>
    %c0_61 = arith.constant 0 : index
    %c2_62 = arith.constant 2 : index
    %76 = vector.load %arg39[%c0_61, %c2_62] : memref<32x20xf32, #tpu.memory_space<vmem>>, vector<32x16xf32>
    tpu.vector_store %arg39[%c0_61, %c2_62], %74 {strides = array<i32>} : memref<32x20xf32, #tpu.memory_space<vmem>>, vector<32x16xf32>,
    %c0_63 = arith.constant 0 : index
    %c1_64 = arith.constant 1 : index
    %77 = vector.load %arg39[%c0_63, %c1_64] : memref<32x20xf32, #tpu.memory_space<vmem>>, vector<32x16xf32>
    %78 = arith.mulf %73, %77 : vector<32x16xf32>
    %cst_65 = arith.constant dense<0.000000e+00> : vector<1x16xf32>
    %79 = tpu.matmul %0, %78, %cst_65 {dimension_numbers = #tpu.dot_dimension_numbers<[1], [0], [0], [1], [0, 0, 1, 1], [], []>} : vector<1x32xf32>, vector<32x16xf32>, vector<1x16xf32> -> vector<1x16xf32>
    %cst_66 = arith.constant 0.176776692 : f32
    %80 = vector.broadcast %cst_66 : f32 to vector<1x16xf32>
    %81 = arith.mulf %79, %80 : vector<1x16xf32>
    %82 = vector.extract_strided_slice %20 {offsets = [0, 0], sizes = [1, 16], strides = [1, 1]} : vector<3x16xf32> to vector<1x16xf32>
    %83 = arith.addf %81, %82 : vector<1x16xf32>
    %c0_67 = arith.constant 0 : index
    %c2_68 = arith.constant 2 : index
    %84 = vector.load %arg39[%c0_67, %c2_68] : memref<32x20xf32, #tpu.memory_space<vmem>>, vector<32x16xf32>
    %85 = arith.mulf %73, %84 : vector<32x16xf32>
    %cst_69 = arith.constant dense<0.000000e+00> : vector<1x16xf32>
    %86 = tpu.matmul %0, %85, %cst_69 {dimension_numbers = #tpu.dot_dimension_numbers<[1], [0], [0], [1], [0, 0, 1, 1], [], []>} : vector<1x32xf32>, vector<32x16xf32>, vector<1x16xf32> -> vector<1x16xf32>
    %cst_70 = arith.constant 0.176776692 : f32
    %87 = vector.broadcast %cst_70 : f32 to vector<1x16xf32>
    %88 = arith.mulf %86, %87 : vector<1x16xf32>
    %89 = vector.extract_strided_slice %20 {offsets = [1, 0], sizes = [1, 16], strides = [1, 1]} : vector<3x16xf32> to vector<1x16xf32>
    %90 = arith.addf %88, %89 : vector<1x16xf32>
    %c0_71 = arith.constant 0 : index
    %c3_72 = arith.constant 3 : index
    %91 = vector.load %arg39[%c0_71, %c3_72] : memref<32x20xf32, #tpu.memory_space<vmem>>, vector<32x16xf32>
    %92 = arith.mulf %73, %91 : vector<32x16xf32>
    %cst_73 = arith.constant dense<0.000000e+00> : vector<1x16xf32>
    %93 = tpu.matmul %0, %92, %cst_73 {dimension_numbers = #tpu.dot_dimension_numbers<[1], [0], [0], [1], [0, 0, 1, 1], [], []>} : vector<1x32xf32>, vector<32x16xf32>, vector<1x16xf32> -> vector<1x16xf32>
    %cst_74 = arith.constant 0.176776692 : f32
    %94 = vector.broadcast %cst_74 : f32 to vector<1x16xf32>
    %95 = arith.mulf %93, %94 : vector<1x16xf32>
    %96 = vector.extract_strided_slice %20 {offsets = [2, 0], sizes = [1, 16], strides = [1, 1]} : vector<3x16xf32> to vector<1x16xf32>
    %97 = arith.addf %95, %96 : vector<1x16xf32>
    %98 = arith.maximumf %83, %90 : vector<1x16xf32>
    %99 = arith.maximumf %98, %97 : vector<1x16xf32>
    %100 = arith.subf %83, %99 : vector<1x16xf32>
    %101 = math.exp %100 : vector<1x16xf32>
    %102 = arith.subf %90, %99 : vector<1x16xf32>
    %103 = math.exp %102 : vector<1x16xf32>
    %104 = arith.subf %97, %99 : vector<1x16xf32>
    %105 = math.exp %104 : vector<1x16xf32>
    %106 = arith.addf %101, %103 : vector<1x16xf32>
    %107 = arith.addf %106, %105 : vector<1x16xf32>
    %108 = tpu.reciprocal %107 : vector<1x16xf32> -> vector<1x16xf32>
    %109 = arith.mulf %101, %108 : vector<1x16xf32>
    %110 = vector.extract_strided_slice %18 {offsets = [0, 0], sizes = [1, 16], strides = [1, 1]} : vector<3x16xf32> to vector<1x16xf32>
    %111 = arith.mulf %109, %110 : vector<1x16xf32>
    %112 = arith.mulf %103, %108 : vector<1x16xf32>
    %113 = vector.extract_strided_slice %18 {offsets = [1, 0], sizes = [1, 16], strides = [1, 1]} : vector<3x16xf32> to vector<1x16xf32>
    %114 = arith.mulf %112, %113 : vector<1x16xf32>
    %115 = arith.mulf %105, %108 : vector<1x16xf32>
    %116 = vector.extract_strided_slice %18 {offsets = [2, 0], sizes = [1, 16], strides = [1, 1]} : vector<3x16xf32> to vector<1x16xf32>
    %117 = arith.mulf %115, %116 : vector<1x16xf32>
    %c0_75 = arith.constant 0 : index
    %c2_76 = arith.constant 2 : index
    %118 = vector.load %arg39[%c0_75, %c2_76] : memref<32x20xf32, #tpu.memory_space<vmem>>, vector<32x16xf32>
    tpu.vector_store %arg39[%c0_75, %c2_76], %75 {strides = array<i32>} : memref<32x20xf32, #tpu.memory_space<vmem>>, vector<32x16xf32>,
    %cst_77 = arith.constant 0.000000e+00 : f32
    %119 = vector.broadcast %cst_77 : f32 to vector<32x16xf32>
    %c0_78 = arith.constant 0 : index
    %c1_79 = arith.constant 1 : index
    %120 = vector.load %arg39[%c0_78, %c1_79] : memref<32x20xf32, #tpu.memory_space<vmem>>, vector<32x16xf32>
    %121 = vector.broadcast %111 : vector<1x16xf32> to vector<32x16xf32>
    %122 = arith.mulf %121, %120 : vector<32x16xf32>
    %123 = arith.addf %119, %122 : vector<32x16xf32>
    %c0_80 = arith.constant 0 : index
    %c2_81 = arith.constant 2 : index
    %124 = vector.load %arg39[%c0_80, %c2_81] : memref<32x20xf32, #tpu.memory_space<vmem>>, vector<32x16xf32>
    %125 = vector.broadcast %114 : vector<1x16xf32> to vector<32x16xf32>
    %126 = arith.mulf %125, %124 : vector<32x16xf32>
    %127 = arith.addf %123, %126 : vector<32x16xf32>
    %c0_82 = arith.constant 0 : index
    %c3_83 = arith.constant 3 : index
    %128 = vector.load %arg39[%c0_82, %c3_83] : memref<32x20xf32, #tpu.memory_space<vmem>>, vector<32x16xf32>
    %129 = vector.broadcast %117 : vector<1x16xf32> to vector<32x16xf32>
    %130 = arith.mulf %129, %128 : vector<32x16xf32>
    %131 = arith.addf %127, %130 : vector<32x16xf32>
    %132 = arith.addf %66, %131 : vector<32x16xf32>
    %cst_84 = arith.constant dense<0.000000e+00> : vector<1x16xf32>
    %133 = tpu.matmul %0, %132, %cst_84 {dimension_numbers = #tpu.dot_dimension_numbers<[1], [0], [0], [1], [0, 0, 1, 1], [], []>} : vector<1x32xf32>, vector<32x16xf32>, vector<1x16xf32> -> vector<1x16xf32>
    %cst_85 = arith.constant 3.125000e-02 : f32
    %134 = vector.broadcast %cst_85 : f32 to vector<1x16xf32>
    %135 = arith.mulf %133, %134 : vector<1x16xf32>
    %136 = vector.broadcast %135 : vector<1x16xf32> to vector<32x16xf32>
    %137 = arith.subf %132, %136 : vector<32x16xf32>
    %138 = arith.mulf %137, %137 : vector<32x16xf32>
    %cst_86 = arith.constant dense<0.000000e+00> : vector<1x16xf32>
    %139 = tpu.matmul %0, %138, %cst_86 {dimension_numbers = #tpu.dot_dimension_numbers<[1], [0], [0], [1], [0, 0, 1, 1], [], []>} : vector<1x32xf32>, vector<32x16xf32>, vector<1x16xf32> -> vector<1x16xf32>
    %cst_87 = arith.constant 3.125000e-02 : f32
    %140 = vector.broadcast %cst_87 : f32 to vector<1x16xf32>
    %141 = arith.mulf %139, %140 : vector<1x16xf32>
    %cst_88 = arith.constant 9.99999974E-6 : f32
    %142 = vector.broadcast %cst_88 : f32 to vector<1x16xf32>
    %143 = arith.addf %141, %142 : vector<1x16xf32>
    %144 = math.rsqrt %143 : vector<1x16xf32>
    %145 = vector.broadcast %144 : vector<1x16xf32> to vector<32x16xf32>
    %146 = arith.mulf %137, %145 : vector<32x16xf32>
    %c0_89 = arith.constant 0 : index
    %c0_90 = arith.constant 0 : index
    %147 = vector.load %arg18[%c0_89, %c0_90] : memref<32x1xf32, #tpu.memory_space<vmem>>, vector<32x1xf32>
    %148 = vector.broadcast %147 : vector<32x1xf32> to vector<32x16xf32>
    %149 = arith.mulf %146, %148 : vector<32x16xf32>
    %c0_91 = arith.constant 0 : index
    %c0_92 = arith.constant 0 : index
    %150 = vector.load %arg19[%c0_91, %c0_92] : memref<32x1xf32, #tpu.memory_space<vmem>>, vector<32x1xf32>
    %151 = vector.broadcast %150 : vector<32x1xf32> to vector<32x16xf32>
    %152 = arith.addf %149, %151 : vector<32x16xf32>
    %c0_93 = arith.constant 0 : index
    %c0_94 = arith.constant 0 : index
    %153 = vector.load %arg20[%c0_93, %c0_94] : memref<32x32xf32, #tpu.memory_space<vmem>>, vector<32x32xf32>
    %cst_95 = arith.constant dense<0.000000e+00> : vector<32x16xf32>
    %154 = tpu.matmul %153, %152, %cst_95 {dimension_numbers = #tpu.dot_dimension_numbers<[1], [0], [0], [1], [0, 0, 1, 1], [], []>} : vector<32x32xf32>, vector<32x16xf32>, vector<32x16xf32> -> vector<32x16xf32>
    %c0_96 = arith.constant 0 : index
    %c0_97 = arith.constant 0 : index
    %155 = vector.load %arg21[%c0_96, %c0_97] : memref<32x1xf32, #tpu.memory_space<vmem>>, vector<32x1xf32>
    %156 = vector.broadcast %155 : vector<32x1xf32> to vector<32x16xf32>
    %157 = arith.addf %154, %156 : vector<32x16xf32>
    %cst_98 = arith.constant 5.000000e-01 : f32
    %158 = vector.broadcast %cst_98 : f32 to vector<32x16xf32>
    %159 = arith.mulf %158, %157 : vector<32x16xf32>
    %cst_99 = arith.constant 0.707106769 : f32
    %160 = vector.broadcast %cst_99 : f32 to vector<32x16xf32>
    %161 = arith.mulf %157, %160 : vector<32x16xf32>
    %162 = math.erf %161 : vector<32x16xf32>
    %cst_100 = arith.constant 1.000000e+00 : f32
    %163 = vector.broadcast %cst_100 : f32 to vector<32x16xf32>
    %164 = arith.addf %163, %162 : vector<32x16xf32>
    %165 = arith.mulf %159, %164 : vector<32x16xf32>
    %c0_101 = arith.constant 0 : index
    %c0_102 = arith.constant 0 : index
    %166 = vector.load %arg22[%c0_101, %c0_102] : memref<32x32xf32, #tpu.memory_space<vmem>>, vector<32x32xf32>
    %cst_103 = arith.constant dense<0.000000e+00> : vector<32x16xf32>
    %167 = tpu.matmul %166, %165, %cst_103 {dimension_numbers = #tpu.dot_dimension_numbers<[1], [0], [0], [1], [0, 0, 1, 1], [], []>} : vector<32x32xf32>, vector<32x16xf32>, vector<32x16xf32> -> vector<32x16xf32>
    %c0_104 = arith.constant 0 : index
    %c0_105 = arith.constant 0 : index
    %168 = vector.load %arg23[%c0_104, %c0_105] : memref<32x1xf32, #tpu.memory_space<vmem>>, vector<32x1xf32>
    %169 = vector.broadcast %168 : vector<32x1xf32> to vector<32x16xf32>
    %170 = arith.addf %167, %169 : vector<32x16xf32>
    %171 = arith.addf %13, %170 : vector<32x16xf32>
    %c1_106 = arith.constant 1 : index
    %c0_107 = arith.constant 0 : index
    %c0_108 = arith.constant 0 : index
    %172 = vector.load %arg8[%c1_106, %c0_107, %c0_108] : memref<2x3x16xf32, #tpu.memory_space<vmem>>, vector<1x3x16xf32>
    %173 = vector.shape_cast %172 : vector<1x3x16xf32> to vector<3x16xf32>
    %c1_109 = arith.constant 1 : index
    %c0_110 = arith.constant 0 : index
    %c0_111 = arith.constant 0 : index
    %174 = vector.load %arg9[%c1_109, %c0_110, %c0_111] : memref<2x3x16xf32, #tpu.memory_space<vmem>>, vector<1x3x16xf32>
    %175 = vector.shape_cast %174 : vector<1x3x16xf32> to vector<3x16xf32>
    %cst_112 = arith.constant dense<0.000000e+00> : vector<1x16xf32>
    %176 = tpu.matmul %0, %171, %cst_112 {dimension_numbers = #tpu.dot_dimension_numbers<[1], [0], [0], [1], [0, 0, 1, 1], [], []>} : vector<1x32xf32>, vector<32x16xf32>, vector<1x16xf32> -> vector<1x16xf32>
    %cst_113 = arith.constant 3.125000e-02 : f32
    %177 = vector.broadcast %cst_113 : f32 to vector<1x16xf32>
    %178 = arith.mulf %176, %177 : vector<1x16xf32>
    %179 = vector.broadcast %178 : vector<1x16xf32> to vector<32x16xf32>
    %180 = arith.subf %171, %179 : vector<32x16xf32>
    %181 = arith.mulf %180, %180 : vector<32x16xf32>
    %cst_114 = arith.constant dense<0.000000e+00> : vector<1x16xf32>
    %182 = tpu.matmul %0, %181, %cst_114 {dimension_numbers = #tpu.dot_dimension_numbers<[1], [0], [0], [1], [0, 0, 1, 1], [], []>} : vector<1x32xf32>, vector<32x16xf32>, vector<1x16xf32> -> vector<1x16xf32>
    %cst_115 = arith.constant 3.125000e-02 : f32
    %183 = vector.broadcast %cst_115 : f32 to vector<1x16xf32>
    %184 = arith.mulf %182, %183 : vector<1x16xf32>
    %cst_116 = arith.constant 9.99999974E-6 : f32
    %185 = vector.broadcast %cst_116 : f32 to vector<1x16xf32>
    %186 = arith.addf %184, %185 : vector<1x16xf32>
    %187 = math.rsqrt %186 : vector<1x16xf32>
    %188 = vector.broadcast %187 : vector<1x16xf32> to vector<32x16xf32>
    %189 = arith.mulf %180, %188 : vector<32x16xf32>
    %c0_117 = arith.constant 0 : index
    %c0_118 = arith.constant 0 : index
    %190 = vector.load %arg24[%c0_117, %c0_118] : memref<32x1xf32, #tpu.memory_space<vmem>>, vector<32x1xf32>
    %191 = vector.broadcast %190 : vector<32x1xf32> to vector<32x16xf32>
    %192 = arith.mulf %189, %191 : vector<32x16xf32>
    %c0_119 = arith.constant 0 : index
    %c0_120 = arith.constant 0 : index
    %193 = vector.load %arg25[%c0_119, %c0_120] : memref<32x1xf32, #tpu.memory_space<vmem>>, vector<32x1xf32>
    %194 = vector.broadcast %193 : vector<32x1xf32> to vector<32x16xf32>
    %195 = arith.addf %192, %194 : vector<32x16xf32>
    %c0_121 = arith.constant 0 : index
    %c0_122 = arith.constant 0 : index
    %196 = vector.load %arg28[%c0_121, %c0_122] : memref<32x1xf32, #tpu.memory_space<vmem>>, vector<32x1xf32>
    %197 = vector.broadcast %196 : vector<32x1xf32> to vector<32x16xf32>
    %198 = arith.mulf %189, %197 : vector<32x16xf32>
    %c0_123 = arith.constant 0 : index
    %c0_124 = arith.constant 0 : index
    %199 = vector.load %arg29[%c0_123, %c0_124] : memref<32x1xf32, #tpu.memory_space<vmem>>, vector<32x1xf32>
    %200 = vector.broadcast %199 : vector<32x1xf32> to vector<32x16xf32>
    %201 = arith.addf %198, %200 : vector<32x16xf32>
    %c0_125 = arith.constant 0 : index
    %c2_126 = arith.constant 2 : index
    %202 = vector.load %arg39[%c0_125, %c2_126] : memref<32x20xf32, #tpu.memory_space<vmem>>, vector<32x16xf32>
    tpu.vector_store %arg39[%c0_125, %c2_126], %195 {strides = array<i32>} : memref<32x20xf32, #tpu.memory_space<vmem>>, vector<32x16xf32>,
    %cst_127 = arith.constant 0.000000e+00 : f32
    %203 = vector.broadcast %cst_127 : f32 to vector<32x16xf32>
    %c0_128 = arith.constant 0 : index
    %c0_129 = arith.constant 0 : index
    %c0_130 = arith.constant 0 : index
    %204 = vector.load %arg26[%c0_128, %c0_129, %c0_130] : memref<3x32x32xf32, #tpu.memory_space<vmem>>, vector<1x32x32xf32>
    %205 = vector.shape_cast %204 : vector<1x32x32xf32> to vector<32x32xf32>
    %c0_131 = arith.constant 0 : index
    %c0_132 = arith.constant 0 : index
    %206 = vector.load %arg39[%c0_131, %c0_132] : memref<32x20xf32, #tpu.memory_space<vmem>>, vector<32x16xf32>
    %cst_133 = arith.constant dense<0.000000e+00> : vector<32x16xf32>
    %207 = tpu.matmul %205, %206, %cst_133 {dimension_numbers = #tpu.dot_dimension_numbers<[1], [0], [0], [1], [0, 0, 1, 1], [], []>} : vector<32x32xf32>, vector<32x16xf32>, vector<32x16xf32> -> vector<32x16xf32>
    %208 = arith.addf %203, %207 : vector<32x16xf32>
    %c1_134 = arith.constant 1 : index
    %c0_135 = arith.constant 0 : index
    %c0_136 = arith.constant 0 : index
    %209 = vector.load %arg26[%c1_134, %c0_135, %c0_136] : memref<3x32x32xf32, #tpu.memory_space<vmem>>, vector<1x32x32xf32>
    %210 = vector.shape_cast %209 : vector<1x32x32xf32> to vector<32x32xf32>
    %c0_137 = arith.constant 0 : index
    %c2_138 = arith.constant 2 : index
    %211 = vector.load %arg39[%c0_137, %c2_138] : memref<32x20xf32, #tpu.memory_space<vmem>>, vector<32x16xf32>
    %cst_139 = arith.constant dense<0.000000e+00> : vector<32x16xf32>
    %212 = tpu.matmul %210, %211, %cst_139 {dimension_numbers = #tpu.dot_dimension_numbers<[1], [0], [0], [1], [0, 0, 1, 1], [], []>} : vector<32x32xf32>, vector<32x16xf32>, vector<32x16xf32> -> vector<32x16xf32>
    %213 = arith.addf %208, %212 : vector<32x16xf32>
    %c2_140 = arith.constant 2 : index
    %c0_141 = arith.constant 0 : index
    %c0_142 = arith.constant 0 : index
    %214 = vector.load %arg26[%c2_140, %c0_141, %c0_142] : memref<3x32x32xf32, #tpu.memory_space<vmem>>, vector<1x32x32xf32>
    %215 = vector.shape_cast %214 : vector<1x32x32xf32> to vector<32x32xf32>
    %c0_143 = arith.constant 0 : index
    %c4 = arith.constant 4 : index
    %216 = vector.load %arg39[%c0_143, %c4] : memref<32x20xf32, #tpu.memory_space<vmem>>, vector<32x16xf32>
    %cst_144 = arith.constant dense<0.000000e+00> : vector<32x16xf32>
    %217 = tpu.matmul %215, %216, %cst_144 {dimension_numbers = #tpu.dot_dimension_numbers<[1], [0], [0], [1], [0, 0, 1, 1], [], []>} : vector<32x32xf32>, vector<32x16xf32>, vector<32x16xf32> -> vector<32x16xf32>
    %218 = arith.addf %213, %217 : vector<32x16xf32>
    %c0_145 = arith.constant 0 : index
    %c0_146 = arith.constant 0 : index
    %219 = vector.load %arg27[%c0_145, %c0_146] : memref<32x1xf32, #tpu.memory_space<vmem>>, vector<32x1xf32>
    %220 = vector.broadcast %219 : vector<32x1xf32> to vector<32x16xf32>
    %221 = arith.addf %218, %220 : vector<32x16xf32>
    %222 = tpu.concatenate %201, %6 in 0 : vector<32x16xf32>, vector<8x16xf32> -> vector<40x16xf32>
    %c0_147 = arith.constant 0 : index
    %c0_148 = arith.constant 0 : index
    %223 = vector.load %arg30[%c0_147, %c0_148] : memref<96x40xf32, #tpu.memory_space<vmem>>, vector<96x40xf32>
    %cst_149 = arith.constant dense<0.000000e+00> : vector<96x16xf32>
    %224 = tpu.matmul %223, %222, %cst_149 {dimension_numbers = #tpu.dot_dimension_numbers<[1], [0], [0], [1], [0, 0, 1, 1], [], []>} : vector<96x40xf32>, vector<40x16xf32>, vector<96x16xf32> -> vector<96x16xf32>
    %c0_150 = arith.constant 0 : index
    %c0_151 = arith.constant 0 : index
    %225 = vector.load %arg31[%c0_150, %c0_151] : memref<96x1xf32, #tpu.memory_space<vmem>>, vector<96x1xf32>
    %226 = vector.broadcast %225 : vector<96x1xf32> to vector<96x16xf32>
    %227 = arith.addf %224, %226 : vector<96x16xf32>
    %228 = vector.extract_strided_slice %227 {offsets = [0, 0], sizes = [32, 16], strides = [1, 1]} : vector<96x16xf32> to vector<32x16xf32>
    %229 = vector.extract_strided_slice %227 {offsets = [32, 0], sizes = [32, 16], strides = [1, 1]} : vector<96x16xf32> to vector<32x16xf32>
    %230 = vector.extract_strided_slice %227 {offsets = [64, 0], sizes = [32, 16], strides = [1, 1]} : vector<96x16xf32> to vector<32x16xf32>
    %c0_152 = arith.constant 0 : index
    %c2_153 = arith.constant 2 : index
    %231 = vector.load %arg39[%c0_152, %c2_153] : memref<32x20xf32, #tpu.memory_space<vmem>>, vector<32x16xf32>
    tpu.vector_store %arg39[%c0_152, %c2_153], %229 {strides = array<i32>} : memref<32x20xf32, #tpu.memory_space<vmem>>, vector<32x16xf32>,
    %c0_154 = arith.constant 0 : index
    %c0_155 = arith.constant 0 : index
    %232 = vector.load %arg39[%c0_154, %c0_155] : memref<32x20xf32, #tpu.memory_space<vmem>>, vector<32x16xf32>
    %233 = arith.mulf %228, %232 : vector<32x16xf32>
    %cst_156 = arith.constant dense<0.000000e+00> : vector<1x16xf32>
    %234 = tpu.matmul %0, %233, %cst_156 {dimension_numbers = #tpu.dot_dimension_numbers<[1], [0], [0], [1], [0, 0, 1, 1], [], []>} : vector<1x32xf32>, vector<32x16xf32>, vector<1x16xf32> -> vector<1x16xf32>
    %cst_157 = arith.constant 0.176776692 : f32
    %235 = vector.broadcast %cst_157 : f32 to vector<1x16xf32>
    %236 = arith.mulf %234, %235 : vector<1x16xf32>
    %237 = vector.extract_strided_slice %175 {offsets = [0, 0], sizes = [1, 16], strides = [1, 1]} : vector<3x16xf32> to vector<1x16xf32>
    %238 = arith.addf %236, %237 : vector<1x16xf32>
    %c0_158 = arith.constant 0 : index
    %c2_159 = arith.constant 2 : index
    %239 = vector.load %arg39[%c0_158, %c2_159] : memref<32x20xf32, #tpu.memory_space<vmem>>, vector<32x16xf32>
    %240 = arith.mulf %228, %239 : vector<32x16xf32>
    %cst_160 = arith.constant dense<0.000000e+00> : vector<1x16xf32>
    %241 = tpu.matmul %0, %240, %cst_160 {dimension_numbers = #tpu.dot_dimension_numbers<[1], [0], [0], [1], [0, 0, 1, 1], [], []>} : vector<1x32xf32>, vector<32x16xf32>, vector<1x16xf32> -> vector<1x16xf32>
    %cst_161 = arith.constant 0.176776692 : f32
    %242 = vector.broadcast %cst_161 : f32 to vector<1x16xf32>
    %243 = arith.mulf %241, %242 : vector<1x16xf32>
    %244 = vector.extract_strided_slice %175 {offsets = [1, 0], sizes = [1, 16], strides = [1, 1]} : vector<3x16xf32> to vector<1x16xf32>
    %245 = arith.addf %243, %244 : vector<1x16xf32>
    %c0_162 = arith.constant 0 : index
    %c4_163 = arith.constant 4 : index
    %246 = vector.load %arg39[%c0_162, %c4_163] : memref<32x20xf32, #tpu.memory_space<vmem>>, vector<32x16xf32>
    %247 = arith.mulf %228, %246 : vector<32x16xf32>
    %cst_164 = arith.constant dense<0.000000e+00> : vector<1x16xf32>
    %248 = tpu.matmul %0, %247, %cst_164 {dimension_numbers = #tpu.dot_dimension_numbers<[1], [0], [0], [1], [0, 0, 1, 1], [], []>} : vector<1x32xf32>, vector<32x16xf32>, vector<1x16xf32> -> vector<1x16xf32>
    %cst_165 = arith.constant 0.176776692 : f32
    %249 = vector.broadcast %cst_165 : f32 to vector<1x16xf32>
    %250 = arith.mulf %248, %249 : vector<1x16xf32>
    %251 = vector.extract_strided_slice %175 {offsets = [2, 0], sizes = [1, 16], strides = [1, 1]} : vector<3x16xf32> to vector<1x16xf32>
    %252 = arith.addf %250, %251 : vector<1x16xf32>
    %253 = arith.maximumf %238, %245 : vector<1x16xf32>
    %254 = arith.maximumf %253, %252 : vector<1x16xf32>
    %255 = arith.subf %238, %254 : vector<1x16xf32>
    %256 = math.exp %255 : vector<1x16xf32>
    %257 = arith.subf %245, %254 : vector<1x16xf32>
    %258 = math.exp %257 : vector<1x16xf32>
    %259 = arith.subf %252, %254 : vector<1x16xf32>
    %260 = math.exp %259 : vector<1x16xf32>
    %261 = arith.addf %256, %258 : vector<1x16xf32>
    %262 = arith.addf %261, %260 : vector<1x16xf32>
    %263 = tpu.reciprocal %262 : vector<1x16xf32> -> vector<1x16xf32>
    %264 = arith.mulf %256, %263 : vector<1x16xf32>
    %265 = vector.extract_strided_slice %173 {offsets = [0, 0], sizes = [1, 16], strides = [1, 1]} : vector<3x16xf32> to vector<1x16xf32>
    %266 = arith.mulf %264, %265 : vector<1x16xf32>
    %267 = arith.mulf %258, %263 : vector<1x16xf32>
    %268 = vector.extract_strided_slice %173 {offsets = [1, 0], sizes = [1, 16], strides = [1, 1]} : vector<3x16xf32> to vector<1x16xf32>
    %269 = arith.mulf %267, %268 : vector<1x16xf32>
    %270 = arith.mulf %260, %263 : vector<1x16xf32>
    %271 = vector.extract_strided_slice %173 {offsets = [2, 0], sizes = [1, 16], strides = [1, 1]} : vector<3x16xf32> to vector<1x16xf32>
    %272 = arith.mulf %270, %271 : vector<1x16xf32>
    %c0_166 = arith.constant 0 : index
    %c2_167 = arith.constant 2 : index
    %273 = vector.load %arg39[%c0_166, %c2_167] : memref<32x20xf32, #tpu.memory_space<vmem>>, vector<32x16xf32>
    tpu.vector_store %arg39[%c0_166, %c2_167], %230 {strides = array<i32>} : memref<32x20xf32, #tpu.memory_space<vmem>>, vector<32x16xf32>,
    %cst_168 = arith.constant 0.000000e+00 : f32
    %274 = vector.broadcast %cst_168 : f32 to vector<32x16xf32>
    %c0_169 = arith.constant 0 : index
    %c0_170 = arith.constant 0 : index
    %275 = vector.load %arg39[%c0_169, %c0_170] : memref<32x20xf32, #tpu.memory_space<vmem>>, vector<32x16xf32>
    %276 = vector.broadcast %266 : vector<1x16xf32> to vector<32x16xf32>
    %277 = arith.mulf %276, %275 : vector<32x16xf32>
    %278 = arith.addf %274, %277 : vector<32x16xf32>
    %c0_171 = arith.constant 0 : index
    %c2_172 = arith.constant 2 : index
    %279 = vector.load %arg39[%c0_171, %c2_172] : memref<32x20xf32, #tpu.memory_space<vmem>>, vector<32x16xf32>
    %280 = vector.broadcast %269 : vector<1x16xf32> to vector<32x16xf32>
    %281 = arith.mulf %280, %279 : vector<32x16xf32>
    %282 = arith.addf %278, %281 : vector<32x16xf32>
    %c0_173 = arith.constant 0 : index
    %c4_174 = arith.constant 4 : index
    %283 = vector.load %arg39[%c0_173, %c4_174] : memref<32x20xf32, #tpu.memory_space<vmem>>, vector<32x16xf32>
    %284 = vector.broadcast %272 : vector<1x16xf32> to vector<32x16xf32>
    %285 = arith.mulf %284, %283 : vector<32x16xf32>
    %286 = arith.addf %282, %285 : vector<32x16xf32>
    %287 = arith.addf %221, %286 : vector<32x16xf32>
    %cst_175 = arith.constant dense<0.000000e+00> : vector<1x16xf32>
    %288 = tpu.matmul %0, %287, %cst_175 {dimension_numbers = #tpu.dot_dimension_numbers<[1], [0], [0], [1], [0, 0, 1, 1], [], []>} : vector<1x32xf32>, vector<32x16xf32>, vector<1x16xf32> -> vector<1x16xf32>
    %cst_176 = arith.constant 3.125000e-02 : f32
    %289 = vector.broadcast %cst_176 : f32 to vector<1x16xf32>
    %290 = arith.mulf %288, %289 : vector<1x16xf32>
    %291 = vector.broadcast %290 : vector<1x16xf32> to vector<32x16xf32>
    %292 = arith.subf %287, %291 : vector<32x16xf32>
    %293 = arith.mulf %292, %292 : vector<32x16xf32>
    %cst_177 = arith.constant dense<0.000000e+00> : vector<1x16xf32>
    %294 = tpu.matmul %0, %293, %cst_177 {dimension_numbers = #tpu.dot_dimension_numbers<[1], [0], [0], [1], [0, 0, 1, 1], [], []>} : vector<1x32xf32>, vector<32x16xf32>, vector<1x16xf32> -> vector<1x16xf32>
    %cst_178 = arith.constant 3.125000e-02 : f32
    %295 = vector.broadcast %cst_178 : f32 to vector<1x16xf32>
    %296 = arith.mulf %294, %295 : vector<1x16xf32>
    %cst_179 = arith.constant 9.99999974E-6 : f32
    %297 = vector.broadcast %cst_179 : f32 to vector<1x16xf32>
    %298 = arith.addf %296, %297 : vector<1x16xf32>
    %299 = math.rsqrt %298 : vector<1x16xf32>
    %300 = vector.broadcast %299 : vector<1x16xf32> to vector<32x16xf32>
    %301 = arith.mulf %292, %300 : vector<32x16xf32>
    %c0_180 = arith.constant 0 : index
    %c0_181 = arith.constant 0 : index
    %302 = vector.load %arg32[%c0_180, %c0_181] : memref<32x1xf32, #tpu.memory_space<vmem>>, vector<32x1xf32>
    %303 = vector.broadcast %302 : vector<32x1xf32> to vector<32x16xf32>
    %304 = arith.mulf %301, %303 : vector<32x16xf32>
    %c0_182 = arith.constant 0 : index
    %c0_183 = arith.constant 0 : index
    %305 = vector.load %arg33[%c0_182, %c0_183] : memref<32x1xf32, #tpu.memory_space<vmem>>, vector<32x1xf32>
    %306 = vector.broadcast %305 : vector<32x1xf32> to vector<32x16xf32>
    %307 = arith.addf %304, %306 : vector<32x16xf32>
    %c0_184 = arith.constant 0 : index
    %c0_185 = arith.constant 0 : index
    %308 = vector.load %arg34[%c0_184, %c0_185] : memref<32x32xf32, #tpu.memory_space<vmem>>, vector<32x32xf32>
    %cst_186 = arith.constant dense<0.000000e+00> : vector<32x16xf32>
    %309 = tpu.matmul %308, %307, %cst_186 {dimension_numbers = #tpu.dot_dimension_numbers<[1], [0], [0], [1], [0, 0, 1, 1], [], []>} : vector<32x32xf32>, vector<32x16xf32>, vector<32x16xf32> -> vector<32x16xf32>
    %c0_187 = arith.constant 0 : index
    %c0_188 = arith.constant 0 : index
    %310 = vector.load %arg35[%c0_187, %c0_188] : memref<32x1xf32, #tpu.memory_space<vmem>>, vector<32x1xf32>
    %311 = vector.broadcast %310 : vector<32x1xf32> to vector<32x16xf32>
    %312 = arith.addf %309, %311 : vector<32x16xf32>
    %cst_189 = arith.constant 5.000000e-01 : f32
    %313 = vector.broadcast %cst_189 : f32 to vector<32x16xf32>
    %314 = arith.mulf %313, %312 : vector<32x16xf32>
    %cst_190 = arith.constant 0.707106769 : f32
    %315 = vector.broadcast %cst_190 : f32 to vector<32x16xf32>
    %316 = arith.mulf %312, %315 : vector<32x16xf32>
    %317 = math.erf %316 : vector<32x16xf32>
    %cst_191 = arith.constant 1.000000e+00 : f32
    %318 = vector.broadcast %cst_191 : f32 to vector<32x16xf32>
    %319 = arith.addf %318, %317 : vector<32x16xf32>
    %320 = arith.mulf %314, %319 : vector<32x16xf32>
    %c0_192 = arith.constant 0 : index
    %c0_193 = arith.constant 0 : index
    %321 = vector.load %arg36[%c0_192, %c0_193] : memref<32x32xf32, #tpu.memory_space<vmem>>, vector<32x32xf32>
    %cst_194 = arith.constant dense<0.000000e+00> : vector<32x16xf32>
    %322 = tpu.matmul %321, %320, %cst_194 {dimension_numbers = #tpu.dot_dimension_numbers<[1], [0], [0], [1], [0, 0, 1, 1], [], []>} : vector<32x32xf32>, vector<32x16xf32>, vector<32x16xf32> -> vector<32x16xf32>
    %c0_195 = arith.constant 0 : index
    %c0_196 = arith.constant 0 : index
    %323 = vector.load %arg37[%c0_195, %c0_196] : memref<32x1xf32, #tpu.memory_space<vmem>>, vector<32x1xf32>
    %324 = vector.broadcast %323 : vector<32x1xf32> to vector<32x16xf32>
    %325 = arith.addf %322, %324 : vector<32x16xf32>
    %326 = arith.addf %171, %325 : vector<32x16xf32>
    %c0_197 = arith.constant 0 : index
    %c0_198 = arith.constant 0 : index
    %327 = vector.load %arg6[%c0_197, %c0_198] : memref<4x32xf32, #tpu.memory_space<vmem>>, vector<4x32xf32>
    %cst_199 = arith.constant dense<0.000000e+00> : vector<4x16xf32>
    %328 = tpu.matmul %327, %326, %cst_199 {dimension_numbers = #tpu.dot_dimension_numbers<[1], [0], [0], [1], [0, 0, 1, 1], [], []>} : vector<4x32xf32>, vector<32x16xf32>, vector<4x16xf32> -> vector<4x16xf32>
    %c0_200 = arith.constant 0 : index
    %c0_201 = arith.constant 0 : index
    %329 = vector.load %arg7[%c0_200, %c0_201] : memref<4x1xf32, #tpu.memory_space<vmem>>, vector<4x1xf32>
    %330 = vector.broadcast %329 : vector<4x1xf32> to vector<4x16xf32>
    %331 = arith.addf %328, %330 : vector<4x16xf32>
    %c0_202 = arith.constant 0 : index
    %c0_203 = arith.constant 0 : index
    %c0_204 = arith.constant 0 : index
    %332 = vector.load %arg38[%c0_202, %c0_203, %c0_204] : memref<1x4x16xf32, #tpu.memory_space<vmem>>, vector<1x4x16xf32>
    %333 = vector.shape_cast %332 : vector<1x4x16xf32> to vector<4x16xf32>
    %334 = vector.shape_cast %331 : vector<4x16xf32> to vector<1x4x16xf32>
    tpu.vector_store %arg38[%c0_202, %c0_203, %c0_204], %334 {strides = array<i32>} : memref<1x4x16xf32, #tpu.memory_space<vmem>>, vector<1x4x16xf32>,
    return
  }
  func.func @transform_0(%arg0: i32) -> (i32, i32, i32) {
    %c0_i32 = arith.constant 0 : i32
    %c0_i32_0 = arith.constant 0 : i32
    %c0_i32_1 = arith.constant 0 : i32
    return %arg0, %c0_i32, %c0_i32_0 : i32, i32, i32
  }
  func.func @transform_1(%arg0: i32) -> (i32, i32, i32) {
    %c0_i32 = arith.constant 0 : i32
    %c0_i32_0 = arith.constant 0 : i32
    %c0_i32_1 = arith.constant 0 : i32
    return %arg0, %c0_i32, %c0_i32_0 : i32, i32, i32
  }
  func.func @transform_2(%arg0: i32) -> (i32, i32, i32) {
    %c0_i32 = arith.constant 0 : i32
    %c0_i32_0 = arith.constant 0 : i32
    %c0_i32_1 = arith.constant 0 : i32
    return %arg0, %c0_i32, %c0_i32_0 : i32, i32, i32
  }
  func.func @transform_3(%arg0: i32) -> (i32, i32) {
    %c0_i32 = arith.constant 0 : i32
    %c0_i32_0 = arith.constant 0 : i32
    %c0_i32_1 = arith.constant 0 : i32
    return %c0_i32, %c0_i32_0 : i32, i32
  }
  func.func @transform_4(%arg0: i32) -> (i32, i32) {
    %c0_i32 = arith.constant 0 : i32
    %c0_i32_0 = arith.constant 0 : i32
    %c0_i32_1 = arith.constant 0 : i32
    return %c0_i32, %c0_i32_0 : i32, i32
  }
  func.func @transform_5(%arg0: i32) -> (i32, i32) {
    %c0_i32 = arith.constant 0 : i32
    %c0_i32_0 = arith.constant 0 : i32
    %c0_i32_1 = arith.constant 0 : i32
    return %c0_i32, %c0_i32_0 : i32, i32
  }
  func.func @transform_6(%arg0: i32) -> (i32, i32) {
    %c0_i32 = arith.constant 0 : i32
    %c0_i32_0 = arith.constant 0 : i32
    %c0_i32_1 = arith.constant 0 : i32
    return %c0_i32, %c0_i32_0 : i32, i32
  }
  func.func @transform_7(%arg0: i32) -> (i32, i32, i32) {
    %c0_i32 = arith.constant 0 : i32
    %c0_i32_0 = arith.constant 0 : i32
    %c0_i32_1 = arith.constant 0 : i32
    %c0_i32_2 = arith.constant 0 : i32
    return %c0_i32, %c0_i32_0, %c0_i32_1 : i32, i32, i32
  }
  func.func @transform_8(%arg0: i32) -> (i32, i32, i32) {
    %c0_i32 = arith.constant 0 : i32
    %c0_i32_0 = arith.constant 0 : i32
    %c0_i32_1 = arith.constant 0 : i32
    %c0_i32_2 = arith.constant 0 : i32
    return %c0_i32, %c0_i32_0, %c0_i32_1 : i32, i32, i32
  }
  func.func @transform_9(%arg0: i32) -> (i32, i32) {
    %c0_i32 = arith.constant 0 : i32
    %c0_i32_0 = arith.constant 0 : i32
    %c0_i32_1 = arith.constant 0 : i32
    return %c0_i32, %c0_i32_0 : i32, i32
  }
  func.func @transform_10(%arg0: i32) -> (i32, i32) {
    %c0_i32 = arith.constant 0 : i32
    %c0_i32_0 = arith.constant 0 : i32
    %c0_i32_1 = arith.constant 0 : i32
    return %c0_i32, %c0_i32_0 : i32, i32
  }
  func.func @transform_11(%arg0: i32) -> (i32, i32, i32) {
    %c0_i32 = arith.constant 0 : i32
    %c0_i32_0 = arith.constant 0 : i32
    %c0_i32_1 = arith.constant 0 : i32
    %c0_i32_2 = arith.constant 0 : i32
    return %c0_i32, %c0_i32_0, %c0_i32_1 : i32, i32, i32
  }
  func.func @transform_12(%arg0: i32) -> (i32, i32) {
    %c0_i32 = arith.constant 0 : i32
    %c0_i32_0 = arith.constant 0 : i32
    %c0_i32_1 = arith.constant 0 : i32
    return %c0_i32, %c0_i32_0 : i32, i32
  }
  func.func @transform_13(%arg0: i32) -> (i32, i32) {
    %c0_i32 = arith.constant 0 : i32
    %c0_i32_0 = arith.constant 0 : i32
    %c0_i32_1 = arith.constant 0 : i32
    return %c0_i32, %c0_i32_0 : i32, i32
  }
  func.func @transform_14(%arg0: i32) -> (i32, i32) {
    %c0_i32 = arith.constant 0 : i32
    %c0_i32_0 = arith.constant 0 : i32
    %c0_i32_1 = arith.constant 0 : i32
    return %c0_i32, %c0_i32_0 : i32, i32
  }
  func.func @transform_15(%arg0: i32) -> (i32, i32) {
    %c0_i32 = arith.constant 0 : i32
    %c0_i32_0 = arith.constant 0 : i32
    %c0_i32_1 = arith.constant 0 : i32
    return %c0_i32, %c0_i32_0 : i32, i32
  }
  func.func @transform_16(%arg0: i32) -> (i32, i32) {
    %c0_i32 = arith.constant 0 : i32
    %c0_i32_0 = arith.constant 0 : i32
    %c0_i32_1 = arith.constant 0 : i32
    return %c0_i32, %c0_i32_0 : i32, i32
  }
  func.func @transform_17(%arg0: i32) -> (i32, i32) {
    %c0_i32 = arith.constant 0 : i32
    %c0_i32_0 = arith.constant 0 : i32
    %c0_i32_1 = arith.constant 0 : i32
    return %c0_i32, %c0_i32_0 : i32, i32
  }
  func.func @transform_18(%arg0: i32) -> (i32, i32) {
    %c0_i32 = arith.constant 0 : i32
    %c0_i32_0 = arith.constant 0 : i32
    %c0_i32_1 = arith.constant 0 : i32
    return %c0_i32, %c0_i32_0 : i32, i32
  }
  func.func @transform_19(%arg0: i32) -> (i32, i32) {
    %c0_i32 = arith.constant 0 : i32
    %c0_i32_0 = arith.constant 0 : i32
    %c0_i32_1 = arith.constant 0 : i32
    return %c0_i32, %c0_i32_0 : i32, i32
  }
  func.func @transform_20(%arg0: i32) -> (i32, i32) {
    %c0_i32 = arith.constant 0 : i32
    %c0_i32_0 = arith.constant 0 : i32
    %c0_i32_1 = arith.constant 0 : i32
    return %c0_i32, %c0_i32_0 : i32, i32
  }
  func.func @transform_21(%arg0: i32) -> (i32, i32) {
    %c0_i32 = arith.constant 0 : i32
    %c0_i32_0 = arith.constant 0 : i32
    %c0_i32_1 = arith.constant 0 : i32
    return %c0_i32, %c0_i32_0 : i32, i32
  }
  func.func @transform_22(%arg0: i32) -> (i32, i32) {
    %c0_i32 = arith.constant 0 : i32
    %c0_i32_0 = arith.constant 0 : i32
    %c0_i32_1 = arith.constant 0 : i32
    return %c0_i32, %c0_i32_0 : i32, i32
  }
  func.func @transform_23(%arg0: i32) -> (i32, i32) {
    %c0_i32 = arith.constant 0 : i32
    %c0_i32_0 = arith.constant 0 : i32
    %c0_i32_1 = arith.constant 0 : i32
    return %c0_i32, %c0_i32_0 : i32, i32
  }
  func.func @transform_24(%arg0: i32) -> (i32, i32) {
    %c0_i32 = arith.constant 0 : i32
    %c0_i32_0 = arith.constant 0 : i32
    %c0_i32_1 = arith.constant 0 : i32
    return %c0_i32, %c0_i32_0 : i32, i32
  }
  func.func @transform_25(%arg0: i32) -> (i32, i32, i32) {
    %c0_i32 = arith.constant 0 : i32
    %c0_i32_0 = arith.constant 0 : i32
    %c0_i32_1 = arith.constant 0 : i32
    %c0_i32_2 = arith.constant 0 : i32
    return %c0_i32, %c0_i32_0, %c0_i32_1 : i32, i32, i32
  }
  func.func @transform_26(%arg0: i32) -> (i32, i32) {
    %c0_i32 = arith.constant 0 : i32
    %c0_i32_0 = arith.constant 0 : i32
    %c0_i32_1 = arith.constant 0 : i32
    return %c0_i32, %c0_i32_0 : i32, i32
  }
  func.func @transform_27(%arg0: i32) -> (i32, i32) {
    %c0_i32 = arith.constant 0 : i32
    %c0_i32_0 = arith.constant 0 : i32
    %c0_i32_1 = arith.constant 0 : i32
    return %c0_i32, %c0_i32_0 : i32, i32
  }
  func.func @transform_28(%arg0: i32) -> (i32, i32) {
    %c0_i32 = arith.constant 0 : i32
    %c0_i32_0 = arith.constant 0 : i32
    %c0_i32_1 = arith.constant 0 : i32
    return %c0_i32, %c0_i32_0 : i32, i32
  }
  func.func @transform_29(%arg0: i32) -> (i32, i32) {
    %c0_i32 = arith.constant 0 : i32
    %c0_i32_0 = arith.constant 0 : i32
    %c0_i32_1 = arith.constant 0 : i32
    return %c0_i32, %c0_i32_0 : i32, i32
  }
  func.func @transform_30(%arg0: i32) -> (i32, i32) {
    %c0_i32 = arith.constant 0 : i32
    %c0_i32_0 = arith.constant 0 : i32
    %c0_i32_1 = arith.constant 0 : i32
    return %c0_i32, %c0_i32_0 : i32, i32
  }
  func.func @transform_31(%arg0: i32) -> (i32, i32) {
    %c0_i32 = arith.constant 0 : i32
    %c0_i32_0 = arith.constant 0 : i32
    %c0_i32_1 = arith.constant 0 : i32
    return %c0_i32, %c0_i32_0 : i32, i32
  }
  func.func @transform_32(%arg0: i32) -> (i32, i32) {
    %c0_i32 = arith.constant 0 : i32
    %c0_i32_0 = arith.constant 0 : i32
    %c0_i32_1 = arith.constant 0 : i32
    return %c0_i32, %c0_i32_0 : i32, i32
  }
  func.func @transform_33(%arg0: i32) -> (i32, i32) {
    %c0_i32 = arith.constant 0 : i32
    %c0_i32_0 = arith.constant 0 : i32
    %c0_i32_1 = arith.constant 0 : i32
    return %c0_i32, %c0_i32_0 : i32, i32
  }
  func.func @transform_34(%arg0: i32) -> (i32, i32) {
    %c0_i32 = arith.constant 0 : i32
    %c0_i32_0 = arith.constant 0 : i32
    %c0_i32_1 = arith.constant 0 : i32
    return %c0_i32, %c0_i32_0 : i32, i32
  }
  func.func @transform_35(%arg0: i32) -> (i32, i32) {
    %c0_i32 = arith.constant 0 : i32
    %c0_i32_0 = arith.constant 0 : i32
    %c0_i32_1 = arith.constant 0 : i32
    return %c0_i32, %c0_i32_0 : i32, i32
  }
  func.func @transform_36(%arg0: i32) -> (i32, i32) {
    %c0_i32 = arith.constant 0 : i32
    %c0_i32_0 = arith.constant 0 : i32
    %c0_i32_1 = arith.constant 0 : i32
    return %c0_i32, %c0_i32_0 : i32, i32
  }
  func.func @transform_37(%arg0: i32) -> (i32, i32, i32) {
    %c0_i32 = arith.constant 0 : i32
    %c0_i32_0 = arith.constant 0 : i32
    %c0_i32_1 = arith.constant 0 : i32
    return %arg0, %c0_i32, %c0_i32_0 : i32, i32, i32
  }
}

</mosaic_0001>

<llo_original>
// kernel: tpu_custom_call.1
$region0: #{tpu_custom_call.1}
  #allocation0 [shape = 'u32[]', space=smem, size = 0x4, offset = 0x4, fixed_abs, tag = 'smem constant byte address 0x4 - core index']
  #allocation1 [shape = 'u32[72,128]{1,0:T(1,128)}', space=vmem, size = 0x9000, scoped, tag = 'internal scratch']
  #allocation2 [shape = 'f32[32,20]{1,0:T(8,128)}', space=vmem, size = 0x4000, scoped, tag = 'scratch operand']
  %s0 = inlined_call_operand.smem [shape: u32[38], index: -1, kind: input, shape index: {}]
  %s1 = sld [smem:[%s0]]
  %s2 = scalar_lea.smem %s0, 1
  %s3 = sld [smem:[%s2]]
  %s4 = scalar_lea.smem %s0, 2
  %s5 = sld [smem:[%s4]]
  %s6 = scalar_lea.smem %s0, 3
  %s7 = sld [smem:[%s6]]
  %s8 = scalar_lea.smem %s0, 4
  %s9 = sld [smem:[%s8]]
  %s10 = scalar_lea.smem %s0, 5
  %s11 = sld [smem:[%s10]]
  %s12 = scalar_lea.smem %s0, 6
  %s13 = sld [smem:[%s12]]
  %s14 = scalar_lea.smem %s0, 7
  %s15 = sld [smem:[%s14]]
  %s16 = scalar_lea.smem %s0, 8
  %s17 = sld [smem:[%s16]]
  %s18 = scalar_lea.smem %s0, 9
  %s19 = sld [smem:[%s18]]
  %s20 = scalar_lea.smem %s0, 10
  %s21 = sld [smem:[%s20]]
  %s22 = scalar_lea.smem %s0, 11
  %s23 = sld [smem:[%s22]]
  %s24 = scalar_lea.smem %s0, 12
  %s25 = sld [smem:[%s24]]
  %s26 = scalar_lea.smem %s0, 13
  %s27 = sld [smem:[%s26]]
  %s28 = scalar_lea.smem %s0, 14
  %s29 = sld [smem:[%s28]]
  %s30 = scalar_lea.smem %s0, 15
  %s31 = sld [smem:[%s30]]
  %s32 = scalar_lea.smem %s0, 16
  %s33 = sld [smem:[%s32]]
  %s34 = scalar_lea.smem %s0, 17
  %s35 = sld [smem:[%s34]]
  %s36 = scalar_lea.smem %s0, 18
  %s37 = sld [smem:[%s36]]
  %s38 = scalar_lea.smem %s0, 19
  %s39 = sld [smem:[%s38]]
  %s40 = scalar_lea.smem %s0, 20
  %s41 = sld [smem:[%s40]]
  %s42 = scalar_lea.smem %s0, 21
  %s43 = sld [smem:[%s42]]
  %s44 = scalar_lea.smem %s0, 22
  %s45 = sld [smem:[%s44]]
  %s46 = scalar_lea.smem %s0, 23
  %s47 = sld [smem:[%s46]]
  %s48 = scalar_lea.smem %s0, 24
  %s49 = sld [smem:[%s48]]
  %s50 = scalar_lea.smem %s0, 25
  %s51 = sld [smem:[%s50]]
  %s52 = scalar_lea.smem %s0, 26
  %s53 = sld [smem:[%s52]]
  %s54 = scalar_lea.smem %s0, 27
  %s55 = sld [smem:[%s54]]
  %s56 = scalar_lea.smem %s0, 28
  %s57 = sld [smem:[%s56]]
  %s58 = scalar_lea.smem %s0, 29
  %s59 = sld [smem:[%s58]]
  %s60 = scalar_lea.smem %s0, 30
  %s61 = sld [smem:[%s60]]
  %s62 = scalar_lea.smem %s0, 31
  %s63 = sld [smem:[%s62]]
  %s64 = scalar_lea.smem %s0, 32
  %s65 = sld [smem:[%s64]]
  %s66 = scalar_lea.smem %s0, 33
  %s67 = sld [smem:[%s66]]
  %s68 = scalar_lea.smem %s0, 34
  %s69 = sld [smem:[%s68]]
  %s70 = scalar_lea.smem %s0, 35
  %s71 = sld [smem:[%s70]]
  %s72 = scalar_lea.smem %s0, 36
  %s73 = sld [smem:[%s72]]
  %s74 = scalar_lea.smem %s0, 37
  %s75 = sld [smem:[%s74]]
  %s76 = sld [smem:[#allocation0]]
  $region181: #{tpu_custom_call.1} parent=0
    _
  %s78 = ssub.s32 1, %s76
  %s79 = scalar_select 0, %s78, %s76
  $region1: #{tpu_custom_call.1} parent=0
    #allocation3 [shape = 'u8[4096]{0}', space=vmem, size = 0x1000, scoped, tag = 'output window, operand 0']
    #allocation4 [shape = 's32[2]{0}', space=sflag, size = 0x8, scoped, tag = 'scoped memory for tpu_custom_call.1']
    %80 = vsyncpa [#allocation4], 0
    %s81 = scalar_lea.sflag [#allocation4], 1
    %82 = vsyncpa %s81, 0
    loop: start=0, step=1, limit=4
    $region2: #{tpu_custom_call.1} parent=1 // loop_pre_header
      _
    $region3: #{tpu_custom_call.1} parent=1 // loop_header
      %s84 = sphi 0, %s88
      %p85 = scmp.ge.s32.totalorder %s84, 4
      %s94 = sphi 0, %s96
      %s97 = sphi 0, %s94
      %s98 = sphi 0, %s97
      %s114 = sphi 0, %s98
      %s120 = sphi 0, %s122
      %s123 = sphi 0, %s120
      %s124 = sphi 0, %s123
      %s140 = sphi 0, %s124
      %s146 = sphi 0, %s148
      %s149 = sphi 0, %s146
      %s150 = sphi 0, %s149
      %s166 = sphi 0, %s150
      %s170 = sphi 0, %s170
      %s172 = sphi 0, %s170
      %s173 = sphi 0, %s172
      %s187 = sphi 0, %s173
      %s191 = sphi 0, %s191
      %s193 = sphi 0, %s191
      %s194 = sphi 0, %s193
      %s208 = sphi 0, %s194
      %s212 = sphi 0, %s212
      %s214 = sphi 0, %s212
      %s215 = sphi 0, %s214
      %s229 = sphi 0, %s215
      %s233 = sphi 0, %s233
      %s235 = sphi 0, %s233
      %s236 = sphi 0, %s235
      %s250 = sphi 0, %s236
      %s254 = sphi 0, %s254
      %s256 = sphi 0, %s254
      %s257 = sphi 0, %s256
      %s271 = sphi 0, %s257
      %s275 = sphi 0, %s275
      %s277 = sphi 0, %s275
      %s278 = sphi 0, %s277
      %s292 = sphi 0, %s278
      %s296 = sphi 0, %s296
      %s298 = sphi 0, %s296
      %s299 = sphi 0, %s298
      %s313 = sphi 0, %s299
      %s317 = sphi 0, %s317
      %s319 = sphi 0, %s317
      %s320 = sphi 0, %s319
      %s334 = sphi 0, %s320
      %s338 = sphi 0, %s338
      %s340 = sphi 0, %s338
      %s341 = sphi 0, %s340
      %s355 = sphi 0, %s341
      %s359 = sphi 0, %s359
      %s361 = sphi 0, %s359
      %s362 = sphi 0, %s361
      %s376 = sphi 0, %s362
      %s380 = sphi 0, %s380
      %s382 = sphi 0, %s380
      %s383 = sphi 0, %s382
      %s397 = sphi 0, %s383
      %s401 = sphi 0, %s401
      %s403 = sphi 0, %s401
      %s404 = sphi 0, %s403
      %s418 = sphi 0, %s404
      %s422 = sphi 0, %s422
      %s424 = sphi 0, %s422
      %s425 = sphi 0, %s424
      %s439 = sphi 0, %s425
      %s443 = sphi 0, %s443
      %s445 = sphi 0, %s443
      %s446 = sphi 0, %s445
      %s460 = sphi 0, %s446
      %s464 = sphi 0, %s464
      %s466 = sphi 0, %s464
      %s467 = sphi 0, %s466
      %s481 = sphi 0, %s467
      %s485 = sphi 0, %s485
      %s487 = sphi 0, %s485
      %s488 = sphi 0, %s487
      %s502 = sphi 0, %s488
      %s506 = sphi 0, %s506
      %s508 = sphi 0, %s506
      %s509 = sphi 0, %s508
      %s523 = sphi 0, %s509
      %s527 = sphi 0, %s527
      %s529 = sphi 0, %s527
      %s530 = sphi 0, %s529
      %s544 = sphi 0, %s530
      %s548 = sphi 0, %s548
      %s550 = sphi 0, %s548
      %s551 = sphi 0, %s550
      %s565 = sphi 0, %s551
      %s569 = sphi 0, %s569
      %s571 = sphi 0, %s569
      %s572 = sphi 0, %s571
      %s586 = sphi 0, %s572
      %s590 = sphi 0, %s590
      %s592 = sphi 0, %s590
      %s593 = sphi 0, %s592
      %s607 = sphi 0, %s593
      %s611 = sphi 0, %s611
      %s613 = sphi 0, %s611
      %s614 = sphi 0, %s613
      %s628 = sphi 0, %s614
      %s632 = sphi 0, %s632
      %s634 = sphi 0, %s632
      %s635 = sphi 0, %s634
      %s649 = sphi 0, %s635
      %s653 = sphi 0, %s653
      %s655 = sphi 0, %s653
      %s656 = sphi 0, %s655
      %s670 = sphi 0, %s656
      %s674 = sphi 0, %s674
      %s676 = sphi 0, %s674
      %s677 = sphi 0, %s676
      %s691 = sphi 0, %s677
      %s695 = sphi 0, %s695
      %s697 = sphi 0, %s695
      %s698 = sphi 0, %s697
      %s712 = sphi 0, %s698
      %s716 = sphi 0, %s716
      %s718 = sphi 0, %s716
      %s719 = sphi 0, %s718
      %s733 = sphi 0, %s719
      %s737 = sphi 0, %s737
      %s739 = sphi 0, %s737
      %s740 = sphi 0, %s739
      %s754 = sphi 0, %s740
      %s758 = sphi 0, %s758
      %s760 = sphi 0, %s758
      %s761 = sphi 0, %s760
      %s775 = sphi 0, %s761
      %s779 = sphi 0, %s779
      %s781 = sphi 0, %s779
      %s782 = sphi 0, %s781
      %s796 = sphi 0, %s782
      %s800 = sphi 0, %s800
      %s802 = sphi 0, %s800
      %s803 = sphi 0, %s802
      %s817 = sphi 0, %s803
      %s821 = sphi 0, %s821
      %s823 = sphi 0, %s821
      %s824 = sphi 0, %s823
      %s838 = sphi 0, %s824
      %s842 = sphi 0, %s842
      %s844 = sphi 0, %s842
      %s845 = sphi 0, %s844
      %s859 = sphi 0, %s845
      %s863 = sphi 0, %s863
      %s865 = sphi 0, %s863
      %s866 = sphi 0, %s865
      %s880 = sphi 0, %s866
      %s886 = sphi 0, %s888
      %s889 = sphi 0, %s886
      %s890 = sphi 0, %s889
      %s906 = sphi 0, %s890
    $region4: #{tpu_custom_call.1} parent=1 // loop_header_branch
      %87 = sbr.rel (%p85) target = $region8
    $region5: #{tpu_custom_call.1} parent=1 // loop_body
      %s89 = ssub.s32 %s84, 1
      %s90 = ssub.s32 %s84, 2
      %s91 = sadd.s32 %s84, 1
      %s92 = ssub.s32 %s84, %s91
      %p93 = scmp.eq.s32.totalorder %s92, 0
      %s95 = sadd.s32 %s94, 1
      %s96 = scalar_select %p93, %s94, %s95
      %p99 = pneg %p93
      %p100 = scmp.eq.s32.totalorder %s84, 1
      %p101 = por %p99, %p100
      %p102 = scmp.ne.s32.totalorder %s94, %s97
      %p103 = scmp.eq.s32.totalorder %s84, 0
      %p104 = por %p102, %p103
      %p105 = scmp.ne.s32.totalorder %s94, %s97
      %p106 = scmp.eq.s32.totalorder %s89, 1
      %p107 = por %p105, %p106
      %p108 = scmp.ne.s32.totalorder %s97, %s98
      %p109 = scmp.eq.s32.totalorder %s89, 0
      %p110 = por %p108, %p109
      %p111 = scmp.ne.s32.totalorder %s97, %s98
      %p112 = scmp.eq.s32.totalorder %s90, 1
      %p113 = por %p111, %p112
      %p115 = scmp.ne.s32.totalorder %s98, %s114
      %p116 = scmp.eq.s32.totalorder %s90, 0
      %p117 = por %p115, %p116
      %s118 = ssub.s32 %s84, %s91
      %p119 = scmp.eq.s32.totalorder %s118, 0
      %s121 = sadd.s32 %s120, 1
      %s122 = scalar_select %p119, %s120, %s121
      %p125 = pneg %p119
      %p126 = scmp.eq.s32.totalorder %s84, 1
      %p127 = por %p125, %p126
      %p128 = scmp.ne.s32.totalorder %s120, %s123
      %p129 = scmp.eq.s32.totalorder %s84, 0
      %p130 = por %p128, %p129
      %p131 = scmp.ne.s32.totalorder %s120, %s123
      %p132 = scmp.eq.s32.totalorder %s89, 1
      %p133 = por %p131, %p132
      %p134 = scmp.ne.s32.totalorder %s123, %s124
      %p135 = scmp.eq.s32.totalorder %s89, 0
      %p136 = por %p134, %p135
      %p137 = scmp.ne.s32.totalorder %s123, %s124
      %p138 = scmp.eq.s32.totalorder %s90, 1
      %p139 = por %p137, %p138
      %p141 = scmp.ne.s32.totalorder %s124, %s140
      %p142 = scmp.eq.s32.totalorder %s90, 0
      %p143 = por %p141, %p142
      %s144 = ssub.s32 %s84, %s91
      %p145 = scmp.eq.s32.totalorder %s144, 0
      %s147 = sadd.s32 %s146, 1
      %s148 = scalar_select %p145, %s146, %s147
      %p151 = pneg %p145
      %p152 = scmp.eq.s32.totalorder %s84, 1
      %p153 = por %p151, %p152
      %p154 = scmp.ne.s32.totalorder %s146, %s149
      %p155 = scmp.eq.s32.totalorder %s84, 0
      %p156 = por %p154, %p155
      %p157 = scmp.ne.s32.totalorder %s146, %s149
      %p158 = scmp.eq.s32.totalorder %s89, 1
      %p159 = por %p157, %p158
      %p160 = scmp.ne.s32.totalorder %s149, %s150
      %p161 = scmp.eq.s32.totalorder %s89, 0
      %p162 = por %p160, %p161
      %p163 = scmp.ne.s32.totalorder %s149, %s150
      %p164 = scmp.eq.s32.totalorder %s90, 1
      %p165 = por %p163, %p164
      %p167 = scmp.ne.s32.totalorder %s150, %s166
      %p168 = scmp.eq.s32.totalorder %s90, 0
      %p169 = por %p167, %p168
      %s171 = sadd.s32 %s170, 1
      %p174 = scmp.eq.s32.totalorder %s84, 1
      %p175 = scmp.ne.s32.totalorder %s170, %s172
      %p176 = scmp.eq.s32.totalorder %s84, 0
      %p177 = por %p175, %p176
      %p178 = scmp.ne.s32.totalorder %s170, %s172
      %p179 = scmp.eq.s32.totalorder %s89, 1
      %p180 = por %p178, %p179
      %p181 = scmp.ne.s32.totalorder %s172, %s173
      %p182 = scmp.eq.s32.totalorder %s89, 0
      %p183 = por %p181, %p182
      %p184 = scmp.ne.s32.totalorder %s172, %s173
      %p185 = scmp.eq.s32.totalorder %s90, 1
      %p186 = por %p184, %p185
      %p188 = scmp.ne.s32.totalorder %s173, %s187
      %p189 = scmp.eq.s32.totalorder %s90, 0
      %p190 = por %p188, %p189
      %s192 = sadd.s32 %s191, 1
      %p195 = scmp.eq.s32.totalorder %s84, 1
      %p196 = scmp.ne.s32.totalorder %s191, %s193
      %p197 = scmp.eq.s32.totalorder %s84, 0
      %p198 = por %p196, %p197
      %p199 = scmp.ne.s32.totalorder %s191, %s193
      %p200 = scmp.eq.s32.totalorder %s89, 1
      %p201 = por %p199, %p200
      %p202 = scmp.ne.s32.totalorder %s193, %s194
      %p203 = scmp.eq.s32.totalorder %s89, 0
      %p204 = por %p202, %p203
      %p205 = scmp.ne.s32.totalorder %s193, %s194
      %p206 = scmp.eq.s32.totalorder %s90, 1
      %p207 = por %p205, %p206
      %p209 = scmp.ne.s32.totalorder %s194, %s208
      %p210 = scmp.eq.s32.totalorder %s90, 0
      %p211 = por %p209, %p210
      %s213 = sadd.s32 %s212, 1
      %p216 = scmp.eq.s32.totalorder %s84, 1
      %p217 = scmp.ne.s32.totalorder %s212, %s214
      %p218 = scmp.eq.s32.totalorder %s84, 0
      %p219 = por %p217, %p218
      %p220 = scmp.ne.s32.totalorder %s212, %s214
      %p221 = scmp.eq.s32.totalorder %s89, 1
      %p222 = por %p220, %p221
      %p223 = scmp.ne.s32.totalorder %s214, %s215
      %p224 = scmp.eq.s32.totalorder %s89, 0
      %p225 = por %p223, %p224
      %p226 = scmp.ne.s32.totalorder %s214, %s215
      %p227 = scmp.eq.s32.totalorder %s90, 1
      %p228 = por %p226, %p227
      %p230 = scmp.ne.s32.totalorder %s215, %s229
      %p231 = scmp.eq.s32.totalorder %s90, 0
      %p232 = por %p230, %p231
      %s234 = sadd.s32 %s233, 1
      %p237 = scmp.eq.s32.totalorder %s84, 1
      %p238 = scmp.ne.s32.totalorder %s233, %s235
      %p239 = scmp.eq.s32.totalorder %s84, 0
      %p240 = por %p238, %p239
      %p241 = scmp.ne.s32.totalorder %s233, %s235
      %p242 = scmp.eq.s32.totalorder %s89, 1
      %p243 = por %p241, %p242
      %p244 = scmp.ne.s32.totalorder %s235, %s236
      %p245 = scmp.eq.s32.totalorder %s89, 0
      %p246 = por %p244, %p245
      %p247 = scmp.ne.s32.totalorder %s235, %s236
      %p248 = scmp.eq.s32.totalorder %s90, 1
      %p249 = por %p247, %p248
      %p251 = scmp.ne.s32.totalorder %s236, %s250
      %p252 = scmp.eq.s32.totalorder %s90, 0
      %p253 = por %p251, %p252
      %s255 = sadd.s32 %s254, 1
      %p258 = scmp.eq.s32.totalorder %s84, 1
      %p259 = scmp.ne.s32.totalorder %s254, %s256
      %p260 = scmp.eq.s32.totalorder %s84, 0
      %p261 = por %p259, %p260
      %p262 = scmp.ne.s32.totalorder %s254, %s256
      %p263 = scmp.eq.s32.totalorder %s89, 1
      %p264 = por %p262, %p263
      %p265 = scmp.ne.s32.totalorder %s256, %s257
      %p266 = scmp.eq.s32.totalorder %s89, 0
      %p267 = por %p265, %p266
      %p268 = scmp.ne.s32.totalorder %s256, %s257
      %p269 = scmp.eq.s32.totalorder %s90, 1
      %p270 = por %p268, %p269
      %p272 = scmp.ne.s32.totalorder %s257, %s271
      %p273 = scmp.eq.s32.totalorder %s90, 0
      %p274 = por %p272, %p273
      %s276 = sadd.s32 %s275, 1
      %p279 = scmp.eq.s32.totalorder %s84, 1
      %p280 = scmp.ne.s32.totalorder %s275, %s277
      %p281 = scmp.eq.s32.totalorder %s84, 0
      %p282 = por %p280, %p281
      %p283 = scmp.ne.s32.totalorder %s275, %s277
      %p284 = scmp.eq.s32.totalorder %s89, 1
      %p285 = por %p283, %p284
      %p286 = scmp.ne.s32.totalorder %s277, %s278
      %p287 = scmp.eq.s32.totalorder %s89, 0
      %p288 = por %p286, %p287
      %p289 = scmp.ne.s32.totalorder %s277, %s278
      %p290 = scmp.eq.s32.totalorder %s90, 1
      %p291 = por %p289, %p290
      %p293 = scmp.ne.s32.totalorder %s278, %s292
      %p294 = scmp.eq.s32.totalorder %s90, 0
      %p295 = por %p293, %p294
      %s297 = sadd.s32 %s296, 1
      %p300 = scmp.eq.s32.totalorder %s84, 1
      %p301 = scmp.ne.s32.totalorder %s296, %s298
      %p302 = scmp.eq.s32.totalorder %s84, 0
      %p303 = por %p301, %p302
      %p304 = scmp.ne.s32.totalorder %s296, %s298
      %p305 = scmp.eq.s32.totalorder %s89, 1
      %p306 = por %p304, %p305
      %p307 = scmp.ne.s32.totalorder %s298, %s299
      %p308 = scmp.eq.s32.totalorder %s89, 0
      %p309 = por %p307, %p308
      %p310 = scmp.ne.s32.totalorder %s298, %s299
      %p311 = scmp.eq.s32.totalorder %s90, 1
      %p312 = por %p310, %p311
      %p314 = scmp.ne.s32.totalorder %s299, %s313
      %p315 = scmp.eq.s32.totalorder %s90, 0
      %p316 = por %p314, %p315
      %s318 = sadd.s32 %s317, 1
      %p321 = scmp.eq.s32.totalorder %s84, 1
      %p322 = scmp.ne.s32.totalorder %s317, %s319
      %p323 = scmp.eq.s32.totalorder %s84, 0
      %p324 = por %p322, %p323
      %p325 = scmp.ne.s32.totalorder %s317, %s319
      %p326 = scmp.eq.s32.totalorder %s89, 1
      %p327 = por %p325, %p326
      %p328 = scmp.ne.s32.totalorder %s319, %s320
      %p329 = scmp.eq.s32.totalorder %s89, 0
      %p330 = por %p328, %p329
      %p331 = scmp.ne.s32.totalorder %s319, %s320
      %p332 = scmp.eq.s32.totalorder %s90, 1
      %p333 = por %p331, %p332
      %p335 = scmp.ne.s32.totalorder %s320, %s334
      %p336 = scmp.eq.s32.totalorder %s90, 0
      %p337 = por %p335, %p336
      %s339 = sadd.s32 %s338, 1
      %p342 = scmp.eq.s32.totalorder %s84, 1
      %p343 = scmp.ne.s32.totalorder %s338, %s340
      %p344 = scmp.eq.s32.totalorder %s84, 0
      %p345 = por %p343, %p344
      %p346 = scmp.ne.s32.totalorder %s338, %s340
      %p347 = scmp.eq.s32.totalorder %s89, 1
      %p348 = por %p346, %p347
      %p349 = scmp.ne.s32.totalorder %s340, %s341
      %p350 = scmp.eq.s32.totalorder %s89, 0
      %p351 = por %p349, %p350
      %p352 = scmp.ne.s32.totalorder %s340, %s341
      %p353 = scmp.eq.s32.totalorder %s90, 1
      %p354 = por %p352, %p353
      %p356 = scmp.ne.s32.totalorder %s341, %s355
      %p357 = scmp.eq.s32.totalorder %s90, 0
      %p358 = por %p356, %p357
      %s360 = sadd.s32 %s359, 1
      %p363 = scmp.eq.s32.totalorder %s84, 1
      %p364 = scmp.ne.s32.totalorder %s359, %s361
      %p365 = scmp.eq.s32.totalorder %s84, 0
      %p366 = por %p364, %p365
      %p367 = scmp.ne.s32.totalorder %s359, %s361
      %p368 = scmp.eq.s32.totalorder %s89, 1
      %p369 = por %p367, %p368
      %p370 = scmp.ne.s32.totalorder %s361, %s362
      %p371 = scmp.eq.s32.totalorder %s89, 0
      %p372 = por %p370, %p371
      %p373 = scmp.ne.s32.totalorder %s361, %s362
      %p374 = scmp.eq.s32.totalorder %s90, 1
      %p375 = por %p373, %p374
      %p377 = scmp.ne.s32.totalorder %s362, %s376
      %p378 = scmp.eq.s32.totalorder %s90, 0
      %p379 = por %p377, %p378
      %s381 = sadd.s32 %s380, 1
      %p384 = scmp.eq.s32.totalorder %s84, 1
      %p385 = scmp.ne.s32.totalorder %s380, %s382
      %p386 = scmp.eq.s32.totalorder %s84, 0
      %p387 = por %p385, %p386
      %p388 = scmp.ne.s32.totalorder %s380, %s382
      %p389 = scmp.eq.s32.totalorder %s89, 1
      %p390 = por %p388, %p389
      %p391 = scmp.ne.s32.totalorder %s382, %s383
      %p392 = scmp.eq.s32.totalorder %s89, 0
      %p393 = por %p391, %p392
      %p394 = scmp.ne.s32.totalorder %s382, %s383
      %p395 = scmp.eq.s32.totalorder %s90, 1
      %p396 = por %p394, %p395
      %p398 = scmp.ne.s32.totalorder %s383, %s397
      %p399 = scmp.eq.s32.totalorder %s90, 0
      %p400 = por %p398, %p399
      %s402 = sadd.s32 %s401, 1
      %p405 = scmp.eq.s32.totalorder %s84, 1
      %p406 = scmp.ne.s32.totalorder %s401, %s403
      %p407 = scmp.eq.s32.totalorder %s84, 0
      %p408 = por %p406, %p407
      %p409 = scmp.ne.s32.totalorder %s401, %s403
      %p410 = scmp.eq.s32.totalorder %s89, 1
      %p411 = por %p409, %p410
      %p412 = scmp.ne.s32.totalorder %s403, %s404
      %p413 = scmp.eq.s32.totalorder %s89, 0
      %p414 = por %p412, %p413
      %p415 = scmp.ne.s32.totalorder %s403, %s404
      %p416 = scmp.eq.s32.totalorder %s90, 1
      %p417 = por %p415, %p416
      %p419 = scmp.ne.s32.totalorder %s404, %s418
      %p420 = scmp.eq.s32.totalorder %s90, 0
      %p421 = por %p419, %p420
      %s423 = sadd.s32 %s422, 1
      %p426 = scmp.eq.s32.totalorder %s84, 1
      %p427 = scmp.ne.s32.totalorder %s422, %s424
      %p428 = scmp.eq.s32.totalorder %s84, 0
      %p429 = por %p427, %p428
      %p430 = scmp.ne.s32.totalorder %s422, %s424
      %p431 = scmp.eq.s32.totalorder %s89, 1
      %p432 = por %p430, %p431
      %p433 = scmp.ne.s32.totalorder %s424, %s425
      %p434 = scmp.eq.s32.totalorder %s89, 0
      %p435 = por %p433, %p434
      %p436 = scmp.ne.s32.totalorder %s424, %s425
      %p437 = scmp.eq.s32.totalorder %s90, 1
      %p438 = por %p436, %p437
      %p440 = scmp.ne.s32.totalorder %s425, %s439
      %p441 = scmp.eq.s32.totalorder %s90, 0
      %p442 = por %p440, %p441
      %s444 = sadd.s32 %s443, 1
      %p447 = scmp.eq.s32.totalorder %s84, 1
      %p448 = scmp.ne.s32.totalorder %s443, %s445
      %p449 = scmp.eq.s32.totalorder %s84, 0
      %p450 = por %p448, %p449
      %p451 = scmp.ne.s32.totalorder %s443, %s445
      %p452 = scmp.eq.s32.totalorder %s89, 1
      %p453 = por %p451, %p452
      %p454 = scmp.ne.s32.totalorder %s445, %s446
      %p455 = scmp.eq.s32.totalorder %s89, 0
      %p456 = por %p454, %p455
      %p457 = scmp.ne.s32.totalorder %s445, %s446
      %p458 = scmp.eq.s32.totalorder %s90, 1
      %p459 = por %p457, %p458
      %p461 = scmp.ne.s32.totalorder %s446, %s460
      %p462 = scmp.eq.s32.totalorder %s90, 0
      %p463 = por %p461, %p462
      %s465 = sadd.s32 %s464, 1
      %p468 = scmp.eq.s32.totalorder %s84, 1
      %p469 = scmp.ne.s32.totalorder %s464, %s466
      %p470 = scmp.eq.s32.totalorder %s84, 0
      %p471 = por %p469, %p470
      %p472 = scmp.ne.s32.totalorder %s464, %s466
      %p473 = scmp.eq.s32.totalorder %s89, 1
      %p474 = por %p472, %p473
      %p475 = scmp.ne.s32.totalorder %s466, %s467
      %p476 = scmp.eq.s32.totalorder %s89, 0
      %p477 = por %p475, %p476
      %p478 = scmp.ne.s32.totalorder %s466, %s467
      %p479 = scmp.eq.s32.totalorder %s90, 1
      %p480 = por %p478, %p479
      %p482 = scmp.ne.s32.totalorder %s467, %s481
      %p483 = scmp.eq.s32.totalorder %s90, 0
      %p484 = por %p482, %p483
      %s486 = sadd.s32 %s485, 1
      %p489 = scmp.eq.s32.totalorder %s84, 1
      %p490 = scmp.ne.s32.totalorder %s485, %s487
      %p491 = scmp.eq.s32.totalorder %s84, 0
      %p492 = por %p490, %p491
      %p493 = scmp.ne.s32.totalorder %s485, %s487
      %p494 = scmp.eq.s32.totalorder %s89, 1
      %p495 = por %p493, %p494
      %p496 = scmp.ne.s32.totalorder %s487, %s488
      %p497 = scmp.eq.s32.totalorder %s89, 0
      %p498 = por %p496, %p497
      %p499 = scmp.ne.s32.totalorder %s487, %s488
      %p500 = scmp.eq.s32.totalorder %s90, 1
      %p501 = por %p499, %p500
      %p503 = scmp.ne.s32.totalorder %s488, %s502
      %p504 = scmp.eq.s32.totalorder %s90, 0
      %p505 = por %p503, %p504
      %s507 = sadd.s32 %s506, 1
      %p510 = scmp.eq.s32.totalorder %s84, 1
      %p511 = scmp.ne.s32.totalorder %s506, %s508
      %p512 = scmp.eq.s32.totalorder %s84, 0
      %p513 = por %p511, %p512
      %p514 = scmp.ne.s32.totalorder %s506, %s508
      %p515 = scmp.eq.s32.totalorder %s89, 1
      %p516 = por %p514, %p515
      %p517 = scmp.ne.s32.totalorder %s508, %s509
      %p518 = scmp.eq.s32.totalorder %s89, 0
      %p519 = por %p517, %p518
      %p520 = scmp.ne.s32.totalorder %s508, %s509
      %p521 = scmp.eq.s32.totalorder %s90, 1
      %p522 = por %p520, %p521
      %p524 = scmp.ne.s32.totalorder %s509, %s523
      %p525 = scmp.eq.s32.totalorder %s90, 0
      %p526 = por %p524, %p525
      %s528 = sadd.s32 %s527, 1
      %p531 = scmp.eq.s32.totalorder %s84, 1
      %p532 = scmp.ne.s32.totalorder %s527, %s529
      %p533 = scmp.eq.s32.totalorder %s84, 0
      %p534 = por %p532, %p533
      %p535 = scmp.ne.s32.totalorder %s527, %s529
      %p536 = scmp.eq.s32.totalorder %s89, 1
      %p537 = por %p535, %p536
      %p538 = scmp.ne.s32.totalorder %s529, %s530
      %p539 = scmp.eq.s32.totalorder %s89, 0
      %p540 = por %p538, %p539
      %p541 = scmp.ne.s32.totalorder %s529, %s530
      %p542 = scmp.eq.s32.totalorder %s90, 1
      %p543 = por %p541, %p542
      %p545 = scmp.ne.s32.totalorder %s530, %s544
      %p546 = scmp.eq.s32.totalorder %s90, 0
      %p547 = por %p545, %p546
      %s549 = sadd.s32 %s548, 1
      %p552 = scmp.eq.s32.totalorder %s84, 1
      %p553 = scmp.ne.s32.totalorder %s548, %s550
      %p554 = scmp.eq.s32.totalorder %s84, 0
      %p555 = por %p553, %p554
      %p556 = scmp.ne.s32.totalorder %s548, %s550
      %p557 = scmp.eq.s32.totalorder %s89, 1
      %p558 = por %p556, %p557
      %p559 = scmp.ne.s32.totalorder %s550, %s551
      %p560 = scmp.eq.s32.totalorder %s89, 0
      %p561 = por %p559, %p560
      %p562 = scmp.ne.s32.totalorder %s550, %s551
      %p563 = scmp.eq.s32.totalorder %s90, 1
      %p564 = por %p562, %p563
      %p566 = scmp.ne.s32.totalorder %s551, %s565
      %p567 = scmp.eq.s32.totalorder %s90, 0
      %p568 = por %p566, %p567
      %s570 = sadd.s32 %s569, 1
      %p573 = scmp.eq.s32.totalorder %s84, 1
      %p574 = scmp.ne.s32.totalorder %s569, %s571
      %p575 = scmp.eq.s32.totalorder %s84, 0
      %p576 = por %p574, %p575
      %p577 = scmp.ne.s32.totalorder %s569, %s571
      %p578 = scmp.eq.s32.totalorder %s89, 1
      %p579 = por %p577, %p578
      %p580 = scmp.ne.s32.totalorder %s571, %s572
      %p581 = scmp.eq.s32.totalorder %s89, 0
      %p582 = por %p580, %p581
      %p583 = scmp.ne.s32.totalorder %s571, %s572
      %p584 = scmp.eq.s32.totalorder %s90, 1
      %p585 = por %p583, %p584
      %p587 = scmp.ne.s32.totalorder %s572, %s586
      %p588 = scmp.eq.s32.totalorder %s90, 0
      %p589 = por %p587, %p588
      %s591 = sadd.s32 %s590, 1
      %p594 = scmp.eq.s32.totalorder %s84, 1
      %p595 = scmp.ne.s32.totalorder %s590, %s592
      %p596 = scmp.eq.s32.totalorder %s84, 0
      %p597 = por %p595, %p596
      %p598 = scmp.ne.s32.totalorder %s590, %s592
      %p599 = scmp.eq.s32.totalorder %s89, 1
      %p600 = por %p598, %p599
      %p601 = scmp.ne.s32.totalorder %s592, %s593
      %p602 = scmp.eq.s32.totalorder %s89, 0
      %p603 = por %p601, %p602
      %p604 = scmp.ne.s32.totalorder %s592, %s593
      %p605 = scmp.eq.s32.totalorder %s90, 1
      %p606 = por %p604, %p605
      %p608 = scmp.ne.s32.totalorder %s593, %s607
      %p609 = scmp.eq.s32.totalorder %s90, 0
      %p610 = por %p608, %p609
      %s612 = sadd.s32 %s611, 1
      %p615 = scmp.eq.s32.totalorder %s84, 1
      %p616 = scmp.ne.s32.totalorder %s611, %s613
      %p617 = scmp.eq.s32.totalorder %s84, 0
      %p618 = por %p616, %p617
      %p619 = scmp.ne.s32.totalorder %s611, %s613
      %p620 = scmp.eq.s32.totalorder %s89, 1
      %p621 = por %p619, %p620
      %p622 = scmp.ne.s32.totalorder %s613, %s614
      %p623 = scmp.eq.s32.totalorder %s89, 0
      %p624 = por %p622, %p623
      %p625 = scmp.ne.s32.totalorder %s613, %s614
      %p626 = scmp.eq.s32.totalorder %s90, 1
      %p627 = por %p625, %p626
      %p629 = scmp.ne.s32.totalorder %s614, %s628
      %p630 = scmp.eq.s32.totalorder %s90, 0
      %p631 = por %p629, %p630
      %s633 = sadd.s32 %s632, 1
      %p636 = scmp.eq.s32.totalorder %s84, 1
      %p637 = scmp.ne.s32.totalorder %s632, %s634
      %p638 = scmp.eq.s32.totalorder %s84, 0
      %p639 = por %p637, %p638
      %p640 = scmp.ne.s32.totalorder %s632, %s634
      %p641 = scmp.eq.s32.totalorder %s89, 1
      %p642 = por %p640, %p641
      %p643 = scmp.ne.s32.totalorder %s634, %s635
      %p644 = scmp.eq.s32.totalorder %s89, 0
      %p645 = por %p643, %p644
      %p646 = scmp.ne.s32.totalorder %s634, %s635
      %p647 = scmp.eq.s32.totalorder %s90, 1
      %p648 = por %p646, %p647
      %p650 = scmp.ne.s32.totalorder %s635, %s649
      %p651 = scmp.eq.s32.totalorder %s90, 0
      %p652 = por %p650, %p651
      %s654 = sadd.s32 %s653, 1
      %p657 = scmp.eq.s32.totalorder %s84, 1
      %p658 = scmp.ne.s32.totalorder %s653, %s655
      %p659 = scmp.eq.s32.totalorder %s84, 0
      %p660 = por %p658, %p659
      %p661 = scmp.ne.s32.totalorder %s653, %s655
      %p662 = scmp.eq.s32.totalorder %s89, 1
      %p663 = por %p661, %p662
      %p664 = scmp.ne.s32.totalorder %s655, %s656
      %p665 = scmp.eq.s32.totalorder %s89, 0
      %p666 = por %p664, %p665
      %p667 = scmp.ne.s32.totalorder %s655, %s656
      %p668 = scmp.eq.s32.totalorder %s90, 1
      %p669 = por %p667, %p668
      %p671 = scmp.ne.s32.totalorder %s656, %s670
      %p672 = scmp.eq.s32.totalorder %s90, 0
      %p673 = por %p671, %p672
      %s675 = sadd.s32 %s674, 1
      %p678 = scmp.eq.s32.totalorder %s84, 1
      %p679 = scmp.ne.s32.totalorder %s674, %s676
      %p680 = scmp.eq.s32.totalorder %s84, 0
      %p681 = por %p679, %p680
      %p682 = scmp.ne.s32.totalorder %s674, %s676
      %p683 = scmp.eq.s32.totalorder %s89, 1
      %p684 = por %p682, %p683
      %p685 = scmp.ne.s32.totalorder %s676, %s677
      %p686 = scmp.eq.s32.totalorder %s89, 0
      %p687 = por %p685, %p686
      %p688 = scmp.ne.s32.totalorder %s676, %s677
      %p689 = scmp.eq.s32.totalorder %s90, 1
      %p690 = por %p688, %p689
      %p692 = scmp.ne.s32.totalorder %s677, %s691
      %p693 = scmp.eq.s32.totalorder %s90, 0
      %p694 = por %p692, %p693
      %s696 = sadd.s32 %s695, 1
      %p699 = scmp.eq.s32.totalorder %s84, 1
      %p700 = scmp.ne.s32.totalorder %s695, %s697
      %p701 = scmp.eq.s32.totalorder %s84, 0
      %p702 = por %p700, %p701
      %p703 = scmp.ne.s32.totalorder %s695, %s697
      %p704 = scmp.eq.s32.totalorder %s89, 1
      %p705 = por %p703, %p704
      %p706 = scmp.ne.s32.totalorder %s697, %s698
      %p707 = scmp.eq.s32.totalorder %s89, 0
      %p708 = por %p706, %p707
      %p709 = scmp.ne.s32.totalorder %s697, %s698
      %p710 = scmp.eq.s32.totalorder %s90, 1
      %p711 = por %p709, %p710
      %p713 = scmp.ne.s32.totalorder %s698, %s712
      %p714 = scmp.eq.s32.totalorder %s90, 0
      %p715 = por %p713, %p714
      %s717 = sadd.s32 %s716, 1
      %p720 = scmp.eq.s32.totalorder %s84, 1
      %p721 = scmp.ne.s32.totalorder %s716, %s718
      %p722 = scmp.eq.s32.totalorder %s84, 0
      %p723 = por %p721, %p722
      %p724 = scmp.ne.s32.totalorder %s716, %s718
      %p725 = scmp.eq.s32.totalorder %s89, 1
      %p726 = por %p724, %p725
      %p727 = scmp.ne.s32.totalorder %s718, %s719
      %p728 = scmp.eq.s32.totalorder %s89, 0
      %p729 = por %p727, %p728
      %p730 = scmp.ne.s32.totalorder %s718, %s719
      %p731 = scmp.eq.s32.totalorder %s90, 1
      %p732 = por %p730, %p731
      %p734 = scmp.ne.s32.totalorder %s719, %s733
      %p735 = scmp.eq.s32.totalorder %s90, 0
      %p736 = por %p734, %p735
      %s738 = sadd.s32 %s737, 1
      %p741 = scmp.eq.s32.totalorder %s84, 1
      %p742 = scmp.ne.s32.totalorder %s737, %s739
      %p743 = scmp.eq.s32.totalorder %s84, 0
      %p744 = por %p742, %p743
      %p745 = scmp.ne.s32.totalorder %s737, %s739
      %p746 = scmp.eq.s32.totalorder %s89, 1
      %p747 = por %p745, %p746
      %p748 = scmp.ne.s32.totalorder %s739, %s740
      %p749 = scmp.eq.s32.totalorder %s89, 0
      %p750 = por %p748, %p749
      %p751 = scmp.ne.s32.totalorder %s739, %s740
      %p752 = scmp.eq.s32.totalorder %s90, 1
      %p753 = por %p751, %p752
      %p755 = scmp.ne.s32.totalorder %s740, %s754
      %p756 = scmp.eq.s32.totalorder %s90, 0
      %p757 = por %p755, %p756
      %s759 = sadd.s32 %s758, 1
      %p762 = scmp.eq.s32.totalorder %s84, 1
      %p763 = scmp.ne.s32.totalorder %s758, %s760
      %p764 = scmp.eq.s32.totalorder %s84, 0
      %p765 = por %p763, %p764
      %p766 = scmp.ne.s32.totalorder %s758, %s760
      %p767 = scmp.eq.s32.totalorder %s89, 1
      %p768 = por %p766, %p767
      %p769 = scmp.ne.s32.totalorder %s760, %s761
      %p770 = scmp.eq.s32.totalorder %s89, 0
      %p771 = por %p769, %p770
      %p772 = scmp.ne.s32.totalorder %s760, %s761
      %p773 = scmp.eq.s32.totalorder %s90, 1
      %p774 = por %p772, %p773
      %p776 = scmp.ne.s32.totalorder %s761, %s775
      %p777 = scmp.eq.s32.totalorder %s90, 0
      %p778 = por %p776, %p777
      %s780 = sadd.s32 %s779, 1
      %p783 = scmp.eq.s32.totalorder %s84, 1
      %p784 = scmp.ne.s32.totalorder %s779, %s781
      %p785 = scmp.eq.s32.totalorder %s84, 0
      %p786 = por %p784, %p785
      %p787 = scmp.ne.s32.totalorder %s779, %s781
      %p788 = scmp.eq.s32.totalorder %s89, 1
      %p789 = por %p787, %p788
      %p790 = scmp.ne.s32.totalorder %s781, %s782
      %p791 = scmp.eq.s32.totalorder %s89, 0
      %p792 = por %p790, %p791
      %p793 = scmp.ne.s32.totalorder %s781, %s782
      %p794 = scmp.eq.s32.totalorder %s90, 1
      %p795 = por %p793, %p794
      %p797 = scmp.ne.s32.totalorder %s782, %s796
      %p798 = scmp.eq.s32.totalorder %s90, 0
      %p799 = por %p797, %p798
      %s801 = sadd.s32 %s800, 1
      %p804 = scmp.eq.s32.totalorder %s84, 1
      %p805 = scmp.ne.s32.totalorder %s800, %s802
      %p806 = scmp.eq.s32.totalorder %s84, 0
      %p807 = por %p805, %p806
      %p808 = scmp.ne.s32.totalorder %s800, %s802
      %p809 = scmp.eq.s32.totalorder %s89, 1
      %p810 = por %p808, %p809
      %p811 = scmp.ne.s32.totalorder %s802, %s803
      %p812 = scmp.eq.s32.totalorder %s89, 0
      %p813 = por %p811, %p812
      %p814 = scmp.ne.s32.totalorder %s802, %s803
      %p815 = scmp.eq.s32.totalorder %s90, 1
      %p816 = por %p814, %p815
      %p818 = scmp.ne.s32.totalorder %s803, %s817
      %p819 = scmp.eq.s32.totalorder %s90, 0
      %p820 = por %p818, %p819
      %s822 = sadd.s32 %s821, 1
      %p825 = scmp.eq.s32.totalorder %s84, 1
      %p826 = scmp.ne.s32.totalorder %s821, %s823
      %p827 = scmp.eq.s32.totalorder %s84, 0
      %p828 = por %p826, %p827
      %p829 = scmp.ne.s32.totalorder %s821, %s823
      %p830 = scmp.eq.s32.totalorder %s89, 1
      %p831 = por %p829, %p830
      %p832 = scmp.ne.s32.totalorder %s823, %s824
      %p833 = scmp.eq.s32.totalorder %s89, 0
      %p834 = por %p832, %p833
      %p835 = scmp.ne.s32.totalorder %s823, %s824
      %p836 = scmp.eq.s32.totalorder %s90, 1
      %p837 = por %p835, %p836
      %p839 = scmp.ne.s32.totalorder %s824, %s838
      %p840 = scmp.eq.s32.totalorder %s90, 0
      %p841 = por %p839, %p840
      %s843 = sadd.s32 %s842, 1
      %p846 = scmp.eq.s32.totalorder %s84, 1
      %p847 = scmp.ne.s32.totalorder %s842, %s844
      %p848 = scmp.eq.s32.totalorder %s84, 0
      %p849 = por %p847, %p848
      %p850 = scmp.ne.s32.totalorder %s842, %s844
      %p851 = scmp.eq.s32.totalorder %s89, 1
      %p852 = por %p850, %p851
      %p853 = scmp.ne.s32.totalorder %s844, %s845
      %p854 = scmp.eq.s32.totalorder %s89, 0
      %p855 = por %p853, %p854
      %p856 = scmp.ne.s32.totalorder %s844, %s845
      %p857 = scmp.eq.s32.totalorder %s90, 1
      %p858 = por %p856, %p857
      %p860 = scmp.ne.s32.totalorder %s845, %s859
      %p861 = scmp.eq.s32.totalorder %s90, 0
      %p862 = por %p860, %p861
      %s864 = sadd.s32 %s863, 1
      %p867 = scmp.eq.s32.totalorder %s84, 1
      %p868 = scmp.ne.s32.totalorder %s863, %s865
      %p869 = scmp.eq.s32.totalorder %s84, 0
      %p870 = por %p868, %p869
      %p871 = scmp.ne.s32.totalorder %s863, %s865
      %p872 = scmp.eq.s32.totalorder %s89, 1
      %p873 = por %p871, %p872
      %p874 = scmp.ne.s32.totalorder %s865, %s866
      %p875 = scmp.eq.s32.totalorder %s89, 0
      %p876 = por %p874, %p875
      %p877 = scmp.ne.s32.totalorder %s865, %s866
      %p878 = scmp.eq.s32.totalorder %s90, 1
      %p879 = por %p877, %p878
      %p881 = scmp.ne.s32.totalorder %s866, %s880
      %p882 = scmp.eq.s32.totalorder %s90, 0
      %p883 = por %p881, %p882
      %s884 = ssub.s32 %s84, %s91
      %p885 = scmp.eq.s32.totalorder %s884, 0
      %s887 = sadd.s32 %s886, 1
      %s888 = scalar_select %p885, %s886, %s887
      %p891 = pneg %p885
      %p892 = scmp.eq.s32.totalorder %s84, 1
      %p893 = por %p891, %p892
      %p894 = scmp.ne.s32.totalorder %s886, %s889
      %p895 = scmp.eq.s32.totalorder %s84, 0
      %p896 = por %p894, %p895
      %p897 = scmp.ne.s32.totalorder %s886, %s889
      %p898 = scmp.eq.s32.totalorder %s89, 1
      %p899 = por %p897, %p898
      %p900 = scmp.ne.s32.totalorder %s889, %s890
      %p901 = scmp.eq.s32.totalorder %s89, 0
      %p902 = por %p900, %p901
      %p903 = scmp.ne.s32.totalorder %s889, %s890
      %p904 = scmp.eq.s32.totalorder %s90, 1
      %p905 = por %p903, %p904
      %p907 = scmp.ne.s32.totalorder %s890, %s906
      %p908 = scmp.eq.s32.totalorder %s90, 0
      %p909 = por %p907, %p908
      %p910 = scmp.le.s32.totalorder 1, %s84
      %p911 = scmp.lt.s32.totalorder %s84, 3
      %p912 = pnand %p910, %p911
      %p913 = pneg %p912
      // Predicated region
      $region9: #{tpu_custom_call.1} parent=5 // pred_check
        _
      $region10: #{tpu_custom_call.1} parent=5 // pred_check_branch
        %915 = sbr.rel (%p912) target = $region12
      $region11: #{tpu_custom_call.1} parent=5 // pred_region
        %s916 = ssub.s32 %s84, 1
        // Predicated region
        $region13: #{tpu_custom_call.1} parent=11 // pred_check
          %p917 = pneg %p183
        $region14: #{tpu_custom_call.1} parent=11 // pred_check_branch
          %919 = sbr.rel (%p917) target = $region16
        $region15: #{tpu_custom_call.1} parent=11 // pred_region
          _
        $region16: #{tpu_custom_call.1} parent=11 // pred_fallthru
          _
        // Predicated region
        $region17: #{tpu_custom_call.1} parent=11 // pred_check
          %p920 = pneg %p204
        $region18: #{tpu_custom_call.1} parent=11 // pred_check_branch
          %922 = sbr.rel (%p920) target = $region20
        $region19: #{tpu_custom_call.1} parent=11 // pred_region
          _
        $region20: #{tpu_custom_call.1} parent=11 // pred_fallthru
          _
        // Predicated region
        $region21: #{tpu_custom_call.1} parent=11 // pred_check
          %p923 = pneg %p225
        $region22: #{tpu_custom_call.1} parent=11 // pred_check_branch
          %925 = sbr.rel (%p923) target = $region24
        $region23: #{tpu_custom_call.1} parent=11 // pred_region
          _
        $region24: #{tpu_custom_call.1} parent=11 // pred_fallthru
          _
        // Predicated region
        $region25: #{tpu_custom_call.1} parent=11 // pred_check
          %p926 = pneg %p246
        $region26: #{tpu_custom_call.1} parent=11 // pred_check_branch
          %928 = sbr.rel (%p926) target = $region28
        $region27: #{tpu_custom_call.1} parent=11 // pred_region
          _
        $region28: #{tpu_custom_call.1} parent=11 // pred_fallthru
          _
        // Predicated region
        $region29: #{tpu_custom_call.1} parent=11 // pred_check
          %p929 = pneg %p267
        $region30: #{tpu_custom_call.1} parent=11 // pred_check_branch
          %931 = sbr.rel (%p929) target = $region32
        $region31: #{tpu_custom_call.1} parent=11 // pred_region
          _
        $region32: #{tpu_custom_call.1} parent=11 // pred_fallthru
          _
        // Predicated region
        $region33: #{tpu_custom_call.1} parent=11 // pred_check
          %p932 = pneg %p288
        $region34: #{tpu_custom_call.1} parent=11 // pred_check_branch
          %934 = sbr.rel (%p932) target = $region36
        $region35: #{tpu_custom_call.1} parent=11 // pred_region
          _
        $region36: #{tpu_custom_call.1} parent=11 // pred_fallthru
          _
        // Predicated region
        $region37: #{tpu_custom_call.1} parent=11 // pred_check
          %p935 = pneg %p309
        $region38: #{tpu_custom_call.1} parent=11 // pred_check_branch
          %937 = sbr.rel (%p935) target = $region40
        $region39: #{tpu_custom_call.1} parent=11 // pred_region
          _
        $region40: #{tpu_custom_call.1} parent=11 // pred_fallthru
          _
        // Predicated region
        $region41: #{tpu_custom_call.1} parent=11 // pred_check
          %p938 = pneg %p330
        $region42: #{tpu_custom_call.1} parent=11 // pred_check_branch
          %940 = sbr.rel (%p938) target = $region44
        $region43: #{tpu_custom_call.1} parent=11 // pred_region
          _
        $region44: #{tpu_custom_call.1} parent=11 // pred_fallthru
          _
        // Predicated region
        $region45: #{tpu_custom_call.1} parent=11 // pred_check
          %p941 = pneg %p351
        $region46: #{tpu_custom_call.1} parent=11 // pred_check_branch
          %943 = sbr.rel (%p941) target = $region48
        $region47: #{tpu_custom_call.1} parent=11 // pred_region
          _
        $region48: #{tpu_custom_call.1} parent=11 // pred_fallthru
          _
        // Predicated region
        $region49: #{tpu_custom_call.1} parent=11 // pred_check
          %p944 = pneg %p372
        $region50: #{tpu_custom_call.1} parent=11 // pred_check_branch
          %946 = sbr.rel (%p944) target = $region52
        $region51: #{tpu_custom_call.1} parent=11 // pred_region
          _
        $region52: #{tpu_custom_call.1} parent=11 // pred_fallthru
          _
        // Predicated region
        $region53: #{tpu_custom_call.1} parent=11 // pred_check
          %p947 = pneg %p393
        $region54: #{tpu_custom_call.1} parent=11 // pred_check_branch
          %949 = sbr.rel (%p947) target = $region56
        $region55: #{tpu_custom_call.1} parent=11 // pred_region
          _
        $region56: #{tpu_custom_call.1} parent=11 // pred_fallthru
          _
        // Predicated region
        $region57: #{tpu_custom_call.1} parent=11 // pred_check
          %p950 = pneg %p414
        $region58: #{tpu_custom_call.1} parent=11 // pred_check_branch
          %952 = sbr.rel (%p950) target = $region60
        $region59: #{tpu_custom_call.1} parent=11 // pred_region
          _
        $region60: #{tpu_custom_call.1} parent=11 // pred_fallthru
          _
        // Predicated region
        $region61: #{tpu_custom_call.1} parent=11 // pred_check
          %p953 = pneg %p435
        $region62: #{tpu_custom_call.1} parent=11 // pred_check_branch
          %955 = sbr.rel (%p953) target = $region64
        $region63: #{tpu_custom_call.1} parent=11 // pred_region
          _
        $region64: #{tpu_custom_call.1} parent=11 // pred_fallthru
          _
        // Predicated region
        $region65: #{tpu_custom_call.1} parent=11 // pred_check
          %p956 = pneg %p456
        $region66: #{tpu_custom_call.1} parent=11 // pred_check_branch
          %958 = sbr.rel (%p956) target = $region68
        $region67: #{tpu_custom_call.1} parent=11 // pred_region
          _
        $region68: #{tpu_custom_call.1} parent=11 // pred_fallthru
          _
        // Predicated region
        $region69: #{tpu_custom_call.1} parent=11 // pred_check
          %p959 = pneg %p477
        $region70: #{tpu_custom_call.1} parent=11 // pred_check_branch
          %961 = sbr.rel (%p959) target = $region72
        $region71: #{tpu_custom_call.1} parent=11 // pred_region
          _
        $region72: #{tpu_custom_call.1} parent=11 // pred_fallthru
          _
        // Predicated region
        $region73: #{tpu_custom_call.1} parent=11 // pred_check
          %p962 = pneg %p498
        $region74: #{tpu_custom_call.1} parent=11 // pred_check_branch
          %964 = sbr.rel (%p962) target = $region76
        $region75: #{tpu_custom_call.1} parent=11 // pred_region
          _
        $region76: #{tpu_custom_call.1} parent=11 // pred_fallthru
          _
        // Predicated region
        $region77: #{tpu_custom_call.1} parent=11 // pred_check
          %p965 = pneg %p519
        $region78: #{tpu_custom_call.1} parent=11 // pred_check_branch
          %967 = sbr.rel (%p965) target = $region80
        $region79: #{tpu_custom_call.1} parent=11 // pred_region
          _
        $region80: #{tpu_custom_call.1} parent=11 // pred_fallthru
          _
        // Predicated region
        $region81: #{tpu_custom_call.1} parent=11 // pred_check
          %p968 = pneg %p540
        $region82: #{tpu_custom_call.1} parent=11 // pred_check_branch
          %970 = sbr.rel (%p968) target = $region84
        $region83: #{tpu_custom_call.1} parent=11 // pred_region
          _
        $region84: #{tpu_custom_call.1} parent=11 // pred_fallthru
          _
        // Predicated region
        $region85: #{tpu_custom_call.1} parent=11 // pred_check
          %p971 = pneg %p561
        $region86: #{tpu_custom_call.1} parent=11 // pred_check_branch
          %973 = sbr.rel (%p971) target = $region88
        $region87: #{tpu_custom_call.1} parent=11 // pred_region
          _
        $region88: #{tpu_custom_call.1} parent=11 // pred_fallthru
          _
        // Predicated region
        $region89: #{tpu_custom_call.1} parent=11 // pred_check
          %p974 = pneg %p582
        $region90: #{tpu_custom_call.1} parent=11 // pred_check_branch
          %976 = sbr.rel (%p974) target = $region92
        $region91: #{tpu_custom_call.1} parent=11 // pred_region
          _
        $region92: #{tpu_custom_call.1} parent=11 // pred_fallthru
          _
        // Predicated region
        $region93: #{tpu_custom_call.1} parent=11 // pred_check
          %p977 = pneg %p603
        $region94: #{tpu_custom_call.1} parent=11 // pred_check_branch
          %979 = sbr.rel (%p977) target = $region96
        $region95: #{tpu_custom_call.1} parent=11 // pred_region
          _
        $region96: #{tpu_custom_call.1} parent=11 // pred_fallthru
          _
        // Predicated region
        $region97: #{tpu_custom_call.1} parent=11 // pred_check
          %p980 = pneg %p624
        $region98: #{tpu_custom_call.1} parent=11 // pred_check_branch
          %982 = sbr.rel (%p980) target = $region100
        $region99: #{tpu_custom_call.1} parent=11 // pred_region
          _
        $region100: #{tpu_custom_call.1} parent=11 // pred_fallthru
          _
        // Predicated region
        $region101: #{tpu_custom_call.1} parent=11 // pred_check
          %p983 = pneg %p645
        $region102: #{tpu_custom_call.1} parent=11 // pred_check_branch
          %985 = sbr.rel (%p983) target = $region104
        $region103: #{tpu_custom_call.1} parent=11 // pred_region
          _
        $region104: #{tpu_custom_call.1} parent=11 // pred_fallthru
          _
        // Predicated region
        $region105: #{tpu_custom_call.1} parent=11 // pred_check
          %p986 = pneg %p666
        $region106: #{tpu_custom_call.1} parent=11 // pred_check_branch
          %988 = sbr.rel (%p986) target = $region108
        $region107: #{tpu_custom_call.1} parent=11 // pred_region
          _
        $region108: #{tpu_custom_call.1} parent=11 // pred_fallthru
          _
        // Predicated region
        $region109: #{tpu_custom_call.1} parent=11 // pred_check
          %p989 = pneg %p687
        $region110: #{tpu_custom_call.1} parent=11 // pred_check_branch
          %991 = sbr.rel (%p989) target = $region112
        $region111: #{tpu_custom_call.1} parent=11 // pred_region
          _
        $region112: #{tpu_custom_call.1} parent=11 // pred_fallthru
          _
        // Predicated region
        $region113: #{tpu_custom_call.1} parent=11 // pred_check
          %p992 = pneg %p708
        $region114: #{tpu_custom_call.1} parent=11 // pred_check_branch
          %994 = sbr.rel (%p992) target = $region116
        $region115: #{tpu_custom_call.1} parent=11 // pred_region
          _
        $region116: #{tpu_custom_call.1} parent=11 // pred_fallthru
          _
        // Predicated region
        $region117: #{tpu_custom_call.1} parent=11 // pred_check
          %p995 = pneg %p729
        $region118: #{tpu_custom_call.1} parent=11 // pred_check_branch
          %997 = sbr.rel (%p995) target = $region120
        $region119: #{tpu_custom_call.1} parent=11 // pred_region
          _
        $region120: #{tpu_custom_call.1} parent=11 // pred_fallthru
          _
        // Predicated region
        $region121: #{tpu_custom_call.1} parent=11 // pred_check
          %p998 = pneg %p750
        $region122: #{tpu_custom_call.1} parent=11 // pred_check_branch
          %1000 = sbr.rel (%p998) target = $region124
        $region123: #{tpu_custom_call.1} parent=11 // pred_region
          _
        $region124: #{tpu_custom_call.1} parent=11 // pred_fallthru
          _
        // Predicated region
        $region125: #{tpu_custom_call.1} parent=11 // pred_check
          %p1001 = pneg %p771
        $region126: #{tpu_custom_call.1} parent=11 // pred_check_branch
          %1003 = sbr.rel (%p1001) target = $region128
        $region127: #{tpu_custom_call.1} parent=11 // pred_region
          _
        $region128: #{tpu_custom_call.1} parent=11 // pred_fallthru
          _
        // Predicated region
        $region129: #{tpu_custom_call.1} parent=11 // pred_check
          %p1004 = pneg %p792
        $region130: #{tpu_custom_call.1} parent=11 // pred_check_branch
          %1006 = sbr.rel (%p1004) target = $region132
        $region131: #{tpu_custom_call.1} parent=11 // pred_region
          _
        $region132: #{tpu_custom_call.1} parent=11 // pred_fallthru
          _
        // Predicated region
        $region133: #{tpu_custom_call.1} parent=11 // pred_check
          %p1007 = pneg %p813
        $region134: #{tpu_custom_call.1} parent=11 // pred_check_branch
          %1009 = sbr.rel (%p1007) target = $region136
        $region135: #{tpu_custom_call.1} parent=11 // pred_region
          _
        $region136: #{tpu_custom_call.1} parent=11 // pred_fallthru
          _
        // Predicated region
        $region137: #{tpu_custom_call.1} parent=11 // pred_check
          %p1010 = pneg %p834
        $region138: #{tpu_custom_call.1} parent=11 // pred_check_branch
          %1012 = sbr.rel (%p1010) target = $region140
        $region139: #{tpu_custom_call.1} parent=11 // pred_region
          _
        $region140: #{tpu_custom_call.1} parent=11 // pred_fallthru
          _
        // Predicated region
        $region141: #{tpu_custom_call.1} parent=11 // pred_check
          %p1013 = pneg %p855
        $region142: #{tpu_custom_call.1} parent=11 // pred_check_branch
          %1015 = sbr.rel (%p1013) target = $region144
        $region143: #{tpu_custom_call.1} parent=11 // pred_region
          _
        $region144: #{tpu_custom_call.1} parent=11 // pred_fallthru
          _
        // Predicated region
        $region145: #{tpu_custom_call.1} parent=11 // pred_check
          %p1016 = pneg %p876
        $region146: #{tpu_custom_call.1} parent=11 // pred_check_branch
          %1018 = sbr.rel (%p1016) target = $region148
        $region147: #{tpu_custom_call.1} parent=11 // pred_region
          _
        $region148: #{tpu_custom_call.1} parent=11 // pred_fallthru
          _
      $region12: #{tpu_custom_call.1} parent=5 // pred_fallthru
        _
      %p1019 = scmp.lt.s32.totalorder %s84, 2
      // Predicated region
      $region149: #{tpu_custom_call.1} parent=5 // pred_check
        %p1020 = pneg %p1019
      $region150: #{tpu_custom_call.1} parent=5 // pred_check_branch
        %1022 = sbr.rel (%p1020) target = $region152
      $region151: #{tpu_custom_call.1} parent=5 // pred_region
        // Predicated region
        $region153: #{tpu_custom_call.1} parent=151 // pred_check
          %p1023 = pneg %p104
        $region154: #{tpu_custom_call.1} parent=151 // pred_check_branch
          %1025 = sbr.rel (%p1023) target = $region156
        $region155: #{tpu_custom_call.1} parent=151 // pred_region
          %p1026 = scmp.lt.s32.totalorder %s84, 1
          %s1027 = scalar_select %p1026, %s84, 1
          %s1028 = smul.addr %s1027, 4
          %s1029 = smul.addr %s1028, 8
          %s1030 = scalar_lea.vmem %s1, %s1029
        $region156: #{tpu_custom_call.1} parent=151 // pred_fallthru
          _
        // Predicated region
        $region157: #{tpu_custom_call.1} parent=151 // pred_check
          %p1031 = pneg %p130
        $region158: #{tpu_custom_call.1} parent=151 // pred_check_branch
          %1033 = sbr.rel (%p1031) target = $region160
        $region159: #{tpu_custom_call.1} parent=151 // pred_region
          %p1034 = scmp.lt.s32.totalorder %s84, 1
          %s1035 = scalar_select %p1034, %s84, 1
          %s1036 = smul.addr %s1035, 4
          %s1037 = scalar_lea.vmem %s3, %s1036
        $region160: #{tpu_custom_call.1} parent=151 // pred_fallthru
          _
        // Predicated region
        $region161: #{tpu_custom_call.1} parent=151 // pred_check
          %p1038 = pneg %p156
        $region162: #{tpu_custom_call.1} parent=151 // pred_check_branch
          %1040 = sbr.rel (%p1038) target = $region164
        $region163: #{tpu_custom_call.1} parent=151 // pred_region
          %p1041 = scmp.lt.s32.totalorder %s84, 1
          %s1042 = scalar_select %p1041, %s84, 1
          %s1043 = smul.addr %s1042, 8
          %s1044 = scalar_lea.vmem %s5, %s1043
        $region164: #{tpu_custom_call.1} parent=151 // pred_fallthru
          _
      $region152: #{tpu_custom_call.1} parent=5 // pred_fallthru
        _
      %p1045 = scmp.le.s32.totalorder 1, %s84
      %p1046 = scmp.lt.s32.totalorder %s84, 3
      %p1047 = pnand %p1045, %p1046
      %p1048 = pneg %p1047
      // Predicated region
      $region165: #{tpu_custom_call.1} parent=5 // pred_check
        _
      $region166: #{tpu_custom_call.1} parent=5 // pred_check_branch
        %1050 = sbr.rel (%p1047) target = $region168
      $region167: #{tpu_custom_call.1} parent=5 // pred_region
        %s1051 = ssub.s32 %s84, 1
        %p1052 = scmp.lt.s32.totalorder %s89, 1
        %s1053 = scalar_select %p1052, %s89, 1
        %s1054 = smul.addr %s1053, 4
        %s1055 = smul.addr %s1054, 8
        %s1056 = scalar_lea.vmem %s1, %s1055
        %p1057 = pneg %p110
        %p1058 = pneg %p107
        %p1059 = scmp.lt.s32.totalorder %s89, 1
        %s1060 = scalar_select %p1059, %s89, 1
        %s1061 = smul.addr %s1060, 4
        %s1062 = scalar_lea.vmem %s3, %s1061
        %p1063 = pneg %p136
        %p1064 = pneg %p133
        %p1065 = scmp.lt.s32.totalorder %s89, 1
        %s1066 = scalar_select %p1065, %s89, 1
        %s1067 = smul.addr %s1066, 8
        %s1068 = scalar_lea.vmem %s5, %s1067
        %p1069 = pneg %p162
        %p1070 = pneg %p159
        %p1071 = pneg %p183
        %p1072 = pneg %p180
        %p1073 = pneg %p204
        %p1074 = pneg %p201
        %p1075 = pneg %p225
        %p1076 = pneg %p222
        %p1077 = pneg %p246
        %p1078 = pneg %p243
        %p1079 = pneg %p267
        %p1080 = pneg %p264
        %p1081 = pneg %p288
        %p1082 = pneg %p285
        %p1083 = pneg %p309
        %p1084 = pneg %p306
        %p1085 = pneg %p330
        %p1086 = pneg %p327
        %p1087 = pneg %p351
        %p1088 = pneg %p348
        %p1089 = pneg %p372
        %p1090 = pneg %p369
        %p1091 = pneg %p393
        %p1092 = pneg %p390
        %p1093 = pneg %p414
        %p1094 = pneg %p411
        %p1095 = pneg %p435
        %p1096 = pneg %p432
        %p1097 = pneg %p456
        %p1098 = pneg %p453
        %p1099 = pneg %p477
        %p1100 = pneg %p474
        %p1101 = pneg %p498
        %p1102 = pneg %p495
        %p1103 = pneg %p519
        %p1104 = pneg %p516
        %p1105 = pneg %p540
        %p1106 = pneg %p537
        %p1107 = pneg %p561
        %p1108 = pneg %p558
        %p1109 = pneg %p582
        %p1110 = pneg %p579
        %p1111 = pneg %p603
        %p1112 = pneg %p600
        %p1113 = pneg %p624
        %p1114 = pneg %p621
        %p1115 = pneg %p645
        %p1116 = pneg %p642
        %p1117 = pneg %p666
        %p1118 = pneg %p663
        %p1119 = pneg %p687
        %p1120 = pneg %p684
        %p1121 = pneg %p708
        %p1122 = pneg %p705
        %p1123 = pneg %p729
        %p1124 = pneg %p726
        %p1125 = pneg %p750
        %p1126 = pneg %p747
        %p1127 = pneg %p771
        %p1128 = pneg %p768
        %p1129 = pneg %p792
        %p1130 = pneg %p789
        %p1131 = pneg %p813
        %p1132 = pneg %p810
        %p1133 = pneg %p834
        %p1134 = pneg %p831
        %p1135 = pneg %p855
        %p1136 = pneg %p852
        %p1137 = pneg %p876
        %p1138 = pneg %p873
        %p1139 = pneg %p902
        %p1140 = pneg %p899
        %s1141 = sand.u32 %s889, 1
        %s1142 = scalar_lea.sflag [#allocation4], %s1141
        %s1143 = sand.u32 %s889, 1
        %s1144 = smul.addr %s1143, 4
        %s1145 = scalar_lea.vmem [#allocation3], %s1144
        %p1146 = scmp.lt.s32.totalorder %s89, 1
        %s1147 = scalar_select %p1146, %s89, 1
        %s1148 = smul.addr %s1147, 4
        %s1149 = smul.addr %s1148, 8
        %s1150 = scalar_lea.vmem %s1, %s1149
        %p1151 = scmp.lt.s32.totalorder %s89, 1
        %s1152 = scalar_select %p1151, %s89, 1
        %s1153 = smul.addr %s1152, 4
        %s1154 = scalar_lea.vmem %s3, %s1153
        %p1155 = scmp.lt.s32.totalorder %s89, 1
        %s1156 = scalar_select %p1155, %s89, 1
        %s1157 = smul.addr %s1156, 8
        %s1158 = scalar_lea.vmem %s5, %s1157
        %v1159 = vld [vmem:[%s1150] sm:$0xff]
        %v1160 = vld [vmem:[%s1150 + $0x8] sm:$0xff]
        %v1161 = vld [vmem:[%s1150 + $0x10] sm:$0xff]
        %v1162 = vld [vmem:[%s1150 + $0x18] sm:$0xff]
        %v1163 = vld [vmem:[%s1154] sm:$0xf]
        %v1164 = vld [vmem:[%s1158] sm:$0xff]
        %v1165 = vld [vmem:[%s7] sm:$0xff]
        %v1166 = vld [vmem:[%s7 + $0x8] sm:$0xff]
        %v1167 = vld [vmem:[%s7 + $0x10] sm:$0xff]
        %v1168 = vld [vmem:[%s7 + $0x18] sm:$0xff]
        %v1169 = vld [vmem:[%s9] sm:$0xff]
        %v1170 = vld [vmem:[%s9 + $0x8] sm:$0xff]
        %v1171 = vld [vmem:[%s9 + $0x10] sm:$0xff]
        %v1172 = vld [vmem:[%s9 + $0x18] sm:$0xff]
        %1174 = vset.pattern.permute.xlu0 0
        %1175 = vperm.xlu0 %1174, %v1169
        %v1176 = vpop.permute.xlu0 %1175
        %1179 = vset.pattern.permute.xlu0 0
        %1180 = vperm.xlu0 %1179, %v1170
        %v1181 = vpop.permute.xlu0 %1180
        %1184 = vset.pattern.permute.xlu0 0
        %1185 = vperm.xlu0 %1184, %v1171
        %v1186 = vpop.permute.xlu0 %1185
        %1189 = vset.pattern.permute.xlu0 0
        %1190 = vperm.xlu0 %1189, %v1172
        %v1191 = vpop.permute.xlu0 %1190
        %vm1193 = vcmask 31744
        %v1195 = vsel %vm1193, %v1165, 0
        %v1198 = vsel %vm1193, %v1166, 0
        %v1201 = vsel %vm1193, %v1167, 0
        %v1204 = vsel %vm1193, %v1168, 0
        %vm1206 = vcmask 1043456
        %v1208 = vsel %vm1206, %v1163, 0
        %1210 = vmatpush.msra.mxu0 0.0
        %1211 = vmatpush.msra.mxu0 0.0
        %1212 = vmatpush.msra.mxu0 0.0
        %1213 = vmatpush.msra.mxu0 0.0
        %1214 = vmatpush.msra.mxu0 0.0
        %1215 = vmatpush.msra.mxu0 0.0
        %1216 = vmatpush.msra.mxu0 0.0
        %1217 = vmatpush.msra.mxu0 0.0
        %1218 = vmatpush.msra.mxu0 0.0
        %1219 = vmatpush.msra.mxu0 0.0
        %1220 = vmatpush.msra.mxu0 0.0
        %1221 = vmatpush.msra.mxu0 0.0
        %1222 = vmatpush.msra.mxu0 0.0
        %1223 = vmatpush.msra.mxu0 0.0
        %1224 = vmatpush.msra.mxu0 0.0
        %1225 = vmatpush.msra.mxu0 %v1208
        %1226 = vmatmul.f32.gmra.mxu0 %v1195
        %v1227 = vpop.f32.mrf.mxu0
        %v1228 = vadd.f32 %v1176, %v1227
        %1229 = vmatmul.f32.gmra.mxu0 %v1198
        %v1230 = vpop.f32.mrf.mxu0
        %v1231 = vadd.f32 %v1181, %v1230
        %1232 = vmatmul.f32.gmra.mxu0 %v1201
        %v1233 = vpop.f32.mrf.mxu0
        %v1234 = vadd.f32 %v1186, %v1233
        %1235 = vmatmul.f32.gmra.mxu0 %v1204
        %v1236 = vpop.f32.mrf.mxu0
        %v1237 = vadd.f32 %v1191, %v1236
        %1238 = vdwg.mxu0
        %1240 = vset.pattern.permute.xlu0 0
        %1241 = vperm.xlu0 %1240, %v1159
        %v1242 = vpop.permute.xlu0 %1241
        %1245 = vset.pattern.permute.xlu0 0
        %1246 = vperm.xlu0 %1245, %v1160
        %v1247 = vpop.permute.xlu0 %1246
        %1250 = vset.pattern.permute.xlu0 0
        %1251 = vperm.xlu0 %1250, %v1161
        %v1252 = vpop.permute.xlu0 %1251
        %1255 = vset.pattern.permute.xlu0 0
        %1256 = vperm.xlu0 %1255, %v1162
        %v1257 = vpop.permute.xlu0 %1256
        %v1259 = vadd.f32 %v1228, %v1242
        %v1260 = vadd.f32 %v1231, %v1247
        %v1261 = vadd.f32 %v1234, %v1252
        %v1262 = vadd.f32 %v1237, %v1257
        %vm1263 = vcmask 15360
        %1264 = vst.msk [vmem:[#allocation2] sm:$0xff] %vm1263, 0.0
        %1265 = vst.msk [vmem:[#allocation2 + $0x8] sm:$0xff] %vm1263, 0.0
        %1266 = vst.msk [vmem:[#allocation2 + $0x10] sm:$0xff] %vm1263, 0.0
        %1267 = vst.msk [vmem:[#allocation2 + $0x18] sm:$0xff] %vm1263, 0.0
        %vm1268 = vcmask 162960
        %1269 = vst.msk [vmem:[#allocation2] sm:$0xff] %vm1268, 0.0
        %1270 = vst.msk [vmem:[#allocation2 + $0x8] sm:$0xff] %vm1268, 0.0
        %1271 = vst.msk [vmem:[#allocation2 + $0x10] sm:$0xff] %vm1268, 0.0
        %1272 = vst.msk [vmem:[#allocation2 + $0x18] sm:$0xff] %vm1268, 0.0
        %v1273 = vld [vmem:[%s15] sm:$0x7]
        %v1274 = vld [vmem:[%s17] sm:$0x7]
        %vm1275 = vcmask 261120
        %v1277 = vsel %vm1275, 1.0, 0
        %1279 = vmatpush.msra.mxu0 0.0
        %1280 = vmatpush.msra.mxu0 0.0
        %1281 = vmatpush.msra.mxu0 0.0
        %1282 = vmatpush.msra.mxu0 0.0
        %1283 = vmatpush.msra.mxu0 0.0
        %1284 = vmatpush.msra.mxu0 0.0
        %1285 = vmatpush.msra.mxu0 0.0
        %1286 = vmatpush.msra.mxu0 0.0
        %1287 = vmatpush.msra.mxu0 0.0
        %1288 = vmatpush.msra.mxu0 0.0
        %1289 = vmatpush.msra.mxu0 0.0
        %1290 = vmatpush.msra.mxu0 0.0
        %1291 = vmatpush.msra.mxu0 %v1262
        %1292 = vmatpush.msra.mxu0 %v1261
        %1293 = vmatpush.msra.mxu0 %v1260
        %1294 = vmatpush.msra.mxu0 %v1259
        %1295 = vmatmul.f32.gmra.mxu0 %v1277
        %v1296 = vpop.f32.mrf.mxu0
        %v1297 = vadd.f32 0.0, %v1296
        %1298 = vdwg.mxu0
        %v1299 = vmul.f32 %v1297, 0.03125
        %v1300 = vperm.slane %v1299, 0
        %v1301 = vsub.f32 %v1259, %v1300
        %v1302 = vsub.f32 %v1260, %v1300
        %v1303 = vsub.f32 %v1261, %v1300
        %v1304 = vsub.f32 %v1262, %v1300
        %v1305 = vmul.f32 %v1301, %v1301
        %v1306 = vmul.f32 %v1302, %v1302
        %v1307 = vmul.f32 %v1303, %v1303
        %v1308 = vmul.f32 %v1304, %v1304
        %1309 = vmatpush.msra.mxu0 0.0
        %1310 = vmatpush.msra.mxu0 0.0
        %1311 = vmatpush.msra.mxu0 0.0
        %1312 = vmatpush.msra.mxu0 0.0
        %1313 = vmatpush.msra.mxu0 0.0
        %1314 = vmatpush.msra.mxu0 0.0
        %1315 = vmatpush.msra.mxu0 0.0
        %1316 = vmatpush.msra.mxu0 0.0
        %1317 = vmatpush.msra.mxu0 0.0
        %1318 = vmatpush.msra.mxu0 0.0
        %1319 = vmatpush.msra.mxu0 0.0
        %1320 = vmatpush.msra.mxu0 0.0
        %1321 = vmatpush.msra.mxu0 %v1308
        %1322 = vmatpush.msra.mxu0 %v1307
        %1323 = vmatpush.msra.mxu0 %v1306
        %1324 = vmatpush.msra.mxu0 %v1305
        %1325 = vmatmul.f32.gmra.mxu0 %v1277
        %v1326 = vpop.f32.mrf.mxu0
        %v1327 = vadd.f32 0.0, %v1326
        %1328 = vdwg.mxu0
        %v1329 = vmul.f32 %v1327, 0.03125
        %v1330 = vadd.f32 %v1329, 1e-05
        %v1331 = vrsqrt.pop %v1330
        %v1332 = vmul.f32 %v1331, %v1330
        %v1333 = vmul.f32 %v1332, %v1331
        %v1334 = vmul.f32 0.5, %v1333
        %v1335 = vsub.f32 1.5, %v1334
        %v1336 = vmul.f32 %v1331, %v1335
        %vm1337 = vweird.f32 %v1330
        %vm1338 = vweird.f32 %v1331
        %vm1339 = vmor %vm1337, %vm1338
        %v1340 = vsel %vm1339, %v1331, %v1336
        %v1341 = vperm.slane %v1340, 0
        %v1342 = vmul.f32 %v1301, %v1341
        %v1343 = vmul.f32 %v1302, %v1341
        %v1344 = vmul.f32 %v1303, %v1341
        %v1345 = vmul.f32 %v1304, %v1341
        %v1346 = vld [vmem:[%s19] sm:$0xff]
        %v1347 = vld [vmem:[%s19 + $0x8] sm:$0xff]
        %v1348 = vld [vmem:[%s19 + $0x10] sm:$0xff]
        %v1349 = vld [vmem:[%s19 + $0x18] sm:$0xff]
        %1351 = vset.pattern.permute.xlu0 0
        %1352 = vperm.xlu0 %1351, %v1346
        %v1353 = vpop.permute.xlu0 %1352
        %1356 = vset.pattern.permute.xlu0 0
        %1357 = vperm.xlu0 %1356, %v1347
        %v1358 = vpop.permute.xlu0 %1357
        %1361 = vset.pattern.permute.xlu0 0
        %1362 = vperm.xlu0 %1361, %v1348
        %v1363 = vpop.permute.xlu0 %1362
        %1366 = vset.pattern.permute.xlu0 0
        %1367 = vperm.xlu0 %1366, %v1349
        %v1368 = vpop.permute.xlu0 %1367
        %v1370 = vmul.f32 %v1342, %v1353
        %v1371 = vmul.f32 %v1343, %v1358
        %v1372 = vmul.f32 %v1344, %v1363
        %v1373 = vmul.f32 %v1345, %v1368
        %v1374 = vld [vmem:[%s21] sm:$0xff]
        %v1375 = vld [vmem:[%s21 + $0x8] sm:$0xff]
        %v1376 = vld [vmem:[%s21 + $0x10] sm:$0xff]
        %v1377 = vld [vmem:[%s21 + $0x18] sm:$0xff]
        %1379 = vset.pattern.permute.xlu0 0
        %1380 = vperm.xlu0 %1379, %v1374
        %v1381 = vpop.permute.xlu0 %1380
        %1384 = vset.pattern.permute.xlu0 0
        %1385 = vperm.xlu0 %1384, %v1375
        %v1386 = vpop.permute.xlu0 %1385
        %1389 = vset.pattern.permute.xlu0 0
        %1390 = vperm.xlu0 %1389, %v1376
        %v1391 = vpop.permute.xlu0 %1390
        %1394 = vset.pattern.permute.xlu0 0
        %1395 = vperm.xlu0 %1394, %v1377
        %v1396 = vpop.permute.xlu0 %1395
        %v1398 = vadd.f32 %v1370, %v1381
        %v1399 = vadd.f32 %v1371, %v1386
        %v1400 = vadd.f32 %v1372, %v1391
        %v1401 = vadd.f32 %v1373, %v1396
        %v1402 = vld [vmem:[%s27] sm:$0xff]
        %v1403 = vld [vmem:[%s27 + $0x8] sm:$0xff]
        %v1404 = vld [vmem:[%s27 + $0x10] sm:$0xff]
        %v1405 = vld [vmem:[%s27 + $0x18] sm:$0xff]
        %1407 = vset.pattern.permute.xlu0 0
        %1408 = vperm.xlu0 %1407, %v1402
        %v1409 = vpop.permute.xlu0 %1408
        %1412 = vset.pattern.permute.xlu0 0
        %1413 = vperm.xlu0 %1412, %v1403
        %v1414 = vpop.permute.xlu0 %1413
        %1417 = vset.pattern.permute.xlu0 0
        %1418 = vperm.xlu0 %1417, %v1404
        %v1419 = vpop.permute.xlu0 %1418
        %1422 = vset.pattern.permute.xlu0 0
        %1423 = vperm.xlu0 %1422, %v1405
        %v1424 = vpop.permute.xlu0 %1423
        %v1426 = vmul.f32 %v1342, %v1409
        %v1427 = vmul.f32 %v1343, %v1414
        %v1428 = vmul.f32 %v1344, %v1419
        %v1429 = vmul.f32 %v1345, %v1424
        %v1430 = vld [vmem:[%s29] sm:$0xff]
        %v1431 = vld [vmem:[%s29 + $0x8] sm:$0xff]
        %v1432 = vld [vmem:[%s29 + $0x10] sm:$0xff]
        %v1433 = vld [vmem:[%s29 + $0x18] sm:$0xff]
        %1435 = vset.pattern.permute.xlu0 0
        %1436 = vperm.xlu0 %1435, %v1430
        %v1437 = vpop.permute.xlu0 %1436
        %1440 = vset.pattern.permute.xlu0 0
        %1441 = vperm.xlu0 %1440, %v1431
        %v1442 = vpop.permute.xlu0 %1441
        %1445 = vset.pattern.permute.xlu0 0
        %1446 = vperm.xlu0 %1445, %v1432
        %v1447 = vpop.permute.xlu0 %1446
        %1450 = vset.pattern.permute.xlu0 0
        %1451 = vperm.xlu0 %1450, %v1433
        %v1452 = vpop.permute.xlu0 %1451
        %v1454 = vadd.f32 %v1426, %v1437
        %v1455 = vadd.f32 %v1427, %v1442
        %v1456 = vadd.f32 %v1428, %v1447
        %v1457 = vadd.f32 %v1429, %v1452
        %1462 = vrot.lane.b32.xlu0 %v1398, 2
        %v1463 = vpop.permute.xlu0 %1462
        %1464 = vrot.lane.b32.xlu0 %v1399, 2
        %v1465 = vpop.permute.xlu0 %1464
        %1466 = vrot.lane.b32.xlu0 %v1400, 2
        %v1467 = vpop.permute.xlu0 %1466
        %1468 = vrot.lane.b32.xlu0 %v1401, 2
        %v1469 = vpop.permute.xlu0 %1468
        %vm1474 = vcmask 146448
        %1475 = vst.msk [vmem:[#allocation2] sm:$0xff] %vm1474, %v1463
        %1476 = vst.msk [vmem:[#allocation2 + $0x8] sm:$0xff] %vm1474, %v1465
        %1477 = vst.msk [vmem:[#allocation2 + $0x10] sm:$0xff] %vm1474, %v1467
        %1478 = vst.msk [vmem:[#allocation2 + $0x18] sm:$0xff] %vm1474, %v1469
        %v1479 = vld [vmem:[%s23] sm:$0xff]
        %v1480 = vld [vmem:[%s23 + $0x8] sm:$0xff]
        %v1481 = vld [vmem:[%s23 + $0x10] sm:$0xff]
        %v1482 = vld [vmem:[%s23 + $0x18] sm:$0xff]
        %v1483 = vld [vmem:[#allocation2] sm:$0xff]
        %v1484 = vld [vmem:[#allocation2 + $0x8] sm:$0xff]
        %v1485 = vld [vmem:[#allocation2 + $0x10] sm:$0xff]
        %v1486 = vld [vmem:[#allocation2 + $0x18] sm:$0xff]
        %s1487 = scalar_lea.vmem %s23, 32
        %v1488 = vld [vmem:[%s1487] sm:$0xff]
        %v1489 = vld [vmem:[%s1487 + $0x8] sm:$0xff]
        %v1490 = vld [vmem:[%s1487 + $0x10] sm:$0xff]
        %v1491 = vld [vmem:[%s1487 + $0x18] sm:$0xff]
        %1496 = vrot.lane.b32.xlu0 %v1483, 126
        %v1497 = vpop.permute.xlu0 %1496
        %1498 = vrot.lane.b32.xlu0 %v1484, 126
        %v1499 = vpop.permute.xlu0 %1498
        %1500 = vrot.lane.b32.xlu0 %v1485, 126
        %v1501 = vpop.permute.xlu0 %1500
        %1502 = vrot.lane.b32.xlu0 %v1486, 126
        %v1503 = vpop.permute.xlu0 %1502
        %v1509 = vsel %vm1275, %v1488, 0
        %v1512 = vsel %vm1275, %v1489, 0
        %v1515 = vsel %vm1275, %v1490, 0
        %v1518 = vsel %vm1275, %v1491, 0
        %1520 = vmatpush.msra.mxu0 0.0
        %1521 = vmatpush.msra.mxu0 0.0
        %1522 = vmatpush.msra.mxu0 0.0
        %1523 = vmatpush.msra.mxu0 0.0
        %1524 = vmatpush.msra.mxu0 0.0
        %1525 = vmatpush.msra.mxu0 0.0
        %1526 = vmatpush.msra.mxu0 0.0
        %1527 = vmatpush.msra.mxu0 0.0
        %1528 = vmatpush.msra.mxu0 0.0
        %1529 = vmatpush.msra.mxu0 0.0
        %1530 = vmatpush.msra.mxu0 0.0
        %1531 = vmatpush.msra.mxu0 0.0
        %1532 = vmatpush.msra.mxu0 %v1503
        %1533 = vmatpush.msra.mxu0 %v1501
        %1534 = vmatpush.msra.mxu0 %v1499
        %1535 = vmatpush.msra.mxu0 %v1497
        %1536 = vmatmul.f32.gmra.mxu0 %v1509
        %v1537 = vpop.f32.mrf.mxu0
        %v1538 = vadd.f32 0.0, %v1537
        %1539 = vmatmul.f32.gmra.mxu0 %v1512
        %v1540 = vpop.f32.mrf.mxu0
        %v1541 = vadd.f32 0.0, %v1540
        %1542 = vmatmul.f32.gmra.mxu0 %v1515
        %v1543 = vpop.f32.mrf.mxu0
        %v1544 = vadd.f32 0.0, %v1543
        %1545 = vmatmul.f32.gmra.mxu0 %v1518
        %v1546 = vpop.f32.mrf.mxu0
        %v1547 = vadd.f32 0.0, %v1546
        %1548 = vdwg.mxu0
        %1549 = vrot.lane.b32.xlu0 %v1483, 127
        %v1550 = vpop.permute.xlu0 %1549
        %1551 = vrot.lane.b32.xlu0 %v1484, 127
        %v1552 = vpop.permute.xlu0 %1551
        %1553 = vrot.lane.b32.xlu0 %v1485, 127
        %v1554 = vpop.permute.xlu0 %1553
        %1555 = vrot.lane.b32.xlu0 %v1486, 127
        %v1556 = vpop.permute.xlu0 %1555
        %v1562 = vsel %vm1275, %v1479, 0
        %v1565 = vsel %vm1275, %v1480, 0
        %v1568 = vsel %vm1275, %v1481, 0
        %v1571 = vsel %vm1275, %v1482, 0
        %1573 = vmatpush.msra.mxu0 0.0
        %1574 = vmatpush.msra.mxu0 0.0
        %1575 = vmatpush.msra.mxu0 0.0
        %1576 = vmatpush.msra.mxu0 0.0
        %1577 = vmatpush.msra.mxu0 0.0
        %1578 = vmatpush.msra.mxu0 0.0
        %1579 = vmatpush.msra.mxu0 0.0
        %1580 = vmatpush.msra.mxu0 0.0
        %1581 = vmatpush.msra.mxu0 0.0
        %1582 = vmatpush.msra.mxu0 0.0
        %1583 = vmatpush.msra.mxu0 0.0
        %1584 = vmatpush.msra.mxu0 0.0
        %1585 = vmatpush.msra.mxu0 %v1556
        %1586 = vmatpush.msra.mxu0 %v1554
        %1587 = vmatpush.msra.mxu0 %v1552
        %1588 = vmatpush.msra.mxu0 %v1550
        %1589 = vmatmul.f32.gmra.mxu0 %v1562
        %v1590 = vpop.f32.mrf.mxu0
        %v1591 = vadd.f32 %v1538, %v1590
        %1592 = vmatmul.f32.gmra.mxu0 %v1565
        %v1593 = vpop.f32.mrf.mxu0
        %v1594 = vadd.f32 %v1541, %v1593
        %1595 = vmatmul.f32.gmra.mxu0 %v1568
        %v1596 = vpop.f32.mrf.mxu0
        %v1597 = vadd.f32 %v1544, %v1596
        %1598 = vmatmul.f32.gmra.mxu0 %v1571
        %v1599 = vpop.f32.mrf.mxu0
        %v1600 = vadd.f32 %v1547, %v1599
        %1601 = vdwg.mxu0
        %s1602 = scalar_lea.vmem %s23, 64
        %v1603 = vld [vmem:[%s1602] sm:$0xff]
        %v1604 = vld [vmem:[%s1602 + $0x8] sm:$0xff]
        %v1605 = vld [vmem:[%s1602 + $0x10] sm:$0xff]
        %v1606 = vld [vmem:[%s1602 + $0x18] sm:$0xff]
        %1607 = vrot.lane.b32.xlu0 %v1483, 125
        %v1608 = vpop.permute.xlu0 %1607
        %1609 = vrot.lane.b32.xlu0 %v1484, 125
        %v1610 = vpop.permute.xlu0 %1609
        %1611 = vrot.lane.b32.xlu0 %v1485, 125
        %v1612 = vpop.permute.xlu0 %1611
        %1613 = vrot.lane.b32.xlu0 %v1486, 125
        %v1614 = vpop.permute.xlu0 %1613
        %v1620 = vsel %vm1275, %v1603, 0
        %v1623 = vsel %vm1275, %v1604, 0
        %v1626 = vsel %vm1275, %v1605, 0
        %v1629 = vsel %vm1275, %v1606, 0
        %1631 = vmatpush.msra.mxu0 0.0
        %1632 = vmatpush.msra.mxu0 0.0
        %1633 = vmatpush.msra.mxu0 0.0
        %1634 = vmatpush.msra.mxu0 0.0
        %1635 = vmatpush.msra.mxu0 0.0
        %1636 = vmatpush.msra.mxu0 0.0
        %1637 = vmatpush.msra.mxu0 0.0
        %1638 = vmatpush.msra.mxu0 0.0
        %1639 = vmatpush.msra.mxu0 0.0
        %1640 = vmatpush.msra.mxu0 0.0
        %1641 = vmatpush.msra.mxu0 0.0
        %1642 = vmatpush.msra.mxu0 0.0
        %1643 = vmatpush.msra.mxu0 %v1614
        %1644 = vmatpush.msra.mxu0 %v1612
        %1645 = vmatpush.msra.mxu0 %v1610
        %1646 = vmatpush.msra.mxu0 %v1608
        %1647 = vmatmul.f32.gmra.mxu0 %v1620
        %v1648 = vpop.f32.mrf.mxu0
        %v1649 = vadd.f32 0.0, %v1648
        %1650 = vmatmul.f32.gmra.mxu0 %v1623
        %v1651 = vpop.f32.mrf.mxu0
        %v1652 = vadd.f32 0.0, %v1651
        %1653 = vmatmul.f32.gmra.mxu0 %v1626
        %v1654 = vpop.f32.mrf.mxu0
        %v1655 = vadd.f32 0.0, %v1654
        %1656 = vmatmul.f32.gmra.mxu0 %v1629
        %v1657 = vpop.f32.mrf.mxu0
        %v1658 = vadd.f32 0.0, %v1657
        %1659 = vdwg.mxu0
        %v1660 = vadd.f32 %v1591, %v1649
        %v1661 = vadd.f32 %v1594, %v1652
        %v1662 = vadd.f32 %v1597, %v1655
        %v1663 = vadd.f32 %v1600, %v1658
        %v1664 = vld [vmem:[%s25] sm:$0xff]
        %v1665 = vld [vmem:[%s25 + $0x8] sm:$0xff]
        %v1666 = vld [vmem:[%s25 + $0x10] sm:$0xff]
        %v1667 = vld [vmem:[%s25 + $0x18] sm:$0xff]
        %1669 = vset.pattern.permute.xlu0 0
        %1670 = vperm.xlu0 %1669, %v1664
        %v1671 = vpop.permute.xlu0 %1670
        %1674 = vset.pattern.permute.xlu0 0
        %1675 = vperm.xlu0 %1674, %v1665
        %v1676 = vpop.permute.xlu0 %1675
        %1679 = vset.pattern.permute.xlu0 0
        %1680 = vperm.xlu0 %1679, %v1666
        %v1681 = vpop.permute.xlu0 %1680
        %1684 = vset.pattern.permute.xlu0 0
        %1685 = vperm.xlu0 %1684, %v1667
        %v1686 = vpop.permute.xlu0 %1685
        %v1688 = vadd.f32 %v1660, %v1671
        %v1689 = vadd.f32 %v1661, %v1676
        %v1690 = vadd.f32 %v1662, %v1681
        %v1691 = vadd.f32 %v1663, %v1686
        %v1692 = vld [vmem:[%s31] sm:$0xff]
        %v1693 = vld [vmem:[%s31 + $0x8] sm:$0xff]
        %v1694 = vld [vmem:[%s31 + $0x10] sm:$0xff]
        %v1695 = vld [vmem:[%s31 + $0x18] sm:$0xff]
        %v1696 = vld [vmem:[%s31 + $0x20] sm:$0xff]
        %v1697 = vld [vmem:[%s31 + $0x28] sm:$0xff]
        %v1698 = vld [vmem:[%s31 + $0x30] sm:$0xff]
        %v1699 = vld [vmem:[%s31 + $0x38] sm:$0xff]
        %v1700 = vld [vmem:[%s31 + $0x40] sm:$0xff]
        %v1701 = vld [vmem:[%s31 + $0x48] sm:$0xff]
        %v1702 = vld [vmem:[%s31 + $0x50] sm:$0xff]
        %v1703 = vld [vmem:[%s31 + $0x58] sm:$0xff]
        %v1704 = vld [vmem:[%s33] sm:$0xff]
        %v1705 = vld [vmem:[%s33 + $0x8] sm:$0xff]
        %v1706 = vld [vmem:[%s33 + $0x10] sm:$0xff]
        %v1707 = vld [vmem:[%s33 + $0x18] sm:$0xff]
        %v1708 = vld [vmem:[%s33 + $0x20] sm:$0xff]
        %v1709 = vld [vmem:[%s33 + $0x28] sm:$0xff]
        %v1710 = vld [vmem:[%s33 + $0x30] sm:$0xff]
        %v1711 = vld [vmem:[%s33 + $0x38] sm:$0xff]
        %v1712 = vld [vmem:[%s33 + $0x40] sm:$0xff]
        %v1713 = vld [vmem:[%s33 + $0x48] sm:$0xff]
        %v1714 = vld [vmem:[%s33 + $0x50] sm:$0xff]
        %v1715 = vld [vmem:[%s33 + $0x58] sm:$0xff]
        %1717 = vset.pattern.permute.xlu0 0
        %1718 = vperm.xlu0 %1717, %v1704
        %v1719 = vpop.permute.xlu0 %1718
        %1722 = vset.pattern.permute.xlu0 0
        %1723 = vperm.xlu0 %1722, %v1705
        %v1724 = vpop.permute.xlu0 %1723
        %1727 = vset.pattern.permute.xlu0 0
        %1728 = vperm.xlu0 %1727, %v1706
        %v1729 = vpop.permute.xlu0 %1728
        %1732 = vset.pattern.permute.xlu0 0
        %1733 = vperm.xlu0 %1732, %v1707
        %v1734 = vpop.permute.xlu0 %1733
        %1737 = vset.pattern.permute.xlu0 0
        %1738 = vperm.xlu0 %1737, %v1708
        %v1739 = vpop.permute.xlu0 %1738
        %1742 = vset.pattern.permute.xlu0 0
        %1743 = vperm.xlu0 %1742, %v1709
        %v1744 = vpop.permute.xlu0 %1743
        %1747 = vset.pattern.permute.xlu0 0
        %1748 = vperm.xlu0 %1747, %v1710
        %v1749 = vpop.permute.xlu0 %1748
        %1752 = vset.pattern.permute.xlu0 0
        %1753 = vperm.xlu0 %1752, %v1711
        %v1754 = vpop.permute.xlu0 %1753
        %1757 = vset.pattern.permute.xlu0 0
        %1758 = vperm.xlu0 %1757, %v1712
        %v1759 = vpop.permute.xlu0 %1758
        %1762 = vset.pattern.permute.xlu0 0
        %1763 = vperm.xlu0 %1762, %v1713
        %v1764 = vpop.permute.xlu0 %1763
        %1767 = vset.pattern.permute.xlu0 0
        %1768 = vperm.xlu0 %1767, %v1714
        %v1769 = vpop.permute.xlu0 %1768
        %1772 = vset.pattern.permute.xlu0 0
        %1773 = vperm.xlu0 %1772, %v1715
        %v1774 = vpop.permute.xlu0 %1773
        %vm1776 = vcmask 326656
        %v1778 = vsel %vm1776, %v1692, 0
        %v1781 = vsel %vm1776, %v1693, 0
        %v1784 = vsel %vm1776, %v1694, 0
        %v1787 = vsel %vm1776, %v1695, 0
        %v1790 = vsel %vm1776, %v1696, 0
        %v1793 = vsel %vm1776, %v1697, 0
        %v1796 = vsel %vm1776, %v1698, 0
        %v1799 = vsel %vm1776, %v1699, 0
        %v1802 = vsel %vm1776, %v1700, 0
        %v1805 = vsel %vm1776, %v1701, 0
        %v1808 = vsel %vm1776, %v1702, 0
        %v1811 = vsel %vm1776, %v1703, 0
        %1813 = vmatpush.msra.mxu0 0.0
        %1814 = vmatpush.msra.mxu0 0.0
        %1815 = vmatpush.msra.mxu0 0.0
        %1816 = vmatpush.msra.mxu0 0.0
        %1817 = vmatpush.msra.mxu0 0.0
        %1818 = vmatpush.msra.mxu0 0.0
        %1819 = vmatpush.msra.mxu0 0.0
        %1820 = vmatpush.msra.mxu0 0.0
        %1821 = vmatpush.msra.mxu0 0.0
        %1822 = vmatpush.msra.mxu0 0.0
        %1823 = vmatpush.msra.mxu0 0.0
        %1824 = vmatpush.msra.mxu0 %v1164
        %1825 = vmatpush.msra.mxu0 %v1457
        %1826 = vmatpush.msra.mxu0 %v1456
        %1827 = vmatpush.msra.mxu0 %v1455
        %1828 = vmatpush.msra.mxu0 %v1454
        %1829 = vmatmul.f32.gmra.mxu0 %v1778
        %v1830 = vpop.f32.mrf.mxu0
        %v1831 = vadd.f32 %v1719, %v1830
        %1832 = vmatmul.f32.gmra.mxu0 %v1781
        %v1833 = vpop.f32.mrf.mxu0
        %v1834 = vadd.f32 %v1724, %v1833
        %1835 = vmatmul.f32.gmra.mxu0 %v1784
        %v1836 = vpop.f32.mrf.mxu0
        %v1837 = vadd.f32 %v1729, %v1836
        %1838 = vmatmul.f32.gmra.mxu0 %v1787
        %v1839 = vpop.f32.mrf.mxu0
        %v1840 = vadd.f32 %v1734, %v1839
        %1841 = vmatmul.f32.gmra.mxu0 %v1790
        %v1842 = vpop.f32.mrf.mxu0
        %v1843 = vadd.f32 %v1739, %v1842
        %1844 = vmatmul.f32.gmra.mxu0 %v1793
        %v1845 = vpop.f32.mrf.mxu0
        %v1846 = vadd.f32 %v1744, %v1845
        %1847 = vmatmul.f32.gmra.mxu0 %v1796
        %v1848 = vpop.f32.mrf.mxu0
        %v1849 = vadd.f32 %v1749, %v1848
        %1850 = vmatmul.f32.gmra.mxu0 %v1799
        %v1851 = vpop.f32.mrf.mxu0
        %v1852 = vadd.f32 %v1754, %v1851
        %1853 = vmatmul.f32.gmra.mxu0 %v1802
        %v1854 = vpop.f32.mrf.mxu0
        %v1855 = vadd.f32 %v1759, %v1854
        %1856 = vmatmul.f32.gmra.mxu0 %v1805
        %v1857 = vpop.f32.mrf.mxu0
        %v1858 = vadd.f32 %v1764, %v1857
        %1859 = vmatmul.f32.gmra.mxu0 %v1808
        %v1860 = vpop.f32.mrf.mxu0
        %v1861 = vadd.f32 %v1769, %v1860
        %1862 = vmatmul.f32.gmra.mxu0 %v1811
        %v1863 = vpop.f32.mrf.mxu0
        %v1864 = vadd.f32 %v1774, %v1863
        %1865 = vdwg.mxu0
        %1870 = vrot.lane.b32.xlu0 %v1843, 2
        %v1871 = vpop.permute.xlu0 %1870
        %1872 = vrot.lane.b32.xlu0 %v1846, 2
        %v1873 = vpop.permute.xlu0 %1872
        %1874 = vrot.lane.b32.xlu0 %v1849, 2
        %v1875 = vpop.permute.xlu0 %1874
        %1876 = vrot.lane.b32.xlu0 %v1852, 2
        %v1877 = vpop.permute.xlu0 %1876
        %1882 = vst.msk [vmem:[#allocation2] sm:$0xff] %vm1474, %v1871
        %1883 = vst.msk [vmem:[#allocation2 + $0x8] sm:$0xff] %vm1474, %v1873
        %1884 = vst.msk [vmem:[#allocation2 + $0x10] sm:$0xff] %vm1474, %v1875
        %1885 = vst.msk [vmem:[#allocation2 + $0x18] sm:$0xff] %vm1474, %v1877
        %v1886 = vld [vmem:[#allocation2] sm:$0xff]
        %v1887 = vld [vmem:[#allocation2 + $0x8] sm:$0xff]
        %v1888 = vld [vmem:[#allocation2 + $0x10] sm:$0xff]
        %v1889 = vld [vmem:[#allocation2 + $0x18] sm:$0xff]
        %1894 = vrot.lane.b32.xlu0 %v1886, 127
        %v1895 = vpop.permute.xlu0 %1894
        %1896 = vrot.lane.b32.xlu0 %v1887, 127
        %v1897 = vpop.permute.xlu0 %1896
        %1898 = vrot.lane.b32.xlu0 %v1888, 127
        %v1899 = vpop.permute.xlu0 %1898
        %1900 = vrot.lane.b32.xlu0 %v1889, 127
        %v1901 = vpop.permute.xlu0 %1900
        %v1906 = vmul.f32 %v1831, %v1895
        %v1907 = vmul.f32 %v1834, %v1897
        %v1908 = vmul.f32 %v1837, %v1899
        %v1909 = vmul.f32 %v1840, %v1901
        %1910 = vmatpush.msra.mxu0 0.0
        %1911 = vmatpush.msra.mxu0 0.0
        %1912 = vmatpush.msra.mxu0 0.0
        %1913 = vmatpush.msra.mxu0 0.0
        %1914 = vmatpush.msra.mxu0 0.0
        %1915 = vmatpush.msra.mxu0 0.0
        %1916 = vmatpush.msra.mxu0 0.0
        %1917 = vmatpush.msra.mxu0 0.0
        %1918 = vmatpush.msra.mxu0 0.0
        %1919 = vmatpush.msra.mxu0 0.0
        %1920 = vmatpush.msra.mxu0 0.0
        %1921 = vmatpush.msra.mxu0 0.0
        %1922 = vmatpush.msra.mxu0 %v1909
        %1923 = vmatpush.msra.mxu0 %v1908
        %1924 = vmatpush.msra.mxu0 %v1907
        %1925 = vmatpush.msra.mxu0 %v1906
        %1926 = vmatmul.f32.gmra.mxu0 %v1277
        %v1927 = vpop.f32.mrf.mxu0
        %v1928 = vadd.f32 0.0, %v1927
        %1929 = vdwg.mxu0
        %v1930 = vmul.f32 %v1928, 0.17677669
        %v1931 = vadd.f32 %v1930, %v1274
        %1932 = vrot.lane.b32.xlu0 %v1886, 126
        %v1933 = vpop.permute.xlu0 %1932
        %1934 = vrot.lane.b32.xlu0 %v1887, 126
        %v1935 = vpop.permute.xlu0 %1934
        %1936 = vrot.lane.b32.xlu0 %v1888, 126
        %v1937 = vpop.permute.xlu0 %1936
        %1938 = vrot.lane.b32.xlu0 %v1889, 126
        %v1939 = vpop.permute.xlu0 %1938
        %v1944 = vmul.f32 %v1831, %v1933
        %v1945 = vmul.f32 %v1834, %v1935
        %v1946 = vmul.f32 %v1837, %v1937
        %v1947 = vmul.f32 %v1840, %v1939
        %1948 = vmatpush.msra.mxu0 0.0
        %1949 = vmatpush.msra.mxu0 0.0
        %1950 = vmatpush.msra.mxu0 0.0
        %1951 = vmatpush.msra.mxu0 0.0
        %1952 = vmatpush.msra.mxu0 0.0
        %1953 = vmatpush.msra.mxu0 0.0
        %1954 = vmatpush.msra.mxu0 0.0
        %1955 = vmatpush.msra.mxu0 0.0
        %1956 = vmatpush.msra.mxu0 0.0
        %1957 = vmatpush.msra.mxu0 0.0
        %1958 = vmatpush.msra.mxu0 0.0
        %1959 = vmatpush.msra.mxu0 0.0
        %1960 = vmatpush.msra.mxu0 %v1947
        %1961 = vmatpush.msra.mxu0 %v1946
        %1962 = vmatpush.msra.mxu0 %v1945
        %1963 = vmatpush.msra.mxu0 %v1944
        %1964 = vmatmul.f32.gmra.mxu0 %v1277
        %v1965 = vpop.f32.mrf.mxu0
        %v1966 = vadd.f32 0.0, %v1965
        %1967 = vdwg.mxu0
        %v1968 = vmul.f32 %v1966, 0.17677669
        %v1970 = vrot.slane %v1274, 1
        %v1972 = vadd.f32 %v1968, %v1970
        %1973 = vrot.lane.b32.xlu0 %v1886, 125
        %v1974 = vpop.permute.xlu0 %1973
        %1975 = vrot.lane.b32.xlu0 %v1887, 125
        %v1976 = vpop.permute.xlu0 %1975
        %1977 = vrot.lane.b32.xlu0 %v1888, 125
        %v1978 = vpop.permute.xlu0 %1977
        %1979 = vrot.lane.b32.xlu0 %v1889, 125
        %v1980 = vpop.permute.xlu0 %1979
        %v1985 = vmul.f32 %v1831, %v1974
        %v1986 = vmul.f32 %v1834, %v1976
        %v1987 = vmul.f32 %v1837, %v1978
        %v1988 = vmul.f32 %v1840, %v1980
        %1989 = vmatpush.msra.mxu0 0.0
        %1990 = vmatpush.msra.mxu0 0.0
        %1991 = vmatpush.msra.mxu0 0.0
        %1992 = vmatpush.msra.mxu0 0.0
        %1993 = vmatpush.msra.mxu0 0.0
        %1994 = vmatpush.msra.mxu0 0.0
        %1995 = vmatpush.msra.mxu0 0.0
        %1996 = vmatpush.msra.mxu0 0.0
        %1997 = vmatpush.msra.mxu0 0.0
        %1998 = vmatpush.msra.mxu0 0.0
        %1999 = vmatpush.msra.mxu0 0.0
        %2000 = vmatpush.msra.mxu0 0.0
        %2001 = vmatpush.msra.mxu0 %v1988
        %2002 = vmatpush.msra.mxu0 %v1987
        %2003 = vmatpush.msra.mxu0 %v1986
        %2004 = vmatpush.msra.mxu0 %v1985
        %2005 = vmatmul.f32.gmra.mxu0 %v1277
        %v2006 = vpop.f32.mrf.mxu0
        %v2007 = vadd.f32 0.0, %v2006
        %2008 = vdwg.mxu0
        %v2009 = vmul.f32 %v2007, 0.17677669
        %v2010 = vrot.slane %v1274, 2
        %v2012 = vadd.f32 %v2009, %v2010
        %v2013 = vmax.f32 %v1931, %v1972
        %v2014 = vmax.f32 %v2013, %v2012
        %v2015 = vsub.f32 %v1931, %v2014
        %v2016 = vmul.f32 %v2015, 1.442695
        %v2017 = vpow.pop %v2016
        %v2018 = vsub.f32 %v1972, %v2014
        %v2019 = vmul.f32 %v2018, 1.442695
        %v2020 = vpow.pop %v2019
        %v2021 = vsub.f32 %v2012, %v2014
        %v2022 = vmul.f32 %v2021, 1.442695
        %v2023 = vpow.pop %v2022
        %v2024 = vadd.f32 %v2017, %v2020
        %v2025 = vadd.f32 %v2024, %v2023
        %v2026 = vrcp.pop %v2025
        %v2027 = vmul.f32 %v2025, %v2026
        %v2028 = vsub.f32 1.0, %v2027
        %v2029 = vmul.f32 %v2026, %v2028
        %v2030 = vadd.f32 %v2026, %v2029
        %vm2031 = vweird.f32 %v2025
        %vm2032 = vweird.f32 %v2026
        %vm2033 = vmor %vm2031, %vm2032
        %v2034 = vsel %vm2033, %v2026, %v2030
        %v2035 = vand.u32 2147483647, %v2025
        %vm2036 = vcmp.eq.f32.partialorder %v2035, 8.507059e+37
        %v2037 = vand.u32 %v2025, 2147483648
        %v2038 = vor.u32 1.1754944e-38, %v2037
        %v2039 = vsel %vm2036, %v2038, %v2034
        %v2040 = vmul.f32 %v2017, %v2039
        %v2041 = vmul.f32 %v2040, %v1273
        %v2042 = vmul.f32 %v2020, %v2039
        %v2044 = vrot.slane %v1273, 1
        %v2046 = vmul.f32 %v2042, %v2044
        %v2047 = vmul.f32 %v2023, %v2039
        %v2048 = vrot.slane %v1273, 2
        %v2050 = vmul.f32 %v2047, %v2048
        %2055 = vrot.lane.b32.xlu0 %v1855, 2
        %v2056 = vpop.permute.xlu0 %2055
        %2057 = vrot.lane.b32.xlu0 %v1858, 2
        %v2058 = vpop.permute.xlu0 %2057
        %2059 = vrot.lane.b32.xlu0 %v1861, 2
        %v2060 = vpop.permute.xlu0 %2059
        %2061 = vrot.lane.b32.xlu0 %v1864, 2
        %v2062 = vpop.permute.xlu0 %2061
        %2067 = vst.msk [vmem:[#allocation2] sm:$0xff] %vm1474, %v2056
        %2068 = vst.msk [vmem:[#allocation2 + $0x8] sm:$0xff] %vm1474, %v2058
        %2069 = vst.msk [vmem:[#allocation2 + $0x10] sm:$0xff] %vm1474, %v2060
        %2070 = vst.msk [vmem:[#allocation2 + $0x18] sm:$0xff] %vm1474, %v2062
        %v2071 = vld [vmem:[#allocation2] sm:$0xff]
        %v2072 = vld [vmem:[#allocation2 + $0x8] sm:$0xff]
        %v2073 = vld [vmem:[#allocation2 + $0x10] sm:$0xff]
        %v2074 = vld [vmem:[#allocation2 + $0x18] sm:$0xff]
        %v2075 = vperm.slane %v2041, 0
        %2080 = vrot.lane.b32.xlu0 %v2071, 127
        %v2081 = vpop.permute.xlu0 %2080
        %2082 = vrot.lane.b32.xlu0 %v2072, 127
        %v2083 = vpop.permute.xlu0 %2082
        %2084 = vrot.lane.b32.xlu0 %v2073, 127
        %v2085 = vpop.permute.xlu0 %2084
        %2086 = vrot.lane.b32.xlu0 %v2074, 127
        %v2087 = vpop.permute.xlu0 %2086
        %v2092 = vmul.f32 %v2075, %v2081
        %v2093 = vmul.f32 %v2075, %v2083
        %v2094 = vmul.f32 %v2075, %v2085
        %v2095 = vmul.f32 %v2075, %v2087
        %v2096 = vadd.f32 %v2092, 0.0
        %v2097 = vadd.f32 %v2093, 0.0
        %v2098 = vadd.f32 %v2094, 0.0
        %v2099 = vadd.f32 %v2095, 0.0
        %v2100 = vperm.slane %v2046, 0
        %2101 = vrot.lane.b32.xlu0 %v2071, 126
        %v2102 = vpop.permute.xlu0 %2101
        %2103 = vrot.lane.b32.xlu0 %v2072, 126
        %v2104 = vpop.permute.xlu0 %2103
        %2105 = vrot.lane.b32.xlu0 %v2073, 126
        %v2106 = vpop.permute.xlu0 %2105
        %2107 = vrot.lane.b32.xlu0 %v2074, 126
        %v2108 = vpop.permute.xlu0 %2107
        %v2113 = vmul.f32 %v2100, %v2102
        %v2114 = vmul.f32 %v2100, %v2104
        %v2115 = vmul.f32 %v2100, %v2106
        %v2116 = vmul.f32 %v2100, %v2108
        %v2117 = vadd.f32 %v2096, %v2113
        %v2118 = vadd.f32 %v2097, %v2114
        %v2119 = vadd.f32 %v2098, %v2115
        %v2120 = vadd.f32 %v2099, %v2116
        %v2121 = vperm.slane %v2050, 0
        %2122 = vrot.lane.b32.xlu0 %v2071, 125
        %v2123 = vpop.permute.xlu0 %2122
        %2124 = vrot.lane.b32.xlu0 %v2072, 125
        %v2125 = vpop.permute.xlu0 %2124
        %2126 = vrot.lane.b32.xlu0 %v2073, 125
        %v2127 = vpop.permute.xlu0 %2126
        %2128 = vrot.lane.b32.xlu0 %v2074, 125
        %v2129 = vpop.permute.xlu0 %2128
        %v2134 = vmul.f32 %v2121, %v2123
        %v2135 = vmul.f32 %v2121, %v2125
        %v2136 = vmul.f32 %v2121, %v2127
        %v2137 = vmul.f32 %v2121, %v2129
        %v2138 = vadd.f32 %v2117, %v2134
        %v2139 = vadd.f32 %v2118, %v2135
        %v2140 = vadd.f32 %v2119, %v2136
        %v2141 = vadd.f32 %v2120, %v2137
        %v2142 = vadd.f32 %v1688, %v2138
        %v2143 = vadd.f32 %v1689, %v2139
        %v2144 = vadd.f32 %v1690, %v2140
        %v2145 = vadd.f32 %v1691, %v2141
        %2146 = vmatpush.msra.mxu0 0.0
        %2147 = vmatpush.msra.mxu0 0.0
        %2148 = vmatpush.msra.mxu0 0.0
        %2149 = vmatpush.msra.mxu0 0.0
        %2150 = vmatpush.msra.mxu0 0.0
        %2151 = vmatpush.msra.mxu0 0.0
        %2152 = vmatpush.msra.mxu0 0.0
        %2153 = vmatpush.msra.mxu0 0.0
        %2154 = vmatpush.msra.mxu0 0.0
        %2155 = vmatpush.msra.mxu0 0.0
        %2156 = vmatpush.msra.mxu0 0.0
        %2157 = vmatpush.msra.mxu0 0.0
        %2158 = vmatpush.msra.mxu0 %v2145
        %2159 = vmatpush.msra.mxu0 %v2144
        %2160 = vmatpush.msra.mxu0 %v2143
        %2161 = vmatpush.msra.mxu0 %v2142
        %2162 = vmatmul.f32.gmra.mxu0 %v1277
        %v2163 = vpop.f32.mrf.mxu0
        %v2164 = vadd.f32 0.0, %v2163
        %2165 = vdwg.mxu0
        %v2166 = vmul.f32 %v2164, 0.03125
        %v2167 = vperm.slane %v2166, 0
        %v2168 = vsub.f32 %v2142, %v2167
        %v2169 = vsub.f32 %v2143, %v2167
        %v2170 = vsub.f32 %v2144, %v2167
        %v2171 = vsub.f32 %v2145, %v2167
        %v2172 = vmul.f32 %v2168, %v2168
        %v2173 = vmul.f32 %v2169, %v2169
        %v2174 = vmul.f32 %v2170, %v2170
        %v2175 = vmul.f32 %v2171, %v2171
        %2176 = vmatpush.msra.mxu0 0.0
        %2177 = vmatpush.msra.mxu0 0.0
        %2178 = vmatpush.msra.mxu0 0.0
        %2179 = vmatpush.msra.mxu0 0.0
        %2180 = vmatpush.msra.mxu0 0.0
        %2181 = vmatpush.msra.mxu0 0.0
        %2182 = vmatpush.msra.mxu0 0.0
        %2183 = vmatpush.msra.mxu0 0.0
        %2184 = vmatpush.msra.mxu0 0.0
        %2185 = vmatpush.msra.mxu0 0.0
        %2186 = vmatpush.msra.mxu0 0.0
        %2187 = vmatpush.msra.mxu0 0.0
        %2188 = vmatpush.msra.mxu0 %v2175
        %2189 = vmatpush.msra.mxu0 %v2174
        %2190 = vmatpush.msra.mxu0 %v2173
        %2191 = vmatpush.msra.mxu0 %v2172
        %2192 = vmatmul.f32.gmra.mxu0 %v1277
        %v2193 = vpop.f32.mrf.mxu0
        %v2194 = vadd.f32 0.0, %v2193
        %2195 = vdwg.mxu0
        %v2196 = vmul.f32 %v2194, 0.03125
        %v2197 = vadd.f32 %v2196, 1e-05
        %v2198 = vrsqrt.pop %v2197
        %v2199 = vmul.f32 %v2198, %v2197
        %v2200 = vmul.f32 %v2199, %v2198
        %v2201 = vmul.f32 0.5, %v2200
        %v2202 = vsub.f32 1.5, %v2201
        %v2203 = vmul.f32 %v2198, %v2202
        %vm2204 = vweird.f32 %v2197
        %vm2205 = vweird.f32 %v2198
        %vm2206 = vmor %vm2204, %vm2205
        %v2207 = vsel %vm2206, %v2198, %v2203
        %v2208 = vperm.slane %v2207, 0
        %v2209 = vmul.f32 %v2168, %v2208
        %v2210 = vmul.f32 %v2169, %v2208
        %v2211 = vmul.f32 %v2170, %v2208
        %v2212 = vmul.f32 %v2171, %v2208
        %v2213 = vld [vmem:[%s35] sm:$0xff]
        %v2214 = vld [vmem:[%s35 + $0x8] sm:$0xff]
        %v2215 = vld [vmem:[%s35 + $0x10] sm:$0xff]
        %v2216 = vld [vmem:[%s35 + $0x18] sm:$0xff]
        %2218 = vset.pattern.permute.xlu0 0
        %2219 = vperm.xlu0 %2218, %v2213
        %v2220 = vpop.permute.xlu0 %2219
        %2223 = vset.pattern.permute.xlu0 0
        %2224 = vperm.xlu0 %2223, %v2214
        %v2225 = vpop.permute.xlu0 %2224
        %2228 = vset.pattern.permute.xlu0 0
        %2229 = vperm.xlu0 %2228, %v2215
        %v2230 = vpop.permute.xlu0 %2229
        %2233 = vset.pattern.permute.xlu0 0
        %2234 = vperm.xlu0 %2233, %v2216
        %v2235 = vpop.permute.xlu0 %2234
        %v2237 = vmul.f32 %v2209, %v2220
        %v2238 = vmul.f32 %v2210, %v2225
        %v2239 = vmul.f32 %v2211, %v2230
        %v2240 = vmul.f32 %v2212, %v2235
        %v2241 = vld [vmem:[%s37] sm:$0xff]
        %v2242 = vld [vmem:[%s37 + $0x8] sm:$0xff]
        %v2243 = vld [vmem:[%s37 + $0x10] sm:$0xff]
        %v2244 = vld [vmem:[%s37 + $0x18] sm:$0xff]
        %2246 = vset.pattern.permute.xlu0 0
        %2247 = vperm.xlu0 %2246, %v2241
        %v2248 = vpop.permute.xlu0 %2247
        %2251 = vset.pattern.permute.xlu0 0
        %2252 = vperm.xlu0 %2251, %v2242
        %v2253 = vpop.permute.xlu0 %2252
        %2256 = vset.pattern.permute.xlu0 0
        %2257 = vperm.xlu0 %2256, %v2243
        %v2258 = vpop.permute.xlu0 %2257
        %2261 = vset.pattern.permute.xlu0 0
        %2262 = vperm.xlu0 %2261, %v2244
        %v2263 = vpop.permute.xlu0 %2262
        %v2265 = vadd.f32 %v2237, %v2248
        %v2266 = vadd.f32 %v2238, %v2253
        %v2267 = vadd.f32 %v2239, %v2258
        %v2268 = vadd.f32 %v2240, %v2263
        %v2269 = vld [vmem:[%s39] sm:$0xff]
        %v2270 = vld [vmem:[%s39 + $0x8] sm:$0xff]
        %v2271 = vld [vmem:[%s39 + $0x10] sm:$0xff]
        %v2272 = vld [vmem:[%s39 + $0x18] sm:$0xff]
        %v2273 = vld [vmem:[%s41] sm:$0xff]
        %v2274 = vld [vmem:[%s41 + $0x8] sm:$0xff]
        %v2275 = vld [vmem:[%s41 + $0x10] sm:$0xff]
        %v2276 = vld [vmem:[%s41 + $0x18] sm:$0xff]
        %2278 = vset.pattern.permute.xlu0 0
        %2279 = vperm.xlu0 %2278, %v2273
        %v2280 = vpop.permute.xlu0 %2279
        %2283 = vset.pattern.permute.xlu0 0
        %2284 = vperm.xlu0 %2283, %v2274
        %v2285 = vpop.permute.xlu0 %2284
        %2288 = vset.pattern.permute.xlu0 0
        %2289 = vperm.xlu0 %2288, %v2275
        %v2290 = vpop.permute.xlu0 %2289
        %2293 = vset.pattern.permute.xlu0 0
        %2294 = vperm.xlu0 %2293, %v2276
        %v2295 = vpop.permute.xlu0 %2294
        %v2298 = vsel %vm1275, %v2269, 0
        %v2301 = vsel %vm1275, %v2270, 0
        %v2304 = vsel %vm1275, %v2271, 0
        %v2307 = vsel %vm1275, %v2272, 0
        %2309 = vmatpush.msra.mxu0 0.0
        %2310 = vmatpush.msra.mxu0 0.0
        %2311 = vmatpush.msra.mxu0 0.0
        %2312 = vmatpush.msra.mxu0 0.0
        %2313 = vmatpush.msra.mxu0 0.0
        %2314 = vmatpush.msra.mxu0 0.0
        %2315 = vmatpush.msra.mxu0 0.0
        %2316 = vmatpush.msra.mxu0 0.0
        %2317 = vmatpush.msra.mxu0 0.0
        %2318 = vmatpush.msra.mxu0 0.0
        %2319 = vmatpush.msra.mxu0 0.0
        %2320 = vmatpush.msra.mxu0 0.0
        %2321 = vmatpush.msra.mxu0 %v2268
        %2322 = vmatpush.msra.mxu0 %v2267
        %2323 = vmatpush.msra.mxu0 %v2266
        %2324 = vmatpush.msra.mxu0 %v2265
        %2325 = vmatmul.f32.gmra.mxu0 %v2298
        %v2326 = vpop.f32.mrf.mxu0
        %v2327 = vadd.f32 %v2280, %v2326
        %2328 = vmatmul.f32.gmra.mxu0 %v2301
        %v2329 = vpop.f32.mrf.mxu0
        %v2330 = vadd.f32 %v2285, %v2329
        %2331 = vmatmul.f32.gmra.mxu0 %v2304
        %v2332 = vpop.f32.mrf.mxu0
        %v2333 = vadd.f32 %v2290, %v2332
        %2334 = vmatmul.f32.gmra.mxu0 %v2307
        %v2335 = vpop.f32.mrf.mxu0
        %v2336 = vadd.f32 %v2295, %v2335
        %2337 = vdwg.mxu0
        %v2338 = vmul.f32 %v2327, 0.5
        %v2339 = vmul.f32 %v2330, 0.5
        %v2340 = vmul.f32 %v2333, 0.5
        %v2341 = vmul.f32 %v2336, 0.5
        %v2342 = vmul.f32 %v2327, 0.70710677
        %v2343 = vmul.f32 %v2330, 0.70710677
        %v2344 = vmul.f32 %v2333, 0.70710677
        %v2345 = vmul.f32 %v2336, 0.70710677
        %v2346 = vmul.f32 %v2342, %v2342
        %v2347 = vmin.f32 16.0, %v2346
        %v2348 = vmul.f32 %v2347, 2.1237322e-06
        %v2349 = vadd.f32 %v2348, 0.00028619796
        %v2350 = vmul.f32 %v2347, %v2349
        %v2351 = vadd.f32 %v2350, 0.0036580483
        %v2352 = vmul.f32 %v2347, %v2351
        %v2353 = vadd.f32 %v2352, 0.05243302
        %v2354 = vmul.f32 %v2347, %v2353
        %v2355 = vadd.f32 %v2354, 0.18741608
        %v2356 = vmul.f32 %v2347, %v2355
        %v2357 = vadd.f32 %v2356, 1.1283791
        %v2358 = vmul.f32 %v2342, %v2357
        %v2359 = vmul.f32 %v2347, 3.8918573e-05
        %v2360 = vadd.f32 %v2359, 0.001143296
        %v2361 = vmul.f32 %v2347, %v2360
        %v2362 = vadd.f32 %v2361, 0.014752088
        %v2363 = vmul.f32 %v2347, %v2362
        %v2364 = vadd.f32 %v2363, 0.112945676
        %v2365 = vmul.f32 %v2347, %v2364
        %v2366 = vadd.f32 %v2365, 0.4994258
        %v2367 = vmul.f32 %v2347, %v2366
        %v2368 = vadd.f32 %v2367, 1.0
        %v2369 = vrcp.pop %v2368
        %v2370 = vmul.f32 %v2368, %v2369
        %v2371 = vsub.f32 1.0, %v2370
        %v2372 = vmul.f32 %v2369, %v2371
        %v2373 = vadd.f32 %v2369, %v2372
        %vm2374 = vweird.f32 %v2368
        %vm2375 = vweird.f32 %v2369
        %vm2376 = vmor %vm2374, %vm2375
        %v2377 = vsel %vm2376, %v2369, %v2373
        %v2378 = vand.u32 2147483647, %v2368
        %vm2379 = vcmp.eq.f32.partialorder %v2378, 8.507059e+37
        %v2380 = vand.u32 %v2368, 2147483648
        %v2381 = vor.u32 1.1754944e-38, %v2380
        %v2382 = vsel %vm2379, %v2381, %v2377
        %v2383 = vmul.f32 %v2358, %v2382
        %v2384 = vmin.f32 %v2383, 1.0
        %v2385 = vmax.f32 %v2384, -1.0
        %v2386 = vmul.f32 %v2343, %v2343
        %v2387 = vmin.f32 16.0, %v2386
        %v2388 = vmul.f32 %v2387, 2.1237322e-06
        %v2389 = vadd.f32 %v2388, 0.00028619796
        %v2390 = vmul.f32 %v2387, %v2389
        %v2391 = vadd.f32 %v2390, 0.0036580483
        %v2392 = vmul.f32 %v2387, %v2391
        %v2393 = vadd.f32 %v2392, 0.05243302
        %v2394 = vmul.f32 %v2387, %v2393
        %v2395 = vadd.f32 %v2394, 0.18741608
        %v2396 = vmul.f32 %v2387, %v2395
        %v2397 = vadd.f32 %v2396, 1.1283791
        %v2398 = vmul.f32 %v2343, %v2397
        %v2399 = vmul.f32 %v2387, 3.8918573e-05
        %v2400 = vadd.f32 %v2399, 0.001143296
        %v2401 = vmul.f32 %v2387, %v2400
        %v2402 = vadd.f32 %v2401, 0.014752088
        %v2403 = vmul.f32 %v2387, %v2402
        %v2404 = vadd.f32 %v2403, 0.112945676
        %v2405 = vmul.f32 %v2387, %v2404
        %v2406 = vadd.f32 %v2405, 0.4994258
        %v2407 = vmul.f32 %v2387, %v2406
        %v2408 = vadd.f32 %v2407, 1.0
        %v2409 = vrcp.pop %v2408
        %v2410 = vmul.f32 %v2408, %v2409
        %v2411 = vsub.f32 1.0, %v2410
        %v2412 = vmul.f32 %v2409, %v2411
        %v2413 = vadd.f32 %v2409, %v2412
        %vm2414 = vweird.f32 %v2408
        %vm2415 = vweird.f32 %v2409
        %vm2416 = vmor %vm2414, %vm2415
        %v2417 = vsel %vm2416, %v2409, %v2413
        %v2418 = vand.u32 2147483647, %v2408
        %vm2419 = vcmp.eq.f32.partialorder %v2418, 8.507059e+37
        %v2420 = vand.u32 %v2408, 2147483648
        %v2421 = vor.u32 1.1754944e-38, %v2420
        %v2422 = vsel %vm2419, %v2421, %v2417
        %v2423 = vmul.f32 %v2398, %v2422
        %v2424 = vmin.f32 %v2423, 1.0
        %v2425 = vmax.f32 %v2424, -1.0
        %v2426 = vmul.f32 %v2344, %v2344
        %v2427 = vmin.f32 16.0, %v2426
        %v2428 = vmul.f32 %v2427, 2.1237322e-06
        %v2429 = vadd.f32 %v2428, 0.00028619796
        %v2430 = vmul.f32 %v2427, %v2429
        %v2431 = vadd.f32 %v2430, 0.0036580483
        %v2432 = vmul.f32 %v2427, %v2431
        %v2433 = vadd.f32 %v2432, 0.05243302
        %v2434 = vmul.f32 %v2427, %v2433
        %v2435 = vadd.f32 %v2434, 0.18741608
        %v2436 = vmul.f32 %v2427, %v2435
        %v2437 = vadd.f32 %v2436, 1.1283791
        %v2438 = vmul.f32 %v2344, %v2437
        %v2439 = vmul.f32 %v2427, 3.8918573e-05
        %v2440 = vadd.f32 %v2439, 0.001143296
        %v2441 = vmul.f32 %v2427, %v2440
        %v2442 = vadd.f32 %v2441, 0.014752088
        %v2443 = vmul.f32 %v2427, %v2442
        %v2444 = vadd.f32 %v2443, 0.112945676
        %v2445 = vmul.f32 %v2427, %v2444
        %v2446 = vadd.f32 %v2445, 0.4994258
        %v2447 = vmul.f32 %v2427, %v2446
        %v2448 = vadd.f32 %v2447, 1.0
        %v2449 = vrcp.pop %v2448
        %v2450 = vmul.f32 %v2448, %v2449
        %v2451 = vsub.f32 1.0, %v2450
        %v2452 = vmul.f32 %v2449, %v2451
        %v2453 = vadd.f32 %v2449, %v2452
        %vm2454 = vweird.f32 %v2448
        %vm2455 = vweird.f32 %v2449
        %vm2456 = vmor %vm2454, %vm2455
        %v2457 = vsel %vm2456, %v2449, %v2453
        %v2458 = vand.u32 2147483647, %v2448
        %vm2459 = vcmp.eq.f32.partialorder %v2458, 8.507059e+37
        %v2460 = vand.u32 %v2448, 2147483648
        %v2461 = vor.u32 1.1754944e-38, %v2460
        %v2462 = vsel %vm2459, %v2461, %v2457
        %v2463 = vmul.f32 %v2438, %v2462
        %v2464 = vmin.f32 %v2463, 1.0
        %v2465 = vmax.f32 %v2464, -1.0
        %v2466 = vmul.f32 %v2345, %v2345
        %v2467 = vmin.f32 16.0, %v2466
        %v2468 = vmul.f32 %v2467, 2.1237322e-06
        %v2469 = vadd.f32 %v2468, 0.00028619796
        %v2470 = vmul.f32 %v2467, %v2469
        %v2471 = vadd.f32 %v2470, 0.0036580483
        %v2472 = vmul.f32 %v2467, %v2471
        %v2473 = vadd.f32 %v2472, 0.05243302
        %v2474 = vmul.f32 %v2467, %v2473
        %v2475 = vadd.f32 %v2474, 0.18741608
        %v2476 = vmul.f32 %v2467, %v2475
        %v2477 = vadd.f32 %v2476, 1.1283791
        %v2478 = vmul.f32 %v2345, %v2477
        %v2479 = vmul.f32 %v2467, 3.8918573e-05
        %v2480 = vadd.f32 %v2479, 0.001143296
        %v2481 = vmul.f32 %v2467, %v2480
        %v2482 = vadd.f32 %v2481, 0.014752088
        %v2483 = vmul.f32 %v2467, %v2482
        %v2484 = vadd.f32 %v2483, 0.112945676
        %v2485 = vmul.f32 %v2467, %v2484
        %v2486 = vadd.f32 %v2485, 0.4994258
        %v2487 = vmul.f32 %v2467, %v2486
        %v2488 = vadd.f32 %v2487, 1.0
        %v2489 = vrcp.pop %v2488
        %v2490 = vmul.f32 %v2488, %v2489
        %v2491 = vsub.f32 1.0, %v2490
        %v2492 = vmul.f32 %v2489, %v2491
        %v2493 = vadd.f32 %v2489, %v2492
        %vm2494 = vweird.f32 %v2488
        %vm2495 = vweird.f32 %v2489
        %vm2496 = vmor %vm2494, %vm2495
        %v2497 = vsel %vm2496, %v2489, %v2493
        %v2498 = vand.u32 2147483647, %v2488
        %vm2499 = vcmp.eq.f32.partialorder %v2498, 8.507059e+37
        %v2500 = vand.u32 %v2488, 2147483648
        %v2501 = vor.u32 1.1754944e-38, %v2500
        %v2502 = vsel %vm2499, %v2501, %v2497
        %v2503 = vmul.f32 %v2478, %v2502
        %v2504 = vmin.f32 %v2503, 1.0
        %v2505 = vmax.f32 %v2504, -1.0
        %v2506 = vadd.f32 %v2385, 1.0
        %v2507 = vadd.f32 %v2425, 1.0
        %v2508 = vadd.f32 %v2465, 1.0
        %v2509 = vadd.f32 %v2505, 1.0
        %v2510 = vmul.f32 %v2338, %v2506
        %v2511 = vmul.f32 %v2339, %v2507
        %v2512 = vmul.f32 %v2340, %v2508
        %v2513 = vmul.f32 %v2341, %v2509
        %v2514 = vld [vmem:[%s43] sm:$0xff]
        %v2515 = vld [vmem:[%s43 + $0x8] sm:$0xff]
        %v2516 = vld [vmem:[%s43 + $0x10] sm:$0xff]
        %v2517 = vld [vmem:[%s43 + $0x18] sm:$0xff]
        %v2518 = vld [vmem:[%s45] sm:$0xff]
        %v2519 = vld [vmem:[%s45 + $0x8] sm:$0xff]
        %v2520 = vld [vmem:[%s45 + $0x10] sm:$0xff]
        %v2521 = vld [vmem:[%s45 + $0x18] sm:$0xff]
        %2523 = vset.pattern.permute.xlu0 0
        %2524 = vperm.xlu0 %2523, %v2518
        %v2525 = vpop.permute.xlu0 %2524
        %2528 = vset.pattern.permute.xlu0 0
        %2529 = vperm.xlu0 %2528, %v2519
        %v2530 = vpop.permute.xlu0 %2529
        %2533 = vset.pattern.permute.xlu0 0
        %2534 = vperm.xlu0 %2533, %v2520
        %v2535 = vpop.permute.xlu0 %2534
        %2538 = vset.pattern.permute.xlu0 0
        %2539 = vperm.xlu0 %2538, %v2521
        %v2540 = vpop.permute.xlu0 %2539
        %v2543 = vsel %vm1275, %v2514, 0
        %v2546 = vsel %vm1275, %v2515, 0
        %v2549 = vsel %vm1275, %v2516, 0
        %v2552 = vsel %vm1275, %v2517, 0
        %2554 = vmatpush.msra.mxu0 0.0
        %2555 = vmatpush.msra.mxu0 0.0
        %2556 = vmatpush.msra.mxu0 0.0
        %2557 = vmatpush.msra.mxu0 0.0
        %2558 = vmatpush.msra.mxu0 0.0
        %2559 = vmatpush.msra.mxu0 0.0
        %2560 = vmatpush.msra.mxu0 0.0
        %2561 = vmatpush.msra.mxu0 0.0
        %2562 = vmatpush.msra.mxu0 0.0
        %2563 = vmatpush.msra.mxu0 0.0
        %2564 = vmatpush.msra.mxu0 0.0
        %2565 = vmatpush.msra.mxu0 0.0
        %2566 = vmatpush.msra.mxu0 %v2513
        %2567 = vmatpush.msra.mxu0 %v2512
        %2568 = vmatpush.msra.mxu0 %v2511
        %2569 = vmatpush.msra.mxu0 %v2510
        %2570 = vmatmul.f32.gmra.mxu0 %v2543
        %v2571 = vpop.f32.mrf.mxu0
        %v2572 = vadd.f32 %v2525, %v2571
        %2573 = vmatmul.f32.gmra.mxu0 %v2546
        %v2574 = vpop.f32.mrf.mxu0
        %v2575 = vadd.f32 %v2530, %v2574
        %2576 = vmatmul.f32.gmra.mxu0 %v2549
        %v2577 = vpop.f32.mrf.mxu0
        %v2578 = vadd.f32 %v2535, %v2577
        %2579 = vmatmul.f32.gmra.mxu0 %v2552
        %v2580 = vpop.f32.mrf.mxu0
        %v2581 = vadd.f32 %v2540, %v2580
        %2582 = vdwg.mxu0
        %v2583 = vadd.f32 %v1259, %v2572
        %v2584 = vadd.f32 %v1260, %v2575
        %v2585 = vadd.f32 %v1261, %v2578
        %v2586 = vadd.f32 %v1262, %v2581
        %s2587 = scalar_lea.vmem %s15, 4
        %v2588 = vld [vmem:[%s2587] sm:$0x7]
        %s2589 = scalar_lea.vmem %s17, 4
        %v2590 = vld [vmem:[%s2589] sm:$0x7]
        %2591 = vmatpush.msra.mxu0 0.0
        %2592 = vmatpush.msra.mxu0 0.0
        %2593 = vmatpush.msra.mxu0 0.0
        %2594 = vmatpush.msra.mxu0 0.0
        %2595 = vmatpush.msra.mxu0 0.0
        %2596 = vmatpush.msra.mxu0 0.0
        %2597 = vmatpush.msra.mxu0 0.0
        %2598 = vmatpush.msra.mxu0 0.0
        %2599 = vmatpush.msra.mxu0 0.0
        %2600 = vmatpush.msra.mxu0 0.0
        %2601 = vmatpush.msra.mxu0 0.0
        %2602 = vmatpush.msra.mxu0 0.0
        %2603 = vmatpush.msra.mxu0 %v2586
        %2604 = vmatpush.msra.mxu0 %v2585
        %2605 = vmatpush.msra.mxu0 %v2584
        %2606 = vmatpush.msra.mxu0 %v2583
        %2607 = vmatmul.f32.gmra.mxu0 %v1277
        %v2608 = vpop.f32.mrf.mxu0
        %v2609 = vadd.f32 0.0, %v2608
        %2610 = vdwg.mxu0
        %v2611 = vmul.f32 %v2609, 0.03125
        %v2612 = vperm.slane %v2611, 0
        %v2613 = vsub.f32 %v2583, %v2612
        %v2614 = vsub.f32 %v2584, %v2612
        %v2615 = vsub.f32 %v2585, %v2612
        %v2616 = vsub.f32 %v2586, %v2612
        %v2617 = vmul.f32 %v2613, %v2613
        %v2618 = vmul.f32 %v2614, %v2614
        %v2619 = vmul.f32 %v2615, %v2615
        %v2620 = vmul.f32 %v2616, %v2616
        %2621 = vmatpush.msra.mxu0 0.0
        %2622 = vmatpush.msra.mxu0 0.0
        %2623 = vmatpush.msra.mxu0 0.0
        %2624 = vmatpush.msra.mxu0 0.0
        %2625 = vmatpush.msra.mxu0 0.0
        %2626 = vmatpush.msra.mxu0 0.0
        %2627 = vmatpush.msra.mxu0 0.0
        %2628 = vmatpush.msra.mxu0 0.0
        %2629 = vmatpush.msra.mxu0 0.0
        %2630 = vmatpush.msra.mxu0 0.0
        %2631 = vmatpush.msra.mxu0 0.0
        %2632 = vmatpush.msra.mxu0 0.0
        %2633 = vmatpush.msra.mxu0 %v2620
        %2634 = vmatpush.msra.mxu0 %v2619
        %2635 = vmatpush.msra.mxu0 %v2618
        %2636 = vmatpush.msra.mxu0 %v2617
        %2637 = vmatmul.f32.gmra.mxu0 %v1277
        %v2638 = vpop.f32.mrf.mxu0
        %v2639 = vadd.f32 0.0, %v2638
        %2640 = vdwg.mxu0
        %v2641 = vmul.f32 %v2639, 0.03125
        %v2642 = vadd.f32 %v2641, 1e-05
        %v2643 = vrsqrt.pop %v2642
        %v2644 = vmul.f32 %v2643, %v2642
        %v2645 = vmul.f32 %v2644, %v2643
        %v2646 = vmul.f32 0.5, %v2645
        %v2647 = vsub.f32 1.5, %v2646
        %v2648 = vmul.f32 %v2643, %v2647
        %vm2649 = vweird.f32 %v2642
        %vm2650 = vweird.f32 %v2643
        %vm2651 = vmor %vm2649, %vm2650
        %v2652 = vsel %vm2651, %v2643, %v2648
        %v2653 = vperm.slane %v2652, 0
        %v2654 = vmul.f32 %v2613, %v2653
        %v2655 = vmul.f32 %v2614, %v2653
        %v2656 = vmul.f32 %v2615, %v2653
        %v2657 = vmul.f32 %v2616, %v2653
        %v2658 = vld [vmem:[%s47] sm:$0xff]
        %v2659 = vld [vmem:[%s47 + $0x8] sm:$0xff]
        %v2660 = vld [vmem:[%s47 + $0x10] sm:$0xff]
        %v2661 = vld [vmem:[%s47 + $0x18] sm:$0xff]
        %2663 = vset.pattern.permute.xlu0 0
        %2664 = vperm.xlu0 %2663, %v2658
        %v2665 = vpop.permute.xlu0 %2664
        %2668 = vset.pattern.permute.xlu0 0
        %2669 = vperm.xlu0 %2668, %v2659
        %v2670 = vpop.permute.xlu0 %2669
        %2673 = vset.pattern.permute.xlu0 0
        %2674 = vperm.xlu0 %2673, %v2660
        %v2675 = vpop.permute.xlu0 %2674
        %2678 = vset.pattern.permute.xlu0 0
        %2679 = vperm.xlu0 %2678, %v2661
        %v2680 = vpop.permute.xlu0 %2679
        %v2682 = vmul.f32 %v2654, %v2665
        %v2683 = vmul.f32 %v2655, %v2670
        %v2684 = vmul.f32 %v2656, %v2675
        %v2685 = vmul.f32 %v2657, %v2680
        %v2686 = vld [vmem:[%s49] sm:$0xff]
        %v2687 = vld [vmem:[%s49 + $0x8] sm:$0xff]
        %v2688 = vld [vmem:[%s49 + $0x10] sm:$0xff]
        %v2689 = vld [vmem:[%s49 + $0x18] sm:$0xff]
        %2691 = vset.pattern.permute.xlu0 0
        %2692 = vperm.xlu0 %2691, %v2686
        %v2693 = vpop.permute.xlu0 %2692
        %2696 = vset.pattern.permute.xlu0 0
        %2697 = vperm.xlu0 %2696, %v2687
        %v2698 = vpop.permute.xlu0 %2697
        %2701 = vset.pattern.permute.xlu0 0
        %2702 = vperm.xlu0 %2701, %v2688
        %v2703 = vpop.permute.xlu0 %2702
        %2706 = vset.pattern.permute.xlu0 0
        %2707 = vperm.xlu0 %2706, %v2689
        %v2708 = vpop.permute.xlu0 %2707
        %v2710 = vadd.f32 %v2682, %v2693
        %v2711 = vadd.f32 %v2683, %v2698
        %v2712 = vadd.f32 %v2684, %v2703
        %v2713 = vadd.f32 %v2685, %v2708
        %v2714 = vld [vmem:[%s55] sm:$0xff]
        %v2715 = vld [vmem:[%s55 + $0x8] sm:$0xff]
        %v2716 = vld [vmem:[%s55 + $0x10] sm:$0xff]
        %v2717 = vld [vmem:[%s55 + $0x18] sm:$0xff]
        %2719 = vset.pattern.permute.xlu0 0
        %2720 = vperm.xlu0 %2719, %v2714
        %v2721 = vpop.permute.xlu0 %2720
        %2724 = vset.pattern.permute.xlu0 0
        %2725 = vperm.xlu0 %2724, %v2715
        %v2726 = vpop.permute.xlu0 %2725
        %2729 = vset.pattern.permute.xlu0 0
        %2730 = vperm.xlu0 %2729, %v2716
        %v2731 = vpop.permute.xlu0 %2730
        %2734 = vset.pattern.permute.xlu0 0
        %2735 = vperm.xlu0 %2734, %v2717
        %v2736 = vpop.permute.xlu0 %2735
        %v2738 = vmul.f32 %v2654, %v2721
        %v2739 = vmul.f32 %v2655, %v2726
        %v2740 = vmul.f32 %v2656, %v2731
        %v2741 = vmul.f32 %v2657, %v2736
        %v2742 = vld [vmem:[%s57] sm:$0xff]
        %v2743 = vld [vmem:[%s57 + $0x8] sm:$0xff]
        %v2744 = vld [vmem:[%s57 + $0x10] sm:$0xff]
        %v2745 = vld [vmem:[%s57 + $0x18] sm:$0xff]
        %2747 = vset.pattern.permute.xlu0 0
        %2748 = vperm.xlu0 %2747, %v2742
        %v2749 = vpop.permute.xlu0 %2748
        %2752 = vset.pattern.permute.xlu0 0
        %2753 = vperm.xlu0 %2752, %v2743
        %v2754 = vpop.permute.xlu0 %2753
        %2757 = vset.pattern.permute.xlu0 0
        %2758 = vperm.xlu0 %2757, %v2744
        %v2759 = vpop.permute.xlu0 %2758
        %2762 = vset.pattern.permute.xlu0 0
        %2763 = vperm.xlu0 %2762, %v2745
        %v2764 = vpop.permute.xlu0 %2763
        %v2766 = vadd.f32 %v2738, %v2749
        %v2767 = vadd.f32 %v2739, %v2754
        %v2768 = vadd.f32 %v2740, %v2759
        %v2769 = vadd.f32 %v2741, %v2764
        %2774 = vrot.lane.b32.xlu0 %v2710, 2
        %v2775 = vpop.permute.xlu0 %2774
        %2776 = vrot.lane.b32.xlu0 %v2711, 2
        %v2777 = vpop.permute.xlu0 %2776
        %2778 = vrot.lane.b32.xlu0 %v2712, 2
        %v2779 = vpop.permute.xlu0 %2778
        %2780 = vrot.lane.b32.xlu0 %v2713, 2
        %v2781 = vpop.permute.xlu0 %2780
        %2786 = vst.msk [vmem:[#allocation2] sm:$0xff] %vm1474, %v2775
        %2787 = vst.msk [vmem:[#allocation2 + $0x8] sm:$0xff] %vm1474, %v2777
        %2788 = vst.msk [vmem:[#allocation2 + $0x10] sm:$0xff] %vm1474, %v2779
        %2789 = vst.msk [vmem:[#allocation2 + $0x18] sm:$0xff] %vm1474, %v2781
        %v2790 = vld [vmem:[%s51] sm:$0xff]
        %v2791 = vld [vmem:[%s51 + $0x8] sm:$0xff]
        %v2792 = vld [vmem:[%s51 + $0x10] sm:$0xff]
        %v2793 = vld [vmem:[%s51 + $0x18] sm:$0xff]
        %v2794 = vld [vmem:[#allocation2] sm:$0xff]
        %v2795 = vld [vmem:[#allocation2 + $0x8] sm:$0xff]
        %v2796 = vld [vmem:[#allocation2 + $0x10] sm:$0xff]
        %v2797 = vld [vmem:[#allocation2 + $0x18] sm:$0xff]
        %s2798 = scalar_lea.vmem %s51, 32
        %v2799 = vld [vmem:[%s2798] sm:$0xff]
        %v2800 = vld [vmem:[%s2798 + $0x8] sm:$0xff]
        %v2801 = vld [vmem:[%s2798 + $0x10] sm:$0xff]
        %v2802 = vld [vmem:[%s2798 + $0x18] sm:$0xff]
        %2807 = vrot.lane.b32.xlu0 %v2794, 126
        %v2808 = vpop.permute.xlu0 %2807
        %2809 = vrot.lane.b32.xlu0 %v2795, 126
        %v2810 = vpop.permute.xlu0 %2809
        %2811 = vrot.lane.b32.xlu0 %v2796, 126
        %v2812 = vpop.permute.xlu0 %2811
        %2813 = vrot.lane.b32.xlu0 %v2797, 126
        %v2814 = vpop.permute.xlu0 %2813
        %v2820 = vsel %vm1275, %v2799, 0
        %v2823 = vsel %vm1275, %v2800, 0
        %v2826 = vsel %vm1275, %v2801, 0
        %v2829 = vsel %vm1275, %v2802, 0
        %2831 = vmatpush.msra.mxu0 0.0
        %2832 = vmatpush.msra.mxu0 0.0
        %2833 = vmatpush.msra.mxu0 0.0
        %2834 = vmatpush.msra.mxu0 0.0
        %2835 = vmatpush.msra.mxu0 0.0
        %2836 = vmatpush.msra.mxu0 0.0
        %2837 = vmatpush.msra.mxu0 0.0
        %2838 = vmatpush.msra.mxu0 0.0
        %2839 = vmatpush.msra.mxu0 0.0
        %2840 = vmatpush.msra.mxu0 0.0
        %2841 = vmatpush.msra.mxu0 0.0
        %2842 = vmatpush.msra.mxu0 0.0
        %2843 = vmatpush.msra.mxu0 %v2814
        %2844 = vmatpush.msra.mxu0 %v2812
        %2845 = vmatpush.msra.mxu0 %v2810
        %2846 = vmatpush.msra.mxu0 %v2808
        %2847 = vmatmul.f32.gmra.mxu0 %v2820
        %v2848 = vpop.f32.mrf.mxu0
        %v2849 = vadd.f32 0.0, %v2848
        %2850 = vmatmul.f32.gmra.mxu0 %v2823
        %v2851 = vpop.f32.mrf.mxu0
        %v2852 = vadd.f32 0.0, %v2851
        %2853 = vmatmul.f32.gmra.mxu0 %v2826
        %v2854 = vpop.f32.mrf.mxu0
        %v2855 = vadd.f32 0.0, %v2854
        %2856 = vmatmul.f32.gmra.mxu0 %v2829
        %v2857 = vpop.f32.mrf.mxu0
        %v2858 = vadd.f32 0.0, %v2857
        %2859 = vdwg.mxu0
        %v2861 = vsel %vm1275, %v2790, 0
        %v2864 = vsel %vm1275, %v2791, 0
        %v2867 = vsel %vm1275, %v2792, 0
        %v2870 = vsel %vm1275, %v2793, 0
        %2872 = vmatpush.msra.mxu0 0.0
        %2873 = vmatpush.msra.mxu0 0.0
        %2874 = vmatpush.msra.mxu0 0.0
        %2875 = vmatpush.msra.mxu0 0.0
        %2876 = vmatpush.msra.mxu0 0.0
        %2877 = vmatpush.msra.mxu0 0.0
        %2878 = vmatpush.msra.mxu0 0.0
        %2879 = vmatpush.msra.mxu0 0.0
        %2880 = vmatpush.msra.mxu0 0.0
        %2881 = vmatpush.msra.mxu0 0.0
        %2882 = vmatpush.msra.mxu0 0.0
        %2883 = vmatpush.msra.mxu0 0.0
        %2884 = vmatpush.msra.mxu0 %v2797
        %2885 = vmatpush.msra.mxu0 %v2796
        %2886 = vmatpush.msra.mxu0 %v2795
        %2887 = vmatpush.msra.mxu0 %v2794
        %2888 = vmatmul.f32.gmra.mxu0 %v2861
        %v2889 = vpop.f32.mrf.mxu0
        %v2890 = vadd.f32 %v2849, %v2889
        %2891 = vmatmul.f32.gmra.mxu0 %v2864
        %v2892 = vpop.f32.mrf.mxu0
        %v2893 = vadd.f32 %v2852, %v2892
        %2894 = vmatmul.f32.gmra.mxu0 %v2867
        %v2895 = vpop.f32.mrf.mxu0
        %v2896 = vadd.f32 %v2855, %v2895
        %2897 = vmatmul.f32.gmra.mxu0 %v2870
        %v2898 = vpop.f32.mrf.mxu0
        %v2899 = vadd.f32 %v2858, %v2898
        %2900 = vdwg.mxu0
        %s2901 = scalar_lea.vmem %s51, 64
        %v2902 = vld [vmem:[%s2901] sm:$0xff]
        %v2903 = vld [vmem:[%s2901 + $0x8] sm:$0xff]
        %v2904 = vld [vmem:[%s2901 + $0x10] sm:$0xff]
        %v2905 = vld [vmem:[%s2901 + $0x18] sm:$0xff]
        %2906 = vrot.lane.b32.xlu0 %v2794, 124
        %v2907 = vpop.permute.xlu0 %2906
        %2908 = vrot.lane.b32.xlu0 %v2795, 124
        %v2909 = vpop.permute.xlu0 %2908
        %2910 = vrot.lane.b32.xlu0 %v2796, 124
        %v2911 = vpop.permute.xlu0 %2910
        %2912 = vrot.lane.b32.xlu0 %v2797, 124
        %v2913 = vpop.permute.xlu0 %2912
        %v2919 = vsel %vm1275, %v2902, 0
        %v2922 = vsel %vm1275, %v2903, 0
        %v2925 = vsel %vm1275, %v2904, 0
        %v2928 = vsel %vm1275, %v2905, 0
        %2930 = vmatpush.msra.mxu0 0.0
        %2931 = vmatpush.msra.mxu0 0.0
        %2932 = vmatpush.msra.mxu0 0.0
        %2933 = vmatpush.msra.mxu0 0.0
        %2934 = vmatpush.msra.mxu0 0.0
        %2935 = vmatpush.msra.mxu0 0.0
        %2936 = vmatpush.msra.mxu0 0.0
        %2937 = vmatpush.msra.mxu0 0.0
        %2938 = vmatpush.msra.mxu0 0.0
        %2939 = vmatpush.msra.mxu0 0.0
        %2940 = vmatpush.msra.mxu0 0.0
        %2941 = vmatpush.msra.mxu0 0.0
        %2942 = vmatpush.msra.mxu0 %v2913
        %2943 = vmatpush.msra.mxu0 %v2911
        %2944 = vmatpush.msra.mxu0 %v2909
        %2945 = vmatpush.msra.mxu0 %v2907
        %2946 = vmatmul.f32.gmra.mxu0 %v2919
        %v2947 = vpop.f32.mrf.mxu0
        %v2948 = vadd.f32 0.0, %v2947
        %2949 = vmatmul.f32.gmra.mxu0 %v2922
        %v2950 = vpop.f32.mrf.mxu0
        %v2951 = vadd.f32 0.0, %v2950
        %2952 = vmatmul.f32.gmra.mxu0 %v2925
        %v2953 = vpop.f32.mrf.mxu0
        %v2954 = vadd.f32 0.0, %v2953
        %2955 = vmatmul.f32.gmra.mxu0 %v2928
        %v2956 = vpop.f32.mrf.mxu0
        %v2957 = vadd.f32 0.0, %v2956
        %2958 = vdwg.mxu0
        %v2959 = vadd.f32 %v2890, %v2948
        %v2960 = vadd.f32 %v2893, %v2951
        %v2961 = vadd.f32 %v2896, %v2954
        %v2962 = vadd.f32 %v2899, %v2957
        %v2963 = vld [vmem:[%s53] sm:$0xff]
        %v2964 = vld [vmem:[%s53 + $0x8] sm:$0xff]
        %v2965 = vld [vmem:[%s53 + $0x10] sm:$0xff]
        %v2966 = vld [vmem:[%s53 + $0x18] sm:$0xff]
        %2968 = vset.pattern.permute.xlu0 0
        %2969 = vperm.xlu0 %2968, %v2963
        %v2970 = vpop.permute.xlu0 %2969
        %2973 = vset.pattern.permute.xlu0 0
        %2974 = vperm.xlu0 %2973, %v2964
        %v2975 = vpop.permute.xlu0 %2974
        %2978 = vset.pattern.permute.xlu0 0
        %2979 = vperm.xlu0 %2978, %v2965
        %v2980 = vpop.permute.xlu0 %2979
        %2983 = vset.pattern.permute.xlu0 0
        %2984 = vperm.xlu0 %2983, %v2966
        %v2985 = vpop.permute.xlu0 %2984
        %v2987 = vadd.f32 %v2959, %v2970
        %v2988 = vadd.f32 %v2960, %v2975
        %v2989 = vadd.f32 %v2961, %v2980
        %v2990 = vadd.f32 %v2962, %v2985
        %v2991 = vld [vmem:[%s59] sm:$0xff]
        %v2992 = vld [vmem:[%s59 + $0x8] sm:$0xff]
        %v2993 = vld [vmem:[%s59 + $0x10] sm:$0xff]
        %v2994 = vld [vmem:[%s59 + $0x18] sm:$0xff]
        %v2995 = vld [vmem:[%s59 + $0x20] sm:$0xff]
        %v2996 = vld [vmem:[%s59 + $0x28] sm:$0xff]
        %v2997 = vld [vmem:[%s59 + $0x30] sm:$0xff]
        %v2998 = vld [vmem:[%s59 + $0x38] sm:$0xff]
        %v2999 = vld [vmem:[%s59 + $0x40] sm:$0xff]
        %v3000 = vld [vmem:[%s59 + $0x48] sm:$0xff]
        %v3001 = vld [vmem:[%s59 + $0x50] sm:$0xff]
        %v3002 = vld [vmem:[%s59 + $0x58] sm:$0xff]
        %v3003 = vld [vmem:[%s61] sm:$0xff]
        %v3004 = vld [vmem:[%s61 + $0x8] sm:$0xff]
        %v3005 = vld [vmem:[%s61 + $0x10] sm:$0xff]
        %v3006 = vld [vmem:[%s61 + $0x18] sm:$0xff]
        %v3007 = vld [vmem:[%s61 + $0x20] sm:$0xff]
        %v3008 = vld [vmem:[%s61 + $0x28] sm:$0xff]
        %v3009 = vld [vmem:[%s61 + $0x30] sm:$0xff]
        %v3010 = vld [vmem:[%s61 + $0x38] sm:$0xff]
        %v3011 = vld [vmem:[%s61 + $0x40] sm:$0xff]
        %v3012 = vld [vmem:[%s61 + $0x48] sm:$0xff]
        %v3013 = vld [vmem:[%s61 + $0x50] sm:$0xff]
        %v3014 = vld [vmem:[%s61 + $0x58] sm:$0xff]
        %3016 = vset.pattern.permute.xlu0 0
        %3017 = vperm.xlu0 %3016, %v3003
        %v3018 = vpop.permute.xlu0 %3017
        %3021 = vset.pattern.permute.xlu0 0
        %3022 = vperm.xlu0 %3021, %v3004
        %v3023 = vpop.permute.xlu0 %3022
        %3026 = vset.pattern.permute.xlu0 0
        %3027 = vperm.xlu0 %3026, %v3005
        %v3028 = vpop.permute.xlu0 %3027
        %3031 = vset.pattern.permute.xlu0 0
        %3032 = vperm.xlu0 %3031, %v3006
        %v3033 = vpop.permute.xlu0 %3032
        %3036 = vset.pattern.permute.xlu0 0
        %3037 = vperm.xlu0 %3036, %v3007
        %v3038 = vpop.permute.xlu0 %3037
        %3041 = vset.pattern.permute.xlu0 0
        %3042 = vperm.xlu0 %3041, %v3008
        %v3043 = vpop.permute.xlu0 %3042
        %3046 = vset.pattern.permute.xlu0 0
        %3047 = vperm.xlu0 %3046, %v3009
        %v3048 = vpop.permute.xlu0 %3047
        %3051 = vset.pattern.permute.xlu0 0
        %3052 = vperm.xlu0 %3051, %v3010
        %v3053 = vpop.permute.xlu0 %3052
        %3056 = vset.pattern.permute.xlu0 0
        %3057 = vperm.xlu0 %3056, %v3011
        %v3058 = vpop.permute.xlu0 %3057
        %3061 = vset.pattern.permute.xlu0 0
        %3062 = vperm.xlu0 %3061, %v3012
        %v3063 = vpop.permute.xlu0 %3062
        %3066 = vset.pattern.permute.xlu0 0
        %3067 = vperm.xlu0 %3066, %v3013
        %v3068 = vpop.permute.xlu0 %3067
        %3071 = vset.pattern.permute.xlu0 0
        %3072 = vperm.xlu0 %3071, %v3014
        %v3073 = vpop.permute.xlu0 %3072
        %v3076 = vsel %vm1776, %v2991, 0
        %v3079 = vsel %vm1776, %v2992, 0
        %v3082 = vsel %vm1776, %v2993, 0
        %v3085 = vsel %vm1776, %v2994, 0
        %v3088 = vsel %vm1776, %v2995, 0
        %v3091 = vsel %vm1776, %v2996, 0
        %v3094 = vsel %vm1776, %v2997, 0
        %v3097 = vsel %vm1776, %v2998, 0
        %v3100 = vsel %vm1776, %v2999, 0
        %v3103 = vsel %vm1776, %v3000, 0
        %v3106 = vsel %vm1776, %v3001, 0
        %v3109 = vsel %vm1776, %v3002, 0
        %3111 = vmatpush.msra.mxu0 0.0
        %3112 = vmatpush.msra.mxu0 0.0
        %3113 = vmatpush.msra.mxu0 0.0
        %3114 = vmatpush.msra.mxu0 0.0
        %3115 = vmatpush.msra.mxu0 0.0
        %3116 = vmatpush.msra.mxu0 0.0
        %3117 = vmatpush.msra.mxu0 0.0
        %3118 = vmatpush.msra.mxu0 0.0
        %3119 = vmatpush.msra.mxu0 0.0
        %3120 = vmatpush.msra.mxu0 0.0
        %3121 = vmatpush.msra.mxu0 0.0
        %3122 = vmatpush.msra.mxu0 %v1164
        %3123 = vmatpush.msra.mxu0 %v2769
        %3124 = vmatpush.msra.mxu0 %v2768
        %3125 = vmatpush.msra.mxu0 %v2767
        %3126 = vmatpush.msra.mxu0 %v2766
        %3127 = vmatmul.f32.gmra.mxu0 %v3076
        %v3128 = vpop.f32.mrf.mxu0
        %v3129 = vadd.f32 %v3018, %v3128
        %3130 = vmatmul.f32.gmra.mxu0 %v3079
        %v3131 = vpop.f32.mrf.mxu0
        %v3132 = vadd.f32 %v3023, %v3131
        %3133 = vmatmul.f32.gmra.mxu0 %v3082
        %v3134 = vpop.f32.mrf.mxu0
        %v3135 = vadd.f32 %v3028, %v3134
        %3136 = vmatmul.f32.gmra.mxu0 %v3085
        %v3137 = vpop.f32.mrf.mxu0
        %v3138 = vadd.f32 %v3033, %v3137
        %3139 = vmatmul.f32.gmra.mxu0 %v3088
        %v3140 = vpop.f32.mrf.mxu0
        %v3141 = vadd.f32 %v3038, %v3140
        %3142 = vmatmul.f32.gmra.mxu0 %v3091
        %v3143 = vpop.f32.mrf.mxu0
        %v3144 = vadd.f32 %v3043, %v3143
        %3145 = vmatmul.f32.gmra.mxu0 %v3094
        %v3146 = vpop.f32.mrf.mxu0
        %v3147 = vadd.f32 %v3048, %v3146
        %3148 = vmatmul.f32.gmra.mxu0 %v3097
        %v3149 = vpop.f32.mrf.mxu0
        %v3150 = vadd.f32 %v3053, %v3149
        %3151 = vmatmul.f32.gmra.mxu0 %v3100
        %v3152 = vpop.f32.mrf.mxu0
        %v3153 = vadd.f32 %v3058, %v3152
        %3154 = vmatmul.f32.gmra.mxu0 %v3103
        %v3155 = vpop.f32.mrf.mxu0
        %v3156 = vadd.f32 %v3063, %v3155
        %3157 = vmatmul.f32.gmra.mxu0 %v3106
        %v3158 = vpop.f32.mrf.mxu0
        %v3159 = vadd.f32 %v3068, %v3158
        %3160 = vmatmul.f32.gmra.mxu0 %v3109
        %v3161 = vpop.f32.mrf.mxu0
        %v3162 = vadd.f32 %v3073, %v3161
        %3163 = vdwg.mxu0
        %3168 = vrot.lane.b32.xlu0 %v3141, 2
        %v3169 = vpop.permute.xlu0 %3168
        %3170 = vrot.lane.b32.xlu0 %v3144, 2
        %v3171 = vpop.permute.xlu0 %3170
        %3172 = vrot.lane.b32.xlu0 %v3147, 2
        %v3173 = vpop.permute.xlu0 %3172
        %3174 = vrot.lane.b32.xlu0 %v3150, 2
        %v3175 = vpop.permute.xlu0 %3174
        %3180 = vst.msk [vmem:[#allocation2] sm:$0xff] %vm1474, %v3169
        %3181 = vst.msk [vmem:[#allocation2 + $0x8] sm:$0xff] %vm1474, %v3171
        %3182 = vst.msk [vmem:[#allocation2 + $0x10] sm:$0xff] %vm1474, %v3173
        %3183 = vst.msk [vmem:[#allocation2 + $0x18] sm:$0xff] %vm1474, %v3175
        %v3184 = vld [vmem:[#allocation2] sm:$0xff]
        %v3185 = vld [vmem:[#allocation2 + $0x8] sm:$0xff]
        %v3186 = vld [vmem:[#allocation2 + $0x10] sm:$0xff]
        %v3187 = vld [vmem:[#allocation2 + $0x18] sm:$0xff]
        %v3188 = vmul.f32 %v3129, %v3184
        %v3189 = vmul.f32 %v3132, %v3185
        %v3190 = vmul.f32 %v3135, %v3186
        %v3191 = vmul.f32 %v3138, %v3187
        %3192 = vmatpush.msra.mxu0 0.0
        %3193 = vmatpush.msra.mxu0 0.0
        %3194 = vmatpush.msra.mxu0 0.0
        %3195 = vmatpush.msra.mxu0 0.0
        %3196 = vmatpush.msra.mxu0 0.0
        %3197 = vmatpush.msra.mxu0 0.0
        %3198 = vmatpush.msra.mxu0 0.0
        %3199 = vmatpush.msra.mxu0 0.0
        %3200 = vmatpush.msra.mxu0 0.0
        %3201 = vmatpush.msra.mxu0 0.0
        %3202 = vmatpush.msra.mxu0 0.0
        %3203 = vmatpush.msra.mxu0 0.0
        %3204 = vmatpush.msra.mxu0 %v3191
        %3205 = vmatpush.msra.mxu0 %v3190
        %3206 = vmatpush.msra.mxu0 %v3189
        %3207 = vmatpush.msra.mxu0 %v3188
        %3208 = vmatmul.f32.gmra.mxu0 %v1277
        %v3209 = vpop.f32.mrf.mxu0
        %v3210 = vadd.f32 0.0, %v3209
        %3211 = vdwg.mxu0
        %v3212 = vmul.f32 %v3210, 0.17677669
        %v3213 = vadd.f32 %v3212, %v2590
        %3218 = vrot.lane.b32.xlu0 %v3184, 126
        %v3219 = vpop.permute.xlu0 %3218
        %3220 = vrot.lane.b32.xlu0 %v3185, 126
        %v3221 = vpop.permute.xlu0 %3220
        %3222 = vrot.lane.b32.xlu0 %v3186, 126
        %v3223 = vpop.permute.xlu0 %3222
        %3224 = vrot.lane.b32.xlu0 %v3187, 126
        %v3225 = vpop.permute.xlu0 %3224
        %v3230 = vmul.f32 %v3129, %v3219
        %v3231 = vmul.f32 %v3132, %v3221
        %v3232 = vmul.f32 %v3135, %v3223
        %v3233 = vmul.f32 %v3138, %v3225
        %3234 = vmatpush.msra.mxu0 0.0
        %3235 = vmatpush.msra.mxu0 0.0
        %3236 = vmatpush.msra.mxu0 0.0
        %3237 = vmatpush.msra.mxu0 0.0
        %3238 = vmatpush.msra.mxu0 0.0
        %3239 = vmatpush.msra.mxu0 0.0
        %3240 = vmatpush.msra.mxu0 0.0
        %3241 = vmatpush.msra.mxu0 0.0
        %3242 = vmatpush.msra.mxu0 0.0
        %3243 = vmatpush.msra.mxu0 0.0
        %3244 = vmatpush.msra.mxu0 0.0
        %3245 = vmatpush.msra.mxu0 0.0
        %3246 = vmatpush.msra.mxu0 %v3233
        %3247 = vmatpush.msra.mxu0 %v3232
        %3248 = vmatpush.msra.mxu0 %v3231
        %3249 = vmatpush.msra.mxu0 %v3230
        %3250 = vmatmul.f32.gmra.mxu0 %v1277
        %v3251 = vpop.f32.mrf.mxu0
        %v3252 = vadd.f32 0.0, %v3251
        %3253 = vdwg.mxu0
        %v3254 = vmul.f32 %v3252, 0.17677669
        %v3256 = vrot.slane %v2590, 1
        %v3258 = vadd.f32 %v3254, %v3256
        %3259 = vrot.lane.b32.xlu0 %v3184, 124
        %v3260 = vpop.permute.xlu0 %3259
        %3261 = vrot.lane.b32.xlu0 %v3185, 124
        %v3262 = vpop.permute.xlu0 %3261
        %3263 = vrot.lane.b32.xlu0 %v3186, 124
        %v3264 = vpop.permute.xlu0 %3263
        %3265 = vrot.lane.b32.xlu0 %v3187, 124
        %v3266 = vpop.permute.xlu0 %3265
        %v3271 = vmul.f32 %v3129, %v3260
        %v3272 = vmul.f32 %v3132, %v3262
        %v3273 = vmul.f32 %v3135, %v3264
        %v3274 = vmul.f32 %v3138, %v3266
        %3275 = vmatpush.msra.mxu0 0.0
        %3276 = vmatpush.msra.mxu0 0.0
        %3277 = vmatpush.msra.mxu0 0.0
        %3278 = vmatpush.msra.mxu0 0.0
        %3279 = vmatpush.msra.mxu0 0.0
        %3280 = vmatpush.msra.mxu0 0.0
        %3281 = vmatpush.msra.mxu0 0.0
        %3282 = vmatpush.msra.mxu0 0.0
        %3283 = vmatpush.msra.mxu0 0.0
        %3284 = vmatpush.msra.mxu0 0.0
        %3285 = vmatpush.msra.mxu0 0.0
        %3286 = vmatpush.msra.mxu0 0.0
        %3287 = vmatpush.msra.mxu0 %v3274
        %3288 = vmatpush.msra.mxu0 %v3273
        %3289 = vmatpush.msra.mxu0 %v3272
        %3290 = vmatpush.msra.mxu0 %v3271
        %3291 = vmatmul.f32.gmra.mxu0 %v1277
        %v3292 = vpop.f32.mrf.mxu0
        %v3293 = vadd.f32 0.0, %v3292
        %3294 = vdwg.mxu0
        %v3295 = vmul.f32 %v3293, 0.17677669
        %v3296 = vrot.slane %v2590, 2
        %v3298 = vadd.f32 %v3295, %v3296
        %v3299 = vmax.f32 %v3213, %v3258
        %v3300 = vmax.f32 %v3299, %v3298
        %v3301 = vsub.f32 %v3213, %v3300
        %v3302 = vmul.f32 %v3301, 1.442695
        %v3303 = vpow.pop %v3302
        %v3304 = vsub.f32 %v3258, %v3300
        %v3305 = vmul.f32 %v3304, 1.442695
        %v3306 = vpow.pop %v3305
        %v3307 = vsub.f32 %v3298, %v3300
        %v3308 = vmul.f32 %v3307, 1.442695
        %v3309 = vpow.pop %v3308
        %v3310 = vadd.f32 %v3303, %v3306
        %v3311 = vadd.f32 %v3310, %v3309
        %v3312 = vrcp.pop %v3311
        %v3313 = vmul.f32 %v3311, %v3312
        %v3314 = vsub.f32 1.0, %v3313
        %v3315 = vmul.f32 %v3312, %v3314
        %v3316 = vadd.f32 %v3312, %v3315
        %vm3317 = vweird.f32 %v3311
        %vm3318 = vweird.f32 %v3312
        %vm3319 = vmor %vm3317, %vm3318
        %v3320 = vsel %vm3319, %v3312, %v3316
        %v3321 = vand.u32 2147483647, %v3311
        %vm3322 = vcmp.eq.f32.partialorder %v3321, 8.507059e+37
        %v3323 = vand.u32 %v3311, 2147483648
        %v3324 = vor.u32 1.1754944e-38, %v3323
        %v3325 = vsel %vm3322, %v3324, %v3320
        %v3326 = vmul.f32 %v3303, %v3325
        %v3327 = vmul.f32 %v3326, %v2588
        %v3328 = vmul.f32 %v3306, %v3325
        %v3330 = vrot.slane %v2588, 1
        %v3332 = vmul.f32 %v3328, %v3330
        %v3333 = vmul.f32 %v3309, %v3325
        %v3334 = vrot.slane %v2588, 2
        %v3336 = vmul.f32 %v3333, %v3334
        %3341 = vrot.lane.b32.xlu0 %v3153, 2
        %v3342 = vpop.permute.xlu0 %3341
        %3343 = vrot.lane.b32.xlu0 %v3156, 2
        %v3344 = vpop.permute.xlu0 %3343
        %3345 = vrot.lane.b32.xlu0 %v3159, 2
        %v3346 = vpop.permute.xlu0 %3345
        %3347 = vrot.lane.b32.xlu0 %v3162, 2
        %v3348 = vpop.permute.xlu0 %3347
        %3353 = vst.msk [vmem:[#allocation2] sm:$0xff] %vm1474, %v3342
        %3354 = vst.msk [vmem:[#allocation2 + $0x8] sm:$0xff] %vm1474, %v3344
        %3355 = vst.msk [vmem:[#allocation2 + $0x10] sm:$0xff] %vm1474, %v3346
        %3356 = vst.msk [vmem:[#allocation2 + $0x18] sm:$0xff] %vm1474, %v3348
        %v3357 = vld [vmem:[#allocation2] sm:$0xff]
        %v3358 = vld [vmem:[#allocation2 + $0x8] sm:$0xff]
        %v3359 = vld [vmem:[#allocation2 + $0x10] sm:$0xff]
        %v3360 = vld [vmem:[#allocation2 + $0x18] sm:$0xff]
        %v3361 = vperm.slane %v3327, 0
        %v3362 = vmul.f32 %v3361, %v3357
        %v3363 = vmul.f32 %v3361, %v3358
        %v3364 = vmul.f32 %v3361, %v3359
        %v3365 = vmul.f32 %v3361, %v3360
        %v3366 = vadd.f32 %v3362, 0.0
        %v3367 = vadd.f32 %v3363, 0.0
        %v3368 = vadd.f32 %v3364, 0.0
        %v3369 = vadd.f32 %v3365, 0.0
        %v3370 = vperm.slane %v3332, 0
        %3375 = vrot.lane.b32.xlu0 %v3357, 126
        %v3376 = vpop.permute.xlu0 %3375
        %3377 = vrot.lane.b32.xlu0 %v3358, 126
        %v3378 = vpop.permute.xlu0 %3377
        %3379 = vrot.lane.b32.xlu0 %v3359, 126
        %v3380 = vpop.permute.xlu0 %3379
        %3381 = vrot.lane.b32.xlu0 %v3360, 126
        %v3382 = vpop.permute.xlu0 %3381
        %v3387 = vmul.f32 %v3370, %v3376
        %v3388 = vmul.f32 %v3370, %v3378
        %v3389 = vmul.f32 %v3370, %v3380
        %v3390 = vmul.f32 %v3370, %v3382
        %v3391 = vadd.f32 %v3366, %v3387
        %v3392 = vadd.f32 %v3367, %v3388
        %v3393 = vadd.f32 %v3368, %v3389
        %v3394 = vadd.f32 %v3369, %v3390
        %v3395 = vperm.slane %v3336, 0
        %3396 = vrot.lane.b32.xlu0 %v3357, 124
        %v3397 = vpop.permute.xlu0 %3396
        %3398 = vrot.lane.b32.xlu0 %v3358, 124
        %v3399 = vpop.permute.xlu0 %3398
        %3400 = vrot.lane.b32.xlu0 %v3359, 124
        %v3401 = vpop.permute.xlu0 %3400
        %3402 = vrot.lane.b32.xlu0 %v3360, 124
        %v3403 = vpop.permute.xlu0 %3402
        %v3408 = vmul.f32 %v3395, %v3397
        %v3409 = vmul.f32 %v3395, %v3399
        %v3410 = vmul.f32 %v3395, %v3401
        %v3411 = vmul.f32 %v3395, %v3403
        %v3412 = vadd.f32 %v3391, %v3408
        %v3413 = vadd.f32 %v3392, %v3409
        %v3414 = vadd.f32 %v3393, %v3410
        %v3415 = vadd.f32 %v3394, %v3411
        %v3416 = vadd.f32 %v2987, %v3412
        %v3417 = vadd.f32 %v2988, %v3413
        %v3418 = vadd.f32 %v2989, %v3414
        %v3419 = vadd.f32 %v2990, %v3415
        %3420 = vmatpush.msra.mxu0 0.0
        %3421 = vmatpush.msra.mxu0 0.0
        %3422 = vmatpush.msra.mxu0 0.0
        %3423 = vmatpush.msra.mxu0 0.0
        %3424 = vmatpush.msra.mxu0 0.0
        %3425 = vmatpush.msra.mxu0 0.0
        %3426 = vmatpush.msra.mxu0 0.0
        %3427 = vmatpush.msra.mxu0 0.0
        %3428 = vmatpush.msra.mxu0 0.0
        %3429 = vmatpush.msra.mxu0 0.0
        %3430 = vmatpush.msra.mxu0 0.0
        %3431 = vmatpush.msra.mxu0 0.0
        %3432 = vmatpush.msra.mxu0 %v3419
        %3433 = vmatpush.msra.mxu0 %v3418
        %3434 = vmatpush.msra.mxu0 %v3417
        %3435 = vmatpush.msra.mxu0 %v3416
        %3436 = vmatmul.f32.gmra.mxu0 %v1277
        %v3437 = vpop.f32.mrf.mxu0
        %v3438 = vadd.f32 0.0, %v3437
        %3439 = vdwg.mxu0
        %v3440 = vmul.f32 %v3438, 0.03125
        %v3441 = vperm.slane %v3440, 0
        %v3442 = vsub.f32 %v3416, %v3441
        %v3443 = vsub.f32 %v3417, %v3441
        %v3444 = vsub.f32 %v3418, %v3441
        %v3445 = vsub.f32 %v3419, %v3441
        %v3446 = vmul.f32 %v3442, %v3442
        %v3447 = vmul.f32 %v3443, %v3443
        %v3448 = vmul.f32 %v3444, %v3444
        %v3449 = vmul.f32 %v3445, %v3445
        %3450 = vmatpush.msra.mxu0 0.0
        %3451 = vmatpush.msra.mxu0 0.0
        %3452 = vmatpush.msra.mxu0 0.0
        %3453 = vmatpush.msra.mxu0 0.0
        %3454 = vmatpush.msra.mxu0 0.0
        %3455 = vmatpush.msra.mxu0 0.0
        %3456 = vmatpush.msra.mxu0 0.0
        %3457 = vmatpush.msra.mxu0 0.0
        %3458 = vmatpush.msra.mxu0 0.0
        %3459 = vmatpush.msra.mxu0 0.0
        %3460 = vmatpush.msra.mxu0 0.0
        %3461 = vmatpush.msra.mxu0 0.0
        %3462 = vmatpush.msra.mxu0 %v3449
        %3463 = vmatpush.msra.mxu0 %v3448
        %3464 = vmatpush.msra.mxu0 %v3447
        %3465 = vmatpush.msra.mxu0 %v3446
        %3466 = vmatmul.f32.gmra.mxu0 %v1277
        %v3467 = vpop.f32.mrf.mxu0
        %v3468 = vadd.f32 0.0, %v3467
        %3469 = vdwg.mxu0
        %v3470 = vmul.f32 %v3468, 0.03125
        %v3471 = vadd.f32 %v3470, 1e-05
        %v3472 = vrsqrt.pop %v3471
        %v3473 = vmul.f32 %v3472, %v3471
        %v3474 = vmul.f32 %v3473, %v3472
        %v3475 = vmul.f32 0.5, %v3474
        %v3476 = vsub.f32 1.5, %v3475
        %v3477 = vmul.f32 %v3472, %v3476
        %vm3478 = vweird.f32 %v3471
        %vm3479 = vweird.f32 %v3472
        %vm3480 = vmor %vm3478, %vm3479
        %v3481 = vsel %vm3480, %v3472, %v3477
        %v3482 = vperm.slane %v3481, 0
        %v3483 = vmul.f32 %v3442, %v3482
        %v3484 = vmul.f32 %v3443, %v3482
        %v3485 = vmul.f32 %v3444, %v3482
        %v3486 = vmul.f32 %v3445, %v3482
        %v3487 = vld [vmem:[%s63] sm:$0xff]
        %v3488 = vld [vmem:[%s63 + $0x8] sm:$0xff]
        %v3489 = vld [vmem:[%s63 + $0x10] sm:$0xff]
        %v3490 = vld [vmem:[%s63 + $0x18] sm:$0xff]
        %3492 = vset.pattern.permute.xlu0 0
        %3493 = vperm.xlu0 %3492, %v3487
        %v3494 = vpop.permute.xlu0 %3493
        %3497 = vset.pattern.permute.xlu0 0
        %3498 = vperm.xlu0 %3497, %v3488
        %v3499 = vpop.permute.xlu0 %3498
        %3502 = vset.pattern.permute.xlu0 0
        %3503 = vperm.xlu0 %3502, %v3489
        %v3504 = vpop.permute.xlu0 %3503
        %3507 = vset.pattern.permute.xlu0 0
        %3508 = vperm.xlu0 %3507, %v3490
        %v3509 = vpop.permute.xlu0 %3508
        %v3511 = vmul.f32 %v3483, %v3494
        %v3512 = vmul.f32 %v3484, %v3499
        %v3513 = vmul.f32 %v3485, %v3504
        %v3514 = vmul.f32 %v3486, %v3509
        %v3515 = vld [vmem:[%s65] sm:$0xff]
        %v3516 = vld [vmem:[%s65 + $0x8] sm:$0xff]
        %v3517 = vld [vmem:[%s65 + $0x10] sm:$0xff]
        %v3518 = vld [vmem:[%s65 + $0x18] sm:$0xff]
        %3520 = vset.pattern.permute.xlu0 0
        %3521 = vperm.xlu0 %3520, %v3515
        %v3522 = vpop.permute.xlu0 %3521
        %3525 = vset.pattern.permute.xlu0 0
        %3526 = vperm.xlu0 %3525, %v3516
        %v3527 = vpop.permute.xlu0 %3526
        %3530 = vset.pattern.permute.xlu0 0
        %3531 = vperm.xlu0 %3530, %v3517
        %v3532 = vpop.permute.xlu0 %3531
        %3535 = vset.pattern.permute.xlu0 0
        %3536 = vperm.xlu0 %3535, %v3518
        %v3537 = vpop.permute.xlu0 %3536
        %v3539 = vadd.f32 %v3511, %v3522
        %v3540 = vadd.f32 %v3512, %v3527
        %v3541 = vadd.f32 %v3513, %v3532
        %v3542 = vadd.f32 %v3514, %v3537
        %v3543 = vld [vmem:[%s67] sm:$0xff]
        %v3544 = vld [vmem:[%s67 + $0x8] sm:$0xff]
        %v3545 = vld [vmem:[%s67 + $0x10] sm:$0xff]
        %v3546 = vld [vmem:[%s67 + $0x18] sm:$0xff]
        %v3547 = vld [vmem:[%s69] sm:$0xff]
        %v3548 = vld [vmem:[%s69 + $0x8] sm:$0xff]
        %v3549 = vld [vmem:[%s69 + $0x10] sm:$0xff]
        %v3550 = vld [vmem:[%s69 + $0x18] sm:$0xff]
        %3552 = vset.pattern.permute.xlu0 0
        %3553 = vperm.xlu0 %3552, %v3547
        %v3554 = vpop.permute.xlu0 %3553
        %3557 = vset.pattern.permute.xlu0 0
        %3558 = vperm.xlu0 %3557, %v3548
        %v3559 = vpop.permute.xlu0 %3558
        %3562 = vset.pattern.permute.xlu0 0
        %3563 = vperm.xlu0 %3562, %v3549
        %v3564 = vpop.permute.xlu0 %3563
        %3567 = vset.pattern.permute.xlu0 0
        %3568 = vperm.xlu0 %3567, %v3550
        %v3569 = vpop.permute.xlu0 %3568
        %v3572 = vsel %vm1275, %v3543, 0
        %v3575 = vsel %vm1275, %v3544, 0
        %v3578 = vsel %vm1275, %v3545, 0
        %v3581 = vsel %vm1275, %v3546, 0
        %3583 = vmatpush.msra.mxu0 0.0
        %3584 = vmatpush.msra.mxu0 0.0
        %3585 = vmatpush.msra.mxu0 0.0
        %3586 = vmatpush.msra.mxu0 0.0
        %3587 = vmatpush.msra.mxu0 0.0
        %3588 = vmatpush.msra.mxu0 0.0
        %3589 = vmatpush.msra.mxu0 0.0
        %3590 = vmatpush.msra.mxu0 0.0
        %3591 = vmatpush.msra.mxu0 0.0
        %3592 = vmatpush.msra.mxu0 0.0
        %3593 = vmatpush.msra.mxu0 0.0
        %3594 = vmatpush.msra.mxu0 0.0
        %3595 = vmatpush.msra.mxu0 %v3542
        %3596 = vmatpush.msra.mxu0 %v3541
        %3597 = vmatpush.msra.mxu0 %v3540
        %3598 = vmatpush.msra.mxu0 %v3539
        %3599 = vmatmul.f32.gmra.mxu0 %v3572
        %v3600 = vpop.f32.mrf.mxu0
        %v3601 = vadd.f32 %v3554, %v3600
        %3602 = vmatmul.f32.gmra.mxu0 %v3575
        %v3603 = vpop.f32.mrf.mxu0
        %v3604 = vadd.f32 %v3559, %v3603
        %3605 = vmatmul.f32.gmra.mxu0 %v3578
        %v3606 = vpop.f32.mrf.mxu0
        %v3607 = vadd.f32 %v3564, %v3606
        %3608 = vmatmul.f32.gmra.mxu0 %v3581
        %v3609 = vpop.f32.mrf.mxu0
        %v3610 = vadd.f32 %v3569, %v3609
        %3611 = vdwg.mxu0
        %v3612 = vmul.f32 %v3601, 0.5
        %v3613 = vmul.f32 %v3604, 0.5
        %v3614 = vmul.f32 %v3607, 0.5
        %v3615 = vmul.f32 %v3610, 0.5
        %v3616 = vmul.f32 %v3601, 0.70710677
        %v3617 = vmul.f32 %v3604, 0.70710677
        %v3618 = vmul.f32 %v3607, 0.70710677
        %v3619 = vmul.f32 %v3610, 0.70710677
        %v3620 = vmul.f32 %v3616, %v3616
        %v3621 = vmin.f32 16.0, %v3620
        %v3622 = vmul.f32 %v3621, 2.1237322e-06
        %v3623 = vadd.f32 %v3622, 0.00028619796
        %v3624 = vmul.f32 %v3621, %v3623
        %v3625 = vadd.f32 %v3624, 0.0036580483
        %v3626 = vmul.f32 %v3621, %v3625
        %v3627 = vadd.f32 %v3626, 0.05243302
        %v3628 = vmul.f32 %v3621, %v3627
        %v3629 = vadd.f32 %v3628, 0.18741608
        %v3630 = vmul.f32 %v3621, %v3629
        %v3631 = vadd.f32 %v3630, 1.1283791
        %v3632 = vmul.f32 %v3616, %v3631
        %v3633 = vmul.f32 %v3621, 3.8918573e-05
        %v3634 = vadd.f32 %v3633, 0.001143296
        %v3635 = vmul.f32 %v3621, %v3634
        %v3636 = vadd.f32 %v3635, 0.014752088
        %v3637 = vmul.f32 %v3621, %v3636
        %v3638 = vadd.f32 %v3637, 0.112945676
        %v3639 = vmul.f32 %v3621, %v3638
        %v3640 = vadd.f32 %v3639, 0.4994258
        %v3641 = vmul.f32 %v3621, %v3640
        %v3642 = vadd.f32 %v3641, 1.0
        %v3643 = vrcp.pop %v3642
        %v3644 = vmul.f32 %v3642, %v3643
        %v3645 = vsub.f32 1.0, %v3644
        %v3646 = vmul.f32 %v3643, %v3645
        %v3647 = vadd.f32 %v3643, %v3646
        %vm3648 = vweird.f32 %v3642
        %vm3649 = vweird.f32 %v3643
        %vm3650 = vmor %vm3648, %vm3649
        %v3651 = vsel %vm3650, %v3643, %v3647
        %v3652 = vand.u32 2147483647, %v3642
        %vm3653 = vcmp.eq.f32.partialorder %v3652, 8.507059e+37
        %v3654 = vand.u32 %v3642, 2147483648
        %v3655 = vor.u32 1.1754944e-38, %v3654
        %v3656 = vsel %vm3653, %v3655, %v3651
        %v3657 = vmul.f32 %v3632, %v3656
        %v3658 = vmin.f32 %v3657, 1.0
        %v3659 = vmax.f32 %v3658, -1.0
        %v3660 = vmul.f32 %v3617, %v3617
        %v3661 = vmin.f32 16.0, %v3660
        %v3662 = vmul.f32 %v3661, 2.1237322e-06
        %v3663 = vadd.f32 %v3662, 0.00028619796
        %v3664 = vmul.f32 %v3661, %v3663
        %v3665 = vadd.f32 %v3664, 0.0036580483
        %v3666 = vmul.f32 %v3661, %v3665
        %v3667 = vadd.f32 %v3666, 0.05243302
        %v3668 = vmul.f32 %v3661, %v3667
        %v3669 = vadd.f32 %v3668, 0.18741608
        %v3670 = vmul.f32 %v3661, %v3669
        %v3671 = vadd.f32 %v3670, 1.1283791
        %v3672 = vmul.f32 %v3617, %v3671
        %v3673 = vmul.f32 %v3661, 3.8918573e-05
        %v3674 = vadd.f32 %v3673, 0.001143296
        %v3675 = vmul.f32 %v3661, %v3674
        %v3676 = vadd.f32 %v3675, 0.014752088
        %v3677 = vmul.f32 %v3661, %v3676
        %v3678 = vadd.f32 %v3677, 0.112945676
        %v3679 = vmul.f32 %v3661, %v3678
        %v3680 = vadd.f32 %v3679, 0.4994258
        %v3681 = vmul.f32 %v3661, %v3680
        %v3682 = vadd.f32 %v3681, 1.0
        %v3683 = vrcp.pop %v3682
        %v3684 = vmul.f32 %v3682, %v3683
        %v3685 = vsub.f32 1.0, %v3684
        %v3686 = vmul.f32 %v3683, %v3685
        %v3687 = vadd.f32 %v3683, %v3686
        %vm3688 = vweird.f32 %v3682
        %vm3689 = vweird.f32 %v3683
        %vm3690 = vmor %vm3688, %vm3689
        %v3691 = vsel %vm3690, %v3683, %v3687
        %v3692 = vand.u32 2147483647, %v3682
        %vm3693 = vcmp.eq.f32.partialorder %v3692, 8.507059e+37
        %v3694 = vand.u32 %v3682, 2147483648
        %v3695 = vor.u32 1.1754944e-38, %v3694
        %v3696 = vsel %vm3693, %v3695, %v3691
        %v3697 = vmul.f32 %v3672, %v3696
        %v3698 = vmin.f32 %v3697, 1.0
        %v3699 = vmax.f32 %v3698, -1.0
        %v3700 = vmul.f32 %v3618, %v3618
        %v3701 = vmin.f32 16.0, %v3700
        %v3702 = vmul.f32 %v3701, 2.1237322e-06
        %v3703 = vadd.f32 %v3702, 0.00028619796
        %v3704 = vmul.f32 %v3701, %v3703
        %v3705 = vadd.f32 %v3704, 0.0036580483
        %v3706 = vmul.f32 %v3701, %v3705
        %v3707 = vadd.f32 %v3706, 0.05243302
        %v3708 = vmul.f32 %v3701, %v3707
        %v3709 = vadd.f32 %v3708, 0.18741608
        %v3710 = vmul.f32 %v3701, %v3709
        %v3711 = vadd.f32 %v3710, 1.1283791
        %v3712 = vmul.f32 %v3618, %v3711
        %v3713 = vmul.f32 %v3701, 3.8918573e-05
        %v3714 = vadd.f32 %v3713, 0.001143296
        %v3715 = vmul.f32 %v3701, %v3714
        %v3716 = vadd.f32 %v3715, 0.014752088
        %v3717 = vmul.f32 %v3701, %v3716
        %v3718 = vadd.f32 %v3717, 0.112945676
        %v3719 = vmul.f32 %v3701, %v3718
        %v3720 = vadd.f32 %v3719, 0.4994258
        %v3721 = vmul.f32 %v3701, %v3720
        %v3722 = vadd.f32 %v3721, 1.0
        %v3723 = vrcp.pop %v3722
        %v3724 = vmul.f32 %v3722, %v3723
        %v3725 = vsub.f32 1.0, %v3724
        %v3726 = vmul.f32 %v3723, %v3725
        %v3727 = vadd.f32 %v3723, %v3726
        %vm3728 = vweird.f32 %v3722
        %vm3729 = vweird.f32 %v3723
        %vm3730 = vmor %vm3728, %vm3729
        %v3731 = vsel %vm3730, %v3723, %v3727
        %v3732 = vand.u32 2147483647, %v3722
        %vm3733 = vcmp.eq.f32.partialorder %v3732, 8.507059e+37
        %v3734 = vand.u32 %v3722, 2147483648
        %v3735 = vor.u32 1.1754944e-38, %v3734
        %v3736 = vsel %vm3733, %v3735, %v3731
        %v3737 = vmul.f32 %v3712, %v3736
        %v3738 = vmin.f32 %v3737, 1.0
        %v3739 = vmax.f32 %v3738, -1.0
        %v3740 = vmul.f32 %v3619, %v3619
        %v3741 = vmin.f32 16.0, %v3740
        %v3742 = vmul.f32 %v3741, 2.1237322e-06
        %v3743 = vadd.f32 %v3742, 0.00028619796
        %v3744 = vmul.f32 %v3741, %v3743
        %v3745 = vadd.f32 %v3744, 0.0036580483
        %v3746 = vmul.f32 %v3741, %v3745
        %v3747 = vadd.f32 %v3746, 0.05243302
        %v3748 = vmul.f32 %v3741, %v3747
        %v3749 = vadd.f32 %v3748, 0.18741608
        %v3750 = vmul.f32 %v3741, %v3749
        %v3751 = vadd.f32 %v3750, 1.1283791
        %v3752 = vmul.f32 %v3619, %v3751
        %v3753 = vmul.f32 %v3741, 3.8918573e-05
        %v3754 = vadd.f32 %v3753, 0.001143296
        %v3755 = vmul.f32 %v3741, %v3754
        %v3756 = vadd.f32 %v3755, 0.014752088
        %v3757 = vmul.f32 %v3741, %v3756
        %v3758 = vadd.f32 %v3757, 0.112945676
        %v3759 = vmul.f32 %v3741, %v3758
        %v3760 = vadd.f32 %v3759, 0.4994258
        %v3761 = vmul.f32 %v3741, %v3760
        %v3762 = vadd.f32 %v3761, 1.0
        %v3763 = vrcp.pop %v3762
        %v3764 = vmul.f32 %v3762, %v3763
        %v3765 = vsub.f32 1.0, %v3764
        %v3766 = vmul.f32 %v3763, %v3765
        %v3767 = vadd.f32 %v3763, %v3766
        %vm3768 = vweird.f32 %v3762
        %vm3769 = vweird.f32 %v3763
        %vm3770 = vmor %vm3768, %vm3769
        %v3771 = vsel %vm3770, %v3763, %v3767
        %v3772 = vand.u32 2147483647, %v3762
        %vm3773 = vcmp.eq.f32.partialorder %v3772, 8.507059e+37
        %v3774 = vand.u32 %v3762, 2147483648
        %v3775 = vor.u32 1.1754944e-38, %v3774
        %v3776 = vsel %vm3773, %v3775, %v3771
        %v3777 = vmul.f32 %v3752, %v3776
        %v3778 = vmin.f32 %v3777, 1.0
        %v3779 = vmax.f32 %v3778, -1.0
        %v3780 = vadd.f32 %v3659, 1.0
        %v3781 = vadd.f32 %v3699, 1.0
        %v3782 = vadd.f32 %v3739, 1.0
        %v3783 = vadd.f32 %v3779, 1.0
        %v3784 = vmul.f32 %v3612, %v3780
        %v3785 = vmul.f32 %v3613, %v3781
        %v3786 = vmul.f32 %v3614, %v3782
        %v3787 = vmul.f32 %v3615, %v3783
        %v3788 = vld [vmem:[%s71] sm:$0xff]
        %v3789 = vld [vmem:[%s71 + $0x8] sm:$0xff]
        %v3790 = vld [vmem:[%s71 + $0x10] sm:$0xff]
        %v3791 = vld [vmem:[%s71 + $0x18] sm:$0xff]
        %v3792 = vld [vmem:[%s73] sm:$0xff]
        %v3793 = vld [vmem:[%s73 + $0x8] sm:$0xff]
        %v3794 = vld [vmem:[%s73 + $0x10] sm:$0xff]
        %v3795 = vld [vmem:[%s73 + $0x18] sm:$0xff]
        %3797 = vset.pattern.permute.xlu0 0
        %3798 = vperm.xlu0 %3797, %v3792
        %v3799 = vpop.permute.xlu0 %3798
        %3802 = vset.pattern.permute.xlu0 0
        %3803 = vperm.xlu0 %3802, %v3793
        %v3804 = vpop.permute.xlu0 %3803
        %3807 = vset.pattern.permute.xlu0 0
        %3808 = vperm.xlu0 %3807, %v3794
        %v3809 = vpop.permute.xlu0 %3808
        %3812 = vset.pattern.permute.xlu0 0
        %3813 = vperm.xlu0 %3812, %v3795
        %v3814 = vpop.permute.xlu0 %3813
        %v3817 = vsel %vm1275, %v3788, 0
        %v3820 = vsel %vm1275, %v3789, 0
        %v3823 = vsel %vm1275, %v3790, 0
        %v3826 = vsel %vm1275, %v3791, 0
        %3828 = vmatpush.msra.mxu0 0.0
        %3829 = vmatpush.msra.mxu0 0.0
        %3830 = vmatpush.msra.mxu0 0.0
        %3831 = vmatpush.msra.mxu0 0.0
        %3832 = vmatpush.msra.mxu0 0.0
        %3833 = vmatpush.msra.mxu0 0.0
        %3834 = vmatpush.msra.mxu0 0.0
        %3835 = vmatpush.msra.mxu0 0.0
        %3836 = vmatpush.msra.mxu0 0.0
        %3837 = vmatpush.msra.mxu0 0.0
        %3838 = vmatpush.msra.mxu0 0.0
        %3839 = vmatpush.msra.mxu0 0.0
        %3840 = vmatpush.msra.mxu0 %v3787
        %3841 = vmatpush.msra.mxu0 %v3786
        %3842 = vmatpush.msra.mxu0 %v3785
        %3843 = vmatpush.msra.mxu0 %v3784
        %3844 = vmatmul.f32.gmra.mxu0 %v3817
        %v3845 = vpop.f32.mrf.mxu0
        %v3846 = vadd.f32 %v3799, %v3845
        %3847 = vmatmul.f32.gmra.mxu0 %v3820
        %v3848 = vpop.f32.mrf.mxu0
        %v3849 = vadd.f32 %v3804, %v3848
        %3850 = vmatmul.f32.gmra.mxu0 %v3823
        %v3851 = vpop.f32.mrf.mxu0
        %v3852 = vadd.f32 %v3809, %v3851
        %3853 = vmatmul.f32.gmra.mxu0 %v3826
        %v3854 = vpop.f32.mrf.mxu0
        %v3855 = vadd.f32 %v3814, %v3854
        %3856 = vdwg.mxu0
        %v3857 = vadd.f32 %v2583, %v3846
        %v3858 = vadd.f32 %v2584, %v3849
        %v3859 = vadd.f32 %v2585, %v3852
        %v3860 = vadd.f32 %v2586, %v3855
        %v3861 = vld [vmem:[%s11] sm:$0xf]
        %v3862 = vld [vmem:[%s13] sm:$0xf]
        %3864 = vset.pattern.permute.xlu0 0
        %3865 = vperm.xlu0 %3864, %v3862
        %v3866 = vpop.permute.xlu0 %3865
        %v3869 = vsel %vm1275, %v3861, 0
        %3871 = vmatpush.msra.mxu0 0.0
        %3872 = vmatpush.msra.mxu0 0.0
        %3873 = vmatpush.msra.mxu0 0.0
        %3874 = vmatpush.msra.mxu0 0.0
        %3875 = vmatpush.msra.mxu0 0.0
        %3876 = vmatpush.msra.mxu0 0.0
        %3877 = vmatpush.msra.mxu0 0.0
        %3878 = vmatpush.msra.mxu0 0.0
        %3879 = vmatpush.msra.mxu0 0.0
        %3880 = vmatpush.msra.mxu0 0.0
        %3881 = vmatpush.msra.mxu0 0.0
        %3882 = vmatpush.msra.mxu0 0.0
        %3883 = vmatpush.msra.mxu0 %v3860
        %3884 = vmatpush.msra.mxu0 %v3859
        %3885 = vmatpush.msra.mxu0 %v3858
        %3886 = vmatpush.msra.mxu0 %v3857
        %3887 = vmatmul.f32.gmra.mxu0 %v3869
        %v3888 = vpop.f32.mrf.mxu0
        %v3889 = vadd.f32 %v3866, %v3888
        %3890 = vdwg.mxu0
        %vm3891 = vcmask 125952
        %3892 = vst.msk [vmem:[%s1145] sm:$0xf] %vm3891, %v3889
        %s3893 = sand.u32 %s889, 1
        %s3894 = scalar_lea.sflag [#allocation4], %s3893
        %s3895 = sand.u32 %s889, 1
        %s3896 = smul.addr %s3895, 4
        %s3897 = scalar_lea.vmem [#allocation3], %s3896
        // Predicated region
        $region169: #{tpu_custom_call.1} parent=167 // pred_check
          %p3898 = pneg %p899
        $region170: #{tpu_custom_call.1} parent=167 // pred_check_branch
          %3900 = sbr.rel (%p3898) target = $region172
        $region171: #{tpu_custom_call.1} parent=167 // pred_region
          %3902 = vsyncadd %s3894, 0
          %s3903 = smul.addr %s89, 4
          %s3904 = scalar_lea.hbm %s75, %s3903
          %s3906 = sshll.u32 %s3897, 4
          %s3907 = int_to_ptr.vmem [resolvable:$true] %s3906
          %s3908 = sshll.u32 %s3904, 4
          %s3909 = int_to_ptr.hbm [resolvable:$true] %s3908
          %3911 = dma.vmem_to_hbm [thread:$0]  %s3907, 64, %s3909, %s3894
        $region172: #{tpu_custom_call.1} parent=167 // pred_fallthru
          _
      $region168: #{tpu_custom_call.1} parent=5 // pred_fallthru
        _
      %p3912 = scmp.le.s32.totalorder 2, %s84
      // Predicated region
      $region173: #{tpu_custom_call.1} parent=5 // pred_check
        %p3913 = pneg %p3912
      $region174: #{tpu_custom_call.1} parent=5 // pred_check_branch
        %3915 = sbr.rel (%p3913) target = $region176
      $region175: #{tpu_custom_call.1} parent=5 // pred_region
        %s3916 = ssub.s32 %s84, 2
        // Predicated region
        $region177: #{tpu_custom_call.1} parent=175 // pred_check
          %p3917 = pneg %p905
        $region178: #{tpu_custom_call.1} parent=175 // pred_check_branch
          %3919 = sbr.rel (%p3917) target = $region180
        $region179: #{tpu_custom_call.1} parent=175 // pred_region
          %s3920 = sand.u32 %s890, 1
          %s3921 = scalar_lea.sflag [#allocation4], %s3920
          %s3922 = sand.u32 %s890, 1
          %s3923 = smul.addr %s3922, 4
          %s3924 = scalar_lea.vmem [#allocation3], %s3923
          %3926 = dma.done %s3921, 64
        $region180: #{tpu_custom_call.1} parent=175 // pred_fallthru
          _
      $region176: #{tpu_custom_call.1} parent=5 // pred_fallthru
        _
    $region6: #{tpu_custom_call.1} parent=1 // loop_footer
      %s88 = sadd.s32 1, %s84
    $region7: #{tpu_custom_call.1} parent=1 // loop_footer_branch
      %83 = sbr.rel target = $region3
    $region8: #{tpu_custom_call.1} parent=1 // loop_exit
      _
    %3927 = vsyncpa [#allocation4], 1
    %s3928 = scalar_lea.sflag [#allocation4], 1
    %3929 = vsyncpa %s3928, 1

</llo_original>
